<compile_context>
chip_gen: v7x
topology: tpu7x:2x2x1
jax: 0.10.0
libtpu: 0.0.40
codegen_flags: <defaults>
</compile_context>

<pallas_src>
import functools
import math

import jax
import jax.numpy as jnp
from jax.experimental import pallas as pl
from jax.experimental.pallas import tpu as pltpu

LN_EPS = 1e-6


# ----------------------------- tiling helpers --------------------------------

def _row_tile(rows, target=256):
    """Row (sublane) tile: full if small, else `target` with a cdiv grid
    (edge blocks are masked on writeback)."""
    return rows if rows <= target else target


def _div_tile(dim, target, quantum=128):
    """Largest multiple of `quantum` <= target that evenly divides `dim`,
    falling back to the full dim (always a legal block)."""
    if dim <= target:
        return dim
    t = (target // quantum) * quantum
    while t >= quantum:
        if dim % t == 0:
            return t
        t -= quantum
    return dim


def _heads_per_block(num_heads, cap=8):
    hb = min(num_heads, cap)
    while num_heads % hb:
        hb -= 1
    return hb


# --------------------------- Pallas kernels ----------------------------------

def _linear_kernel(x_ref, w_ref, b_ref, o_ref, acc_ref):
    @pl.when(pl.program_id(2) == 0)
    def _():
        acc_ref[...] = jnp.zeros_like(acc_ref)
    acc_ref[...] += jnp.dot(x_ref[...], w_ref[...],
                            preferred_element_type=jnp.float32)

    @pl.when(pl.program_id(2) == pl.num_programs(2) - 1)
    def _():
        o_ref[...] = (acc_ref[...] + b_ref[...].astype(jnp.float32)
                      ).astype(o_ref.dtype)


def _linear_res_kernel(x_ref, w_ref, b_ref, r_ref, o_ref, acc_ref):
    @pl.when(pl.program_id(2) == 0)
    def _():
        acc_ref[...] = jnp.zeros_like(acc_ref)
    acc_ref[...] += jnp.dot(x_ref[...], w_ref[...],
                            preferred_element_type=jnp.float32)

    @pl.when(pl.program_id(2) == pl.num_programs(2) - 1)
    def _():
        o_ref[...] = (acc_ref[...] + b_ref[...].astype(jnp.float32)
                      + r_ref[...].astype(jnp.float32)).astype(o_ref.dtype)


def linear(x, w, b, residual=None, *, tm=256, tn=256, tk=512):
    """y = x @ w + b (+ residual).   x:(R,K)  w:(K,N)  b:(N,)  residual:(R,N)."""
    R, K = x.shape
    N = w.shape[1]
    tm = _row_tile(R, tm)
    tn = _div_tile(N, tn)
    tk = _div_tile(K, tk)
    grid = (pl.cdiv(R, tm), N // tn, K // tk)

    in_specs = [pl.BlockSpec((tm, tk), lambda i, j, k: (i, k)),
                pl.BlockSpec((tk, tn), lambda i, j, k: (k, j)),
                pl.BlockSpec((1, tn), lambda i, j, k: (0, j))]
    args = [x, w, b.reshape(1, N)]
    if residual is not None:
        in_specs.append(pl.BlockSpec((tm, tn), lambda i, j, k: (i, j)))
        args.append(residual)
        kernel = _linear_res_kernel
    else:
        kernel = _linear_kernel

    return pl.pallas_call(
        kernel,
        out_shape=jax.ShapeDtypeStruct((R, N), x.dtype),
        grid=grid,
        in_specs=in_specs,
        out_specs=pl.BlockSpec((tm, tn), lambda i, j, k: (i, j)),
        scratch_shapes=[pltpu.VMEM((tm, tn), jnp.float32)],
        compiler_params=pltpu.CompilerParams(
            dimension_semantics=("parallel", "parallel", "arbitrary")),
    )(*args)


def _ln_matmul_kernel(x_ref, g_ref, b_ref, w_ref, wb_ref, o_ref):
    x = x_ref[...].astype(jnp.float32)
    mean = jnp.mean(x, axis=-1, keepdims=True)
    var = jnp.mean((x - mean) ** 2, axis=-1, keepdims=True)
    xn = (x - mean) * jax.lax.rsqrt(var + LN_EPS)
    xn = xn * g_ref[...].astype(jnp.float32) + b_ref[...].astype(jnp.float32)
    acc = jnp.dot(xn.astype(w_ref.dtype), w_ref[...],
                  preferred_element_type=jnp.float32)
    o_ref[...] = (acc + wb_ref[...].astype(jnp.float32)).astype(o_ref.dtype)


def ln_matmul(x, g, b, w, wb, *, tm=256, tn=512):
    """y = LayerNorm(x) @ w + wb (LN fused into the consumer matmul).
    x:(R,D)  g,b:(D,)  w:(D,N)  wb:(N,)."""
    R, D = x.shape
    N = w.shape[1]
    tm = _row_tile(R, tm)
    tn = _div_tile(N, tn)
    grid = (pl.cdiv(R, tm), N // tn)
    return pl.pallas_call(
        _ln_matmul_kernel,
        out_shape=jax.ShapeDtypeStruct((R, N), x.dtype),
        grid=grid,
        in_specs=[pl.BlockSpec((tm, D), lambda i, j: (i, 0)),
                  pl.BlockSpec((1, D), lambda i, j: (0, 0)),
                  pl.BlockSpec((1, D), lambda i, j: (0, 0)),
                  pl.BlockSpec((D, tn), lambda i, j: (0, j)),
                  pl.BlockSpec((1, tn), lambda i, j: (0, j))],
        out_specs=pl.BlockSpec((tm, tn), lambda i, j: (i, j)),
        compiler_params=pltpu.CompilerParams(
            dimension_semantics=("parallel", "parallel")),
    )(x, g.reshape(1, D), b.reshape(1, D), w, wb.reshape(1, N))


def _ln_mlp_kernel(x_ref, g_ref, b_ref, w1_ref, b1_ref, w2_ref, b2_ref, o_ref):
    x = x_ref[...].astype(jnp.float32)
    mean = jnp.mean(x, axis=-1, keepdims=True)
    var = jnp.mean((x - mean) ** 2, axis=-1, keepdims=True)
    xn = (x - mean) * jax.lax.rsqrt(var + LN_EPS)
    xn = xn * g_ref[...].astype(jnp.float32) + b_ref[...].astype(jnp.float32)
    h = jnp.dot(xn.astype(w1_ref.dtype), w1_ref[...],
                preferred_element_type=jnp.float32) + b1_ref[...].astype(jnp.float32)
    # exact (erf) GELU, matching torch.nn.functional.gelu
    h = 0.5 * h * (1.0 + jax.lax.erf(h / jnp.sqrt(2.0)))
    o = jnp.dot(h.astype(w2_ref.dtype), w2_ref[...],
                preferred_element_type=jnp.float32) + b2_ref[...].astype(jnp.float32)
    # fused residual: the pre-LN input is the residual branch
    o_ref[...] = (o + x).astype(o_ref.dtype)


def ln_mlp(x, g, b, w1, b1, w2, b2, *, tm=256):
    """y = (fc2(GELU(fc1(LayerNorm(x))))) + x, row-tiled so the (tm, M)
    intermediate stays within VMEM (v7x: 64 MiB physical)."""
    R, D = x.shape
    M = w1.shape[1]
    tm = _row_tile(R, tm)
    grid = (pl.cdiv(R, tm),)
    return pl.pallas_call(
        _ln_mlp_kernel,
        out_shape=jax.ShapeDtypeStruct((R, D), x.dtype),
        grid=grid,
        in_specs=[pl.BlockSpec((tm, D), lambda i: (i, 0)),
                  pl.BlockSpec((1, D), lambda i: (0, 0)),
                  pl.BlockSpec((1, D), lambda i: (0, 0)),
                  pl.BlockSpec((D, M), lambda i: (0, 0)),
                  pl.BlockSpec((1, M), lambda i: (0, 0)),
                  pl.BlockSpec((M, D), lambda i: (0, 0)),
                  pl.BlockSpec((1, D), lambda i: (0, 0))],
        out_specs=pl.BlockSpec((tm, D), lambda i: (i, 0)),
        compiler_params=pltpu.CompilerParams(
            dimension_semantics=("parallel",)),
    )(x, g.reshape(1, D), b.reshape(1, D), w1, b1.reshape(1, M),
      w2, b2.reshape(1, D))


def _attention_kernel(q_ref, k_ref, v_ref, *out_refs, scale):
    o_ref = out_refs[0]
    # scale folded into q (T x dH multiply instead of T x T)
    q = q_ref[0] * scale                                   # (hb, T, dH)
    s = jnp.einsum("hqd,hkd->hqk", q, k_ref[0],
                   preferred_element_type=jnp.float32)      # (hb, T, T) f32
    s = s - jnp.max(s, axis=-1, keepdims=True)
    e = jnp.exp(s)
    probs = e / jnp.sum(e, axis=-1, keepdims=True)
    ctx = jnp.einsum("hqk,hkd->hqd", probs.astype(v_ref.dtype), v_ref[0],
                     preferred_element_type=jnp.float32)
    o_ref[0] = ctx.astype(o_ref.dtype)
    if len(out_refs) > 1:          # attention-probability output is optional
        out_refs[1][0] = probs.astype(out_refs[1].dtype)


def attention(q, k, v, scale, return_probs=True):
    """q,k,v: (B, nH, T, dH) -> (context (B,nH,T,dH), probs (B,nH,T,T) | None).
    Processes a group of heads per grid step to amortize per-step overhead."""
    B, H, T, Dh = q.shape
    hb = _heads_per_block(H)
    grid = (B, H // hb)
    qkv_spec = pl.BlockSpec((1, hb, T, Dh), lambda b, h: (b, h, 0, 0))
    out_shapes = [jax.ShapeDtypeStruct((B, H, T, Dh), q.dtype)]
    out_specs = [pl.BlockSpec((1, hb, T, Dh), lambda b, h: (b, h, 0, 0))]
    if return_probs:
        out_shapes.append(jax.ShapeDtypeStruct((B, H, T, T), q.dtype))
        out_specs.append(pl.BlockSpec((1, hb, T, T), lambda b, h: (b, h, 0, 0)))
    out = pl.pallas_call(
        functools.partial(_attention_kernel, scale=scale),
        out_shape=tuple(out_shapes),
        grid=grid,
        in_specs=[qkv_spec, qkv_spec, qkv_spec],
        out_specs=tuple(out_specs),
        compiler_params=pltpu.CompilerParams(
            dimension_semantics=("parallel", "parallel")),
    )(q, k, v)
    if return_probs:
        return out
    return out[0], None


# --------------------------- model (glue + kernels) ---------------------------

def pack_params(params, cfg):
    """Stack per-layer weights on a leading L axis (for lax.scan) and fuse the
    Q/K/V projections into a single (D, 3D) weight."""
    layers = params["layers"]

    def stack(name):
        return jnp.stack([lp[name] for lp in layers])

    packed_layers = {
        "ln1_w": stack("ln1_w"), "ln1_b": stack("ln1_b"),
        "wqkv": jnp.stack([jnp.concatenate([lp["wq"], lp["wk"], lp["wv"]], axis=1)
                           for lp in layers]),
        "bqkv": jnp.stack([jnp.concatenate([lp["bq"], lp["bk"], lp["bv"]])
                           for lp in layers]),
        "wo": stack("wo"), "bo": stack("bo"),
        "ln2_w": stack("ln2_w"), "ln2_b": stack("ln2_b"),
        "w1": stack("w1"), "b1": stack("b1"),
        "w2": stack("w2"), "b2": stack("b2"),
    }
    packed = {k: v for k, v in params.items() if k != "layers"}
    packed["layers"] = packed_layers
    return packed


def vit_forward(x_img, packed, cfg, return_attn=True):
    B, C, H, W = x_img.shape
    p, D, nH, L = cfg["patch"], cfg["hidden"], cfg["num_heads"], cfg["num_layers"]
    dh = D // nH
    gh, gw = H // p, W // p
    n_patches = gh * gw
    T = n_patches + 1
    scale = 1.0 / math.sqrt(dh)

    # patch embedding: Conv2d(kernel=stride=patch) == matmul over flattened
    # patches with (C, ph, pw) ordering, then flatten(2).transpose(-1,-2).
    patches = x_img.reshape(B, C, gh, p, gw, p).transpose(0, 2, 4, 1, 3, 5)
    patches = patches.reshape(B * n_patches, C * p * p)
    tok = linear(patches, packed["patch_w"], packed["patch_b"])
    tok = tok.reshape(B, n_patches, D)

    cls = jnp.broadcast_to(packed["cls_token"], (B, 1, D))
    x = jnp.concatenate([cls, tok], axis=1) + packed["pos_emb"]

    def layer_fn(x, lp):
        x2 = x.reshape(B * T, D)
        # fused LN1 + QKV projection (one HBM pass, one lane-dense matmul)
        qkv = ln_matmul(x2, lp["ln1_w"], lp["ln1_b"], lp["wqkv"], lp["bqkv"])
        qkv = qkv.reshape(B, T, 3, nH, dh).transpose(2, 0, 3, 1, 4)  # (3,B,nH,T,dh)
        ctx, probs = attention(qkv[0], qkv[1], qkv[2], scale,
                               return_probs=return_attn)
        ctx = ctx.transpose(0, 2, 1, 3).reshape(B * T, D)
        # output projection with fused residual add
        x_attn = linear(ctx, lp["wo"], lp["bo"], residual=x2)
        # fused LN2 + MLP + residual add
        x_new = ln_mlp(x_attn, lp["ln2_w"], lp["ln2_b"],
                       lp["w1"], lp["b1"], lp["w2"], lp["b2"])
        return x_new.reshape(B, T, D), probs

    x, probs_stack = jax.lax.scan(layer_fn, x, packed["layers"])

    # encoder_norm is per-row, so applying it only to the CLS rows before the
    # head is mathematically identical to norming the full sequence.
    logits = ln_matmul(x[:, 0], packed["enc_ln_w"], packed["enc_ln_b"],
                       packed["head_w"], packed["head_b"])

    attn_weights = [probs_stack[i] for i in range(L)] if return_attn else []
    return logits, attn_weights


# --------------------------- pure-JAX reference -------------------------------

def _ref_ln(x, g, b):
    m = jnp.mean(x, -1, keepdims=True)
    v = jnp.mean((x - m) ** 2, -1, keepdims=True)
    return (x - m) / jnp.sqrt(v + LN_EPS) * g + b


def vit_forward_ref(x_img, params, cfg):
    B, C, H, W = x_img.shape
    p, D, nH = cfg["patch"], cfg["hidden"], cfg["num_heads"]
    dh = D // nH
    gh, gw = H // p, W // p
    n_patches = gh * gw
    T = n_patches + 1
    scale = 1.0 / math.sqrt(dh)

    patches = x_img.reshape(B, C, gh, p, gw, p).transpose(0, 2, 4, 1, 3, 5)
    patches = patches.reshape(B, n_patches, C * p * p)
    tok = patches @ params["patch_w"] + params["patch_b"]
    cls = jnp.broadcast_to(params["cls_token"], (B, 1, D))
    x = jnp.concatenate([cls, tok], axis=1) + params["pos_emb"]

    for lp in params["layers"]:
        h_res = x
        xn = _ref_ln(x, lp["ln1_w"], lp["ln1_b"])
        q = (xn @ lp["wq"] + lp["bq"]).reshape(B, T, nH, dh).transpose(0, 2, 1, 3)
        k = (xn @ lp["wk"] + lp["bk"]).reshape(B, T, nH, dh).transpose(0, 2, 1, 3)
        v = (xn @ lp["wv"] + lp["bv"]).reshape(B, T, nH, dh).transpose(0, 2, 1, 3)
        s = jnp.einsum("bhqd,bhkd->bhqk", q, k) * scale
        probs = jax.nn.softmax(s, axis=-1)
        ctx = jnp.einsum("bhqk,bhkd->bhqd", probs, v)
        ctx = ctx.transpose(0, 2, 1, 3).reshape(B, T, D)
        x = ctx @ lp["wo"] + lp["bo"] + h_res

        h_res = x
        xn = _ref_ln(x, lp["ln2_w"], lp["ln2_b"])
        hmid = xn @ lp["w1"] + lp["b1"]
        hmid = 0.5 * hmid * (1.0 + jax.lax.erf(hmid / jnp.sqrt(2.0)))
        x = hmid @ lp["w2"] + lp["b2"] + h_res

    x = _ref_ln(x, params["enc_ln_w"], params["enc_ln_b"])
    logits = x[:, 0] @ params["head_w"] + params["head_b"]
    return logits, None


# --------------------------- parameter init -----------------------------------

def init_params(key, cfg):
    D, M = cfg["hidden"], cfg["mlp_dim"]
    C, p = cfg["channels"], cfg["patch"]
    T = (cfg["img"] // p) ** 2 + 1
    NC = cfg["classes"]

    def nrm(k, shape, s=0.02):
        return s * jax.random.normal(k, shape, jnp.float32)

    keys = iter(jax.random.split(key, 8 + 12 * cfg["num_layers"]))
    params = {
        "patch_w": nrm(next(keys), (C * p * p, D)),
        "patch_b": jnp.zeros((D,), jnp.float32),
        "cls_token": nrm(next(keys), (1, 1, D)),
        "pos_emb": nrm(next(keys), (1, T, D)),
        "enc_ln_w": jnp.ones((D,), jnp.float32),
        "enc_ln_b": jnp.zeros((D,), jnp.float32),
        "head_w": nrm(next(keys), (D, NC)),
        "head_b": jnp.zeros((NC,), jnp.float32),
        "layers": [],
    }
    for _ in range(cfg["num_layers"]):
        params["layers"].append({
            "ln1_w": jnp.ones((D,), jnp.float32),
            "ln1_b": jnp.zeros((D,), jnp.float32),
            "wq": nrm(next(keys), (D, D)), "bq": jnp.zeros((D,), jnp.float32),
            "wk": nrm(next(keys), (D, D)), "bk": jnp.zeros((D,), jnp.float32),
            "wv": nrm(next(keys), (D, D)), "bv": jnp.zeros((D,), jnp.float32),
            "wo": nrm(next(keys), (D, D)), "bo": jnp.zeros((D,), jnp.float32),
            "ln2_w": jnp.ones((D,), jnp.float32),
            "ln2_b": jnp.zeros((D,), jnp.float32),
            "w1": nrm(next(keys), (D, M)), "b1": jnp.zeros((M,), jnp.float32),
            "w2": nrm(next(keys), (M, D)), "b2": jnp.zeros((D,), jnp.float32),
        })
    return params


# --------------------------- main ----------------------------------------------

if __name__ == "__main__":
    cfg = dict(hidden=32, mlp_dim=64, num_heads=4, num_layers=2,
               patch=4, img=16, channels=3, classes=10)

    key = jax.random.PRNGKey(0)
    kx, kp = jax.random.split(key)
    x = jax.random.normal(kx, (2, cfg["channels"], cfg["img"], cfg["img"]),
                          jnp.float32)
    params = init_params(kp, cfg)
    packed = pack_params(params, cfg)

    fwd = jax.jit(lambda img, pp: vit_forward(img, pp, cfg, return_attn=True))
    logits, attn_weights = fwd(x, packed)
    logits = jax.block_until_ready(logits)
    attn_weights = jax.block_until_ready(attn_weights)

    ref_logits, _ = vit_forward_ref(x, params, cfg)
    assert logits.shape == (2, cfg["classes"])
    assert len(attn_weights) == cfg["num_layers"]
    assert attn_weights[0].shape == (2, cfg["num_heads"], 17, 17)
    assert jnp.allclose(logits, ref_logits, atol=1e-4, rtol=1e-4), "mismatch vs reference"

    print("KERNEL_OK")
</pallas_src>

<mosaic_0001>
module attributes {stable_mosaic.version = 11 : i64} {
  func.func @_linear_kernel(%arg0: i32, %arg1: i32, %arg2: i32, %arg3: memref<32x48xf32, #tpu.memory_space<vmem>>, %arg4: memref<48x32xf32, #tpu.memory_space<vmem>>, %arg5: memref<1x32xf32, #tpu.memory_space<vmem>>, %arg6: memref<32x32xf32, #tpu.memory_space<vmem>>, %arg7: memref<32x32xf32, #tpu.memory_space<vmem>>) attributes {dimension_semantics = [#tpu.dimension_semantics<parallel>, #tpu.dimension_semantics<parallel>, #tpu.dimension_semantics<arbitrary>], iteration_bounds = array<i64: 1, 1, 1>, scalar_prefetch = 0 : i64, scratch_operands = 1 : i64, tpu.core_type = #tpu.core_type<tc>, window_params = [{transform_indices = @transform_0, window_bounds = array<i64: 32, 48>}, {transform_indices = @transform_1, window_bounds = array<i64: 48, 32>}, {transform_indices = @transform_2, window_bounds = array<i64: 1, 32>}, {transform_indices = @transform_3, window_bounds = array<i64: 32, 32>}]} {
    %c0_i32 = arith.constant 0 : i32
    %0 = arith.cmpi eq, %arg2, %c0_i32 : i32
    %1 = arith.extui %0 : i1 to i32
    %c0_i32_0 = arith.constant 0 : i32
    %2 = arith.cmpi ne, %1, %c0_i32_0 : i32
    scf.if %2 {
      %cst_10 = arith.constant 0.000000e+00 : f32
      %12 = vector.broadcast %cst_10 : f32 to vector<32x32xf32>
      %c0_11 = arith.constant 0 : index
      %c0_12 = arith.constant 0 : index
      %13 = vector.load %arg7[%c0_11, %c0_12] : memref<32x32xf32, #tpu.memory_space<vmem>>, vector<32x32xf32>
      tpu.vector_store %arg7[%c0_11, %c0_12], %12 {strides = array<i32>} : memref<32x32xf32, #tpu.memory_space<vmem>>, vector<32x32xf32>,
    } else {
    }
    %c0 = arith.constant 0 : index
    %c0_1 = arith.constant 0 : index
    %3 = vector.load %arg7[%c0, %c0_1] : memref<32x32xf32, #tpu.memory_space<vmem>>, vector<32x32xf32>
    %c0_2 = arith.constant 0 : index
    %c0_3 = arith.constant 0 : index
    %4 = vector.load %arg3[%c0_2, %c0_3] : memref<32x48xf32, #tpu.memory_space<vmem>>, vector<32x48xf32>
    %c0_4 = arith.constant 0 : index
    %c0_5 = arith.constant 0 : index
    %5 = vector.load %arg4[%c0_4, %c0_5] : memref<48x32xf32, #tpu.memory_space<vmem>>, vector<48x32xf32>
    %cst = arith.constant dense<0.000000e+00> : vector<32x32xf32>
    %6 = tpu.matmul %4, %5, %cst {dimension_numbers = #tpu.dot_dimension_numbers<[1], [0], [0], [1], [0, 0, 1, 1], [], []>} : vector<32x48xf32>, vector<48x32xf32>, vector<32x32xf32> -> vector<32x32xf32>
    %7 = arith.addf %3, %6 : vector<32x32xf32>
    %c0_6 = arith.constant 0 : index
    %c0_7 = arith.constant 0 : index
    %8 = vector.load %arg7[%c0_6, %c0_7] : memref<32x32xf32, #tpu.memory_space<vmem>>, vector<32x32xf32>
    tpu.vector_store %arg7[%c0_6, %c0_7], %7 {strides = array<i32>} : memref<32x32xf32, #tpu.memory_space<vmem>>, vector<32x32xf32>,
    %c0_i32_8 = arith.constant 0 : i32
    %9 = arith.cmpi eq, %arg2, %c0_i32_8 : i32
    %10 = arith.extui %9 : i1 to i32
    %c0_i32_9 = arith.constant 0 : i32
    %11 = arith.cmpi ne, %10, %c0_i32_9 : i32
    scf.if %11 {
      %c0_10 = arith.constant 0 : index
      %c0_11 = arith.constant 0 : index
      %12 = vector.load %arg7[%c0_10, %c0_11] : memref<32x32xf32, #tpu.memory_space<vmem>>, vector<32x32xf32>
      %c0_12 = arith.constant 0 : index
      %c0_13 = arith.constant 0 : index
      %13 = vector.load %arg5[%c0_12, %c0_13] : memref<1x32xf32, #tpu.memory_space<vmem>>, vector<1x32xf32>
      %14 = vector.broadcast %13 : vector<1x32xf32> to vector<32x32xf32>
      %15 = arith.addf %12, %14 : vector<32x32xf32>
      %c0_14 = arith.constant 0 : index
      %c0_15 = arith.constant 0 : index
      %16 = vector.load %arg6[%c0_14, %c0_15] : memref<32x32xf32, #tpu.memory_space<vmem>>, vector<32x32xf32>
      tpu.vector_store %arg6[%c0_14, %c0_15], %15 {strides = array<i32>} : memref<32x32xf32, #tpu.memory_space<vmem>>, vector<32x32xf32>,
    } else {
    }
    return
  }
  func.func @transform_0(%arg0: i32, %arg1: i32, %arg2: i32) -> (i32, i32) {
    %c0_i32 = arith.constant 0 : i32
    return %arg0, %arg2 : i32, i32
  }
  func.func @transform_1(%arg0: i32, %arg1: i32, %arg2: i32) -> (i32, i32) {
    %c0_i32 = arith.constant 0 : i32
    return %arg2, %arg1 : i32, i32
  }
  func.func @transform_2(%arg0: i32, %arg1: i32, %arg2: i32) -> (i32, i32) {
    %c0_i32 = arith.constant 0 : i32
    %c0_i32_0 = arith.constant 0 : i32
    return %c0_i32, %arg1 : i32, i32
  }
  func.func @transform_3(%arg0: i32, %arg1: i32, %arg2: i32) -> (i32, i32) {
    %c0_i32 = arith.constant 0 : i32
    return %arg0, %arg1 : i32, i32
  }
}

module attributes {stable_mosaic.version = 11 : i64} {
  func.func @_ln_matmul_kernel(%arg0: i32, %arg1: i32, %arg2: memref<34x32xf32, #tpu.memory_space<vmem>>, %arg3: memref<1x32xf32, #tpu.memory_space<vmem>>, %arg4: memref<1x32xf32, #tpu.memory_space<vmem>>, %arg5: memref<32x96xf32, #tpu.memory_space<vmem>>, %arg6: memref<1x96xf32, #tpu.memory_space<vmem>>, %arg7: memref<34x96xf32, #tpu.memory_space<vmem>>) attributes {dimension_semantics = [#tpu.dimension_semantics<parallel>, #tpu.dimension_semantics<parallel>], iteration_bounds = array<i64: 1, 1>, scalar_prefetch = 0 : i64, scratch_operands = 0 : i64, tpu.core_type = #tpu.core_type<tc>, window_params = [{transform_indices = @transform_0, window_bounds = array<i64: 34, 32>}, {pipeline_mode = #tpu.pipeline_mode<synchronous>, transform_indices = @transform_1, window_bounds = array<i64: 1, 32>}, {pipeline_mode = #tpu.pipeline_mode<synchronous>, transform_indices = @transform_2, window_bounds = array<i64: 1, 32>}, {transform_indices = @transform_3, window_bounds = array<i64: 32, 96>}, {transform_indices = @transform_4, window_bounds = array<i64: 1, 96>}, {transform_indices = @transform_5, window_bounds = array<i64: 34, 96>}]} {
    %c0 = arith.constant 0 : index
    %c0_0 = arith.constant 0 : index
    %0 = vector.load %arg2[%c0, %c0_0] : memref<34x32xf32, #tpu.memory_space<vmem>>, vector<34x32xf32>
    %cst = arith.constant dense<0.000000e+00> : vector<34xf32>
    %1 = vector.multi_reduction <add>, %0, %cst [1] : vector<34x32xf32> to vector<34xf32>
    %2 = vector.shape_cast %1 : vector<34xf32> to vector<34x1xf32>
    %cst_1 = arith.constant 3.200000e+01 : f32
    %3 = vector.broadcast %cst_1 : f32 to vector<34x1xf32>
    %4 = arith.divf %2, %3 : vector<34x1xf32>
    %5 = vector.broadcast %4 : vector<34x1xf32> to vector<34x32xf32>
    %6 = arith.subf %0, %5 : vector<34x32xf32>
    %7 = arith.mulf %6, %6 : vector<34x32xf32>
    %cst_2 = arith.constant dense<0.000000e+00> : vector<34xf32>
    %8 = vector.multi_reduction <add>, %7, %cst_2 [1] : vector<34x32xf32> to vector<34xf32>
    %9 = vector.shape_cast %8 : vector<34xf32> to vector<34x1xf32>
    %cst_3 = arith.constant 3.200000e+01 : f32
    %10 = vector.broadcast %cst_3 : f32 to vector<34x1xf32>
    %11 = arith.divf %9, %10 : vector<34x1xf32>
    %12 = vector.broadcast %4 : vector<34x1xf32> to vector<34x32xf32>
    %13 = arith.subf %0, %12 : vector<34x32xf32>
    %cst_4 = arith.constant 9.99999997E-7 : f32
    %14 = vector.broadcast %cst_4 : f32 to vector<34x1xf32>
    %15 = arith.addf %11, %14 : vector<34x1xf32>
    %16 = math.rsqrt %15 : vector<34x1xf32>
    %17 = vector.broadcast %16 : vector<34x1xf32> to vector<34x32xf32>
    %18 = arith.mulf %13, %17 : vector<34x32xf32>
    %c0_5 = arith.constant 0 : index
    %c0_6 = arith.constant 0 : index
    %19 = vector.load %arg3[%c0_5, %c0_6] : memref<1x32xf32, #tpu.memory_space<vmem>>, vector<1x32xf32>
    %20 = vector.broadcast %19 : vector<1x32xf32> to vector<34x32xf32>
    %21 = arith.mulf %18, %20 : vector<34x32xf32>
    %c0_7 = arith.constant 0 : index
    %c0_8 = arith.constant 0 : index
    %22 = vector.load %arg4[%c0_7, %c0_8] : memref<1x32xf32, #tpu.memory_space<vmem>>, vector<1x32xf32>
    %23 = vector.broadcast %22 : vector<1x32xf32> to vector<34x32xf32>
    %24 = arith.addf %21, %23 : vector<34x32xf32>
    %c0_9 = arith.constant 0 : index
    %c0_10 = arith.constant 0 : index
    %25 = vector.load %arg5[%c0_9, %c0_10] : memref<32x96xf32, #tpu.memory_space<vmem>>, vector<32x96xf32>
    %cst_11 = arith.constant dense<0.000000e+00> : vector<34x96xf32>
    %26 = tpu.matmul %24, %25, %cst_11 {dimension_numbers = #tpu.dot_dimension_numbers<[1], [0], [0], [1], [0, 0, 1, 1], [], []>} : vector<34x32xf32>, vector<32x96xf32>, vector<34x96xf32> -> vector<34x96xf32>
    %c0_12 = arith.constant 0 : index
    %c0_13 = arith.constant 0 : index
    %27 = vector.load %arg6[%c0_12, %c0_13] : memref<1x96xf32, #tpu.memory_space<vmem>>, vector<1x96xf32>
    %28 = vector.broadcast %27 : vector<1x96xf32> to vector<34x96xf32>
    %29 = arith.addf %26, %28 : vector<34x96xf32>
    %c0_14 = arith.constant 0 : index
    %c0_15 = arith.constant 0 : index
    %30 = vector.load %arg7[%c0_14, %c0_15] : memref<34x96xf32, #tpu.memory_space<vmem>>, vector<34x96xf32>
    tpu.vector_store %arg7[%c0_14, %c0_15], %29 {strides = array<i32>} : memref<34x96xf32, #tpu.memory_space<vmem>>, vector<34x96xf32>,
    return
  }
  func.func @transform_0(%arg0: i32, %arg1: i32) -> (i32, i32) {
    %c0_i32 = arith.constant 0 : i32
    %c0_i32_0 = arith.constant 0 : i32
    return %arg0, %c0_i32 : i32, i32
  }
  func.func @transform_1(%arg0: i32, %arg1: i32) -> (i32, i32) {
    %c0_i32 = arith.constant 0 : i32
    %c0_i32_0 = arith.constant 0 : i32
    %c0_i32_1 = arith.constant 0 : i32
    return %c0_i32, %c0_i32_0 : i32, i32
  }
  func.func @transform_2(%arg0: i32, %arg1: i32) -> (i32, i32) {
    %c0_i32 = arith.constant 0 : i32
    %c0_i32_0 = arith.constant 0 : i32
    %c0_i32_1 = arith.constant 0 : i32
    return %c0_i32, %c0_i32_0 : i32, i32
  }
  func.func @transform_3(%arg0: i32, %arg1: i32) -> (i32, i32) {
    %c0_i32 = arith.constant 0 : i32
    %c0_i32_0 = arith.constant 0 : i32
    return %c0_i32, %arg1 : i32, i32
  }
  func.func @transform_4(%arg0: i32, %arg1: i32) -> (i32, i32) {
    %c0_i32 = arith.constant 0 : i32
    %c0_i32_0 = arith.constant 0 : i32
    return %c0_i32, %arg1 : i32, i32
  }
  func.func @transform_5(%arg0: i32, %arg1: i32) -> (i32, i32) {
    %c0_i32 = arith.constant 0 : i32
    return %arg0, %arg1 : i32, i32
  }
}

module attributes {stable_mosaic.version = 11 : i64} {
  func.func @_attention_kernel(%arg0: i32, %arg1: i32, %arg2: memref<1x4x17x8xf32, #tpu.memory_space<vmem>>, %arg3: memref<1x4x17x8xf32, #tpu.memory_space<vmem>>, %arg4: memref<1x4x17x8xf32, #tpu.memory_space<vmem>>, %arg5: memref<1x4x17x8xf32, #tpu.memory_space<vmem>>, %arg6: memref<1x4x17x17xf32, #tpu.memory_space<vmem>>) attributes {dimension_semantics = [#tpu.dimension_semantics<parallel>, #tpu.dimension_semantics<parallel>], iteration_bounds = array<i64: 2, 1>, scalar_prefetch = 0 : i64, scratch_operands = 0 : i64, tpu.core_type = #tpu.core_type<tc>, window_params = [{transform_indices = @transform_0, window_bounds = array<i64: 1, 4, 17, 8>}, {transform_indices = @transform_1, window_bounds = array<i64: 1, 4, 17, 8>}, {transform_indices = @transform_2, window_bounds = array<i64: 1, 4, 17, 8>}, {transform_indices = @transform_3, window_bounds = array<i64: 1, 4, 17, 8>}, {transform_indices = @transform_4, window_bounds = array<i64: 1, 4, 17, 17>}]} {
    %c0 = arith.constant 0 : index
    %c0_0 = arith.constant 0 : index
    %c0_1 = arith.constant 0 : index
    %c0_2 = arith.constant 0 : index
    %0 = vector.load %arg2[%c0, %c0_0, %c0_1, %c0_2] : memref<1x4x17x8xf32, #tpu.memory_space<vmem>>, vector<1x4x17x8xf32>
    %1 = vector.shape_cast %0 : vector<1x4x17x8xf32> to vector<4x17x8xf32>
    %cst = arith.constant 0.353553385 : f32
    %2 = vector.broadcast %cst : f32 to vector<4x17x8xf32>
    %3 = arith.mulf %1, %2 : vector<4x17x8xf32>
    %c0_3 = arith.constant 0 : index
    %c0_4 = arith.constant 0 : index
    %c0_5 = arith.constant 0 : index
    %c0_6 = arith.constant 0 : index
    %4 = vector.load %arg3[%c0_3, %c0_4, %c0_5, %c0_6] : memref<1x4x17x8xf32, #tpu.memory_space<vmem>>, vector<1x4x17x8xf32>
    %5 = vector.shape_cast %4 : vector<1x4x17x8xf32> to vector<4x17x8xf32>
    "tpu.trace_start"() <{level = 10 : i32, message = "hqd,hkd->hqk"}> : () -> ()
    %cst_7 = arith.constant dense<0.000000e+00> : vector<4x17x17xf32>
    %6 = tpu.matmul %3, %5, %cst_7 {dimension_numbers = #tpu.dot_dimension_numbers<[2], [2], [1], [1], [0, 0, 0, 1, 1, 1], [0], [0]>} : vector<4x17x8xf32>, vector<4x17x8xf32>, vector<4x17x17xf32> -> vector<4x17x17xf32>
    "tpu.trace_stop"() : () -> ()
    %cst_8 = arith.constant dense<0xFF800000> : vector<4x17xf32>
    %7 = vector.multi_reduction <maximumf>, %6, %cst_8 [2] : vector<4x17x17xf32> to vector<4x17xf32>
    %8 = vector.shape_cast %7 : vector<4x17xf32> to vector<4x17x1xf32>
    %9 = vector.broadcast %8 : vector<4x17x1xf32> to vector<4x17x17xf32>
    %10 = arith.subf %6, %9 : vector<4x17x17xf32>
    %11 = math.exp %10 : vector<4x17x17xf32>
    %cst_9 = arith.constant dense<0.000000e+00> : vector<4x17xf32>
    %12 = vector.multi_reduction <add>, %11, %cst_9 [2] : vector<4x17x17xf32> to vector<4x17xf32>
    %13 = vector.shape_cast %12 : vector<4x17xf32> to vector<4x17x1xf32>
    %14 = vector.broadcast %13 : vector<4x17x1xf32> to vector<4x17x17xf32>
    %15 = arith.divf %11, %14 : vector<4x17x17xf32>
    %c0_10 = arith.constant 0 : index
    %c0_11 = arith.constant 0 : index
    %c0_12 = arith.constant 0 : index
    %c0_13 = arith.constant 0 : index
    %16 = vector.load %arg4[%c0_10, %c0_11, %c0_12, %c0_13] : memref<1x4x17x8xf32, #tpu.memory_space<vmem>>, vector<1x4x17x8xf32>
    %17 = vector.shape_cast %16 : vector<1x4x17x8xf32> to vector<4x17x8xf32>
    "tpu.trace_start"() <{level = 10 : i32, message = "hqk,hkd->hqd"}> : () -> ()
    %cst_14 = arith.constant dense<0.000000e+00> : vector<4x17x8xf32>
    %18 = tpu.matmul %15, %17, %cst_14 {dimension_numbers = #tpu.dot_dimension_numbers<[2], [1], [1], [2], [0, 0, 0, 1, 1, 2], [0], [0]>} : vector<4x17x17xf32>, vector<4x17x8xf32>, vector<4x17x8xf32> -> vector<4x17x8xf32>
    "tpu.trace_stop"() : () -> ()
    %c0_15 = arith.constant 0 : index
    %c0_16 = arith.constant 0 : index
    %c0_17 = arith.constant 0 : index
    %c0_18 = arith.constant 0 : index
    %19 = vector.load %arg5[%c0_15, %c0_16, %c0_17, %c0_18] : memref<1x4x17x8xf32, #tpu.memory_space<vmem>>, vector<1x4x17x8xf32>
    %20 = vector.shape_cast %19 : vector<1x4x17x8xf32> to vector<4x17x8xf32>
    %21 = vector.shape_cast %18 : vector<4x17x8xf32> to vector<1x4x17x8xf32>
    tpu.vector_store %arg5[%c0_15, %c0_16, %c0_17, %c0_18], %21 {strides = array<i32>} : memref<1x4x17x8xf32, #tpu.memory_space<vmem>>, vector<1x4x17x8xf32>,
    %c0_19 = arith.constant 0 : index
    %c0_20 = arith.constant 0 : index
    %c0_21 = arith.constant 0 : index
    %c0_22 = arith.constant 0 : index
    %22 = vector.load %arg6[%c0_19, %c0_20, %c0_21, %c0_22] : memref<1x4x17x17xf32, #tpu.memory_space<vmem>>, vector<1x4x17x17xf32>
    %23 = vector.shape_cast %22 : vector<1x4x17x17xf32> to vector<4x17x17xf32>
    %24 = vector.shape_cast %15 : vector<4x17x17xf32> to vector<1x4x17x17xf32>
    tpu.vector_store %arg6[%c0_19, %c0_20, %c0_21, %c0_22], %24 {strides = array<i32>} : memref<1x4x17x17xf32, #tpu.memory_space<vmem>>, vector<1x4x17x17xf32>,
    return
  }
  func.func @transform_0(%arg0: i32, %arg1: i32) -> (i32, i32, i32, i32) {
    %c0_i32 = arith.constant 0 : i32
    %c0_i32_0 = arith.constant 0 : i32
    %c0_i32_1 = arith.constant 0 : i32
    return %arg0, %arg1, %c0_i32, %c0_i32_0 : i32, i32, i32, i32
  }
  func.func @transform_1(%arg0: i32, %arg1: i32) -> (i32, i32, i32, i32) {
    %c0_i32 = arith.constant 0 : i32
    %c0_i32_0 = arith.constant 0 : i32
    %c0_i32_1 = arith.constant 0 : i32
    return %arg0, %arg1, %c0_i32, %c0_i32_0 : i32, i32, i32, i32
  }
  func.func @transform_2(%arg0: i32, %arg1: i32) -> (i32, i32, i32, i32) {
    %c0_i32 = arith.constant 0 : i32
    %c0_i32_0 = arith.constant 0 : i32
    %c0_i32_1 = arith.constant 0 : i32
    return %arg0, %arg1, %c0_i32, %c0_i32_0 : i32, i32, i32, i32
  }
  func.func @transform_3(%arg0: i32, %arg1: i32) -> (i32, i32, i32, i32) {
    %c0_i32 = arith.constant 0 : i32
    %c0_i32_0 = arith.constant 0 : i32
    %c0_i32_1 = arith.constant 0 : i32
    return %arg0, %arg1, %c0_i32, %c0_i32_0 : i32, i32, i32, i32
  }
  func.func @transform_4(%arg0: i32, %arg1: i32) -> (i32, i32, i32, i32) {
    %c0_i32 = arith.constant 0 : i32
    %c0_i32_0 = arith.constant 0 : i32
    %c0_i32_1 = arith.constant 0 : i32
    return %arg0, %arg1, %c0_i32, %c0_i32_0 : i32, i32, i32, i32
  }
}

module attributes {stable_mosaic.version = 11 : i64} {
  func.func @_linear_res_kernel(%arg0: i32, %arg1: i32, %arg2: i32, %arg3: memref<34x32xf32, #tpu.memory_space<vmem>>, %arg4: memref<32x32xf32, #tpu.memory_space<vmem>>, %arg5: memref<1x32xf32, #tpu.memory_space<vmem>>, %arg6: memref<34x32xf32, #tpu.memory_space<vmem>>, %arg7: memref<34x32xf32, #tpu.memory_space<vmem>>, %arg8: memref<34x32xf32, #tpu.memory_space<vmem>>) attributes {dimension_semantics = [#tpu.dimension_semantics<parallel>, #tpu.dimension_semantics<parallel>, #tpu.dimension_semantics<arbitrary>], iteration_bounds = array<i64: 1, 1, 1>, scalar_prefetch = 0 : i64, scratch_operands = 1 : i64, tpu.core_type = #tpu.core_type<tc>, window_params = [{transform_indices = @transform_0, window_bounds = array<i64: 34, 32>}, {transform_indices = @transform_1, window_bounds = array<i64: 32, 32>}, {transform_indices = @transform_2, window_bounds = array<i64: 1, 32>}, {transform_indices = @transform_3, window_bounds = array<i64: 34, 32>}, {transform_indices = @transform_4, window_bounds = array<i64: 34, 32>}]} {
    %c0_i32 = arith.constant 0 : i32
    %0 = arith.cmpi eq, %arg2, %c0_i32 : i32
    %1 = arith.extui %0 : i1 to i32
    %c0_i32_0 = arith.constant 0 : i32
    %2 = arith.cmpi ne, %1, %c0_i32_0 : i32
    scf.if %2 {
      %cst_10 = arith.constant 0.000000e+00 : f32
      %12 = vector.broadcast %cst_10 : f32 to vector<34x32xf32>
      %c0_11 = arith.constant 0 : index
      %c0_12 = arith.constant 0 : index
      %13 = vector.load %arg8[%c0_11, %c0_12] : memref<34x32xf32, #tpu.memory_space<vmem>>, vector<34x32xf32>
      tpu.vector_store %arg8[%c0_11, %c0_12], %12 {strides = array<i32>} : memref<34x32xf32, #tpu.memory_space<vmem>>, vector<34x32xf32>,
    } else {
    }
    %c0 = arith.constant 0 : index
    %c0_1 = arith.constant 0 : index
    %3 = vector.load %arg8[%c0, %c0_1] : memref<34x32xf32, #tpu.memory_space<vmem>>, vector<34x32xf32>
    %c0_2 = arith.constant 0 : index
    %c0_3 = arith.constant 0 : index
    %4 = vector.load %arg3[%c0_2, %c0_3] : memref<34x32xf32, #tpu.memory_space<vmem>>, vector<34x32xf32>
    %c0_4 = arith.constant 0 : index
    %c0_5 = arith.constant 0 : index
    %5 = vector.load %arg4[%c0_4, %c0_5] : memref<32x32xf32, #tpu.memory_space<vmem>>, vector<32x32xf32>
    %cst = arith.constant dense<0.000000e+00> : vector<34x32xf32>
    %6 = tpu.matmul %4, %5, %cst {dimension_numbers = #tpu.dot_dimension_numbers<[1], [0], [0], [1], [0, 0, 1, 1], [], []>} : vector<34x32xf32>, vector<32x32xf32>, vector<34x32xf32> -> vector<34x32xf32>
    %7 = arith.addf %3, %6 : vector<34x32xf32>
    %c0_6 = arith.constant 0 : index
    %c0_7 = arith.constant 0 : index
    %8 = vector.load %arg8[%c0_6, %c0_7] : memref<34x32xf32, #tpu.memory_space<vmem>>, vector<34x32xf32>
    tpu.vector_store %arg8[%c0_6, %c0_7], %7 {strides = array<i32>} : memref<34x32xf32, #tpu.memory_space<vmem>>, vector<34x32xf32>,
    %c0_i32_8 = arith.constant 0 : i32
    %9 = arith.cmpi eq, %arg2, %c0_i32_8 : i32
    %10 = arith.extui %9 : i1 to i32
    %c0_i32_9 = arith.constant 0 : i32
    %11 = arith.cmpi ne, %10, %c0_i32_9 : i32
    scf.if %11 {
      %c0_10 = arith.constant 0 : index
      %c0_11 = arith.constant 0 : index
      %12 = vector.load %arg8[%c0_10, %c0_11] : memref<34x32xf32, #tpu.memory_space<vmem>>, vector<34x32xf32>
      %c0_12 = arith.constant 0 : index
      %c0_13 = arith.constant 0 : index
      %13 = vector.load %arg5[%c0_12, %c0_13] : memref<1x32xf32, #tpu.memory_space<vmem>>, vector<1x32xf32>
      %14 = vector.broadcast %13 : vector<1x32xf32> to vector<34x32xf32>
      %15 = arith.addf %12, %14 : vector<34x32xf32>
      %c0_14 = arith.constant 0 : index
      %c0_15 = arith.constant 0 : index
      %16 = vector.load %arg6[%c0_14, %c0_15] : memref<34x32xf32, #tpu.memory_space<vmem>>, vector<34x32xf32>
      %17 = arith.addf %15, %16 : vector<34x32xf32>
      %c0_16 = arith.constant 0 : index
      %c0_17 = arith.constant 0 : index
      %18 = vector.load %arg7[%c0_16, %c0_17] : memref<34x32xf32, #tpu.memory_space<vmem>>, vector<34x32xf32>
      tpu.vector_store %arg7[%c0_16, %c0_17], %17 {strides = array<i32>} : memref<34x32xf32, #tpu.memory_space<vmem>>, vector<34x32xf32>,
    } else {
    }
    return
  }
  func.func @transform_0(%arg0: i32, %arg1: i32, %arg2: i32) -> (i32, i32) {
    %c0_i32 = arith.constant 0 : i32
    return %arg0, %arg2 : i32, i32
  }
  func.func @transform_1(%arg0: i32, %arg1: i32, %arg2: i32) -> (i32, i32) {
    %c0_i32 = arith.constant 0 : i32
    return %arg2, %arg1 : i32, i32
  }
  func.func @transform_2(%arg0: i32, %arg1: i32, %arg2: i32) -> (i32, i32) {
    %c0_i32 = arith.constant 0 : i32
    %c0_i32_0 = arith.constant 0 : i32
    return %c0_i32, %arg1 : i32, i32
  }
  func.func @transform_3(%arg0: i32, %arg1: i32, %arg2: i32) -> (i32, i32) {
    %c0_i32 = arith.constant 0 : i32
    return %arg0, %arg1 : i32, i32
  }
  func.func @transform_4(%arg0: i32, %arg1: i32, %arg2: i32) -> (i32, i32) {
    %c0_i32 = arith.constant 0 : i32
    return %arg0, %arg1 : i32, i32
  }
}

module attributes {stable_mosaic.version = 11 : i64} {
  func.func @_ln_mlp_kernel(%arg0: i32, %arg1: memref<34x32xf32, #tpu.memory_space<vmem>>, %arg2: memref<1x32xf32, #tpu.memory_space<vmem>>, %arg3: memref<1x32xf32, #tpu.memory_space<vmem>>, %arg4: memref<32x64xf32, #tpu.memory_space<vmem>>, %arg5: memref<1x64xf32, #tpu.memory_space<vmem>>, %arg6: memref<64x32xf32, #tpu.memory_space<vmem>>, %arg7: memref<1x32xf32, #tpu.memory_space<vmem>>, %arg8: memref<34x32xf32, #tpu.memory_space<vmem>>) attributes {dimension_semantics = [#tpu.dimension_semantics<parallel>], iteration_bounds = array<i64: 1>, scalar_prefetch = 0 : i64, scratch_operands = 0 : i64, tpu.core_type = #tpu.core_type<tc>, window_params = [{transform_indices = @transform_0, window_bounds = array<i64: 34, 32>}, {pipeline_mode = #tpu.pipeline_mode<synchronous>, transform_indices = @transform_1, window_bounds = array<i64: 1, 32>}, {pipeline_mode = #tpu.pipeline_mode<synchronous>, transform_indices = @transform_2, window_bounds = array<i64: 1, 32>}, {pipeline_mode = #tpu.pipeline_mode<synchronous>, transform_indices = @transform_3, window_bounds = array<i64: 32, 64>}, {pipeline_mode = #tpu.pipeline_mode<synchronous>, transform_indices = @transform_4, window_bounds = array<i64: 1, 64>}, {pipeline_mode = #tpu.pipeline_mode<synchronous>, transform_indices = @transform_5, window_bounds = array<i64: 64, 32>}, {pipeline_mode = #tpu.pipeline_mode<synchronous>, transform_indices = @transform_6, window_bounds = array<i64: 1, 32>}, {transform_indices = @transform_7, window_bounds = array<i64: 34, 32>}]} {
    %c0 = arith.constant 0 : index
    %c0_0 = arith.constant 0 : index
    %0 = vector.load %arg1[%c0, %c0_0] : memref<34x32xf32, #tpu.memory_space<vmem>>, vector<34x32xf32>
    %cst = arith.constant dense<0.000000e+00> : vector<34xf32>
    %1 = vector.multi_reduction <add>, %0, %cst [1] : vector<34x32xf32> to vector<34xf32>
    %2 = vector.shape_cast %1 : vector<34xf32> to vector<34x1xf32>
    %cst_1 = arith.constant 3.200000e+01 : f32
    %3 = vector.broadcast %cst_1 : f32 to vector<34x1xf32>
    %4 = arith.divf %2, %3 : vector<34x1xf32>
    %5 = vector.broadcast %4 : vector<34x1xf32> to vector<34x32xf32>
    %6 = arith.subf %0, %5 : vector<34x32xf32>
    %7 = arith.mulf %6, %6 : vector<34x32xf32>
    %cst_2 = arith.constant dense<0.000000e+00> : vector<34xf32>
    %8 = vector.multi_reduction <add>, %7, %cst_2 [1] : vector<34x32xf32> to vector<34xf32>
    %9 = vector.shape_cast %8 : vector<34xf32> to vector<34x1xf32>
    %cst_3 = arith.constant 3.200000e+01 : f32
    %10 = vector.broadcast %cst_3 : f32 to vector<34x1xf32>
    %11 = arith.divf %9, %10 : vector<34x1xf32>
    %12 = vector.broadcast %4 : vector<34x1xf32> to vector<34x32xf32>
    %13 = arith.subf %0, %12 : vector<34x32xf32>
    %cst_4 = arith.constant 9.99999997E-7 : f32
    %14 = vector.broadcast %cst_4 : f32 to vector<34x1xf32>
    %15 = arith.addf %11, %14 : vector<34x1xf32>
    %16 = math.rsqrt %15 : vector<34x1xf32>
    %17 = vector.broadcast %16 : vector<34x1xf32> to vector<34x32xf32>
    %18 = arith.mulf %13, %17 : vector<34x32xf32>
    %c0_5 = arith.constant 0 : index
    %c0_6 = arith.constant 0 : index
    %19 = vector.load %arg2[%c0_5, %c0_6] : memref<1x32xf32, #tpu.memory_space<vmem>>, vector<1x32xf32>
    %20 = vector.broadcast %19 : vector<1x32xf32> to vector<34x32xf32>
    %21 = arith.mulf %18, %20 : vector<34x32xf32>
    %c0_7 = arith.constant 0 : index
    %c0_8 = arith.constant 0 : index
    %22 = vector.load %arg3[%c0_7, %c0_8] : memref<1x32xf32, #tpu.memory_space<vmem>>, vector<1x32xf32>
    %23 = vector.broadcast %22 : vector<1x32xf32> to vector<34x32xf32>
    %24 = arith.addf %21, %23 : vector<34x32xf32>
    %c0_9 = arith.constant 0 : index
    %c0_10 = arith.constant 0 : index
    %25 = vector.load %arg4[%c0_9, %c0_10] : memref<32x64xf32, #tpu.memory_space<vmem>>, vector<32x64xf32>
    %cst_11 = arith.constant dense<0.000000e+00> : vector<34x64xf32>
    %26 = tpu.matmul %24, %25, %cst_11 {dimension_numbers = #tpu.dot_dimension_numbers<[1], [0], [0], [1], [0, 0, 1, 1], [], []>} : vector<34x32xf32>, vector<32x64xf32>, vector<34x64xf32> -> vector<34x64xf32>
    %c0_12 = arith.constant 0 : index
    %c0_13 = arith.constant 0 : index
    %27 = vector.load %arg5[%c0_12, %c0_13] : memref<1x64xf32, #tpu.memory_space<vmem>>, vector<1x64xf32>
    %28 = vector.broadcast %27 : vector<1x64xf32> to vector<34x64xf32>
    %29 = arith.addf %26, %28 : vector<34x64xf32>
    %cst_14 = arith.constant 5.000000e-01 : f32
    %30 = vector.broadcast %cst_14 : f32 to vector<34x64xf32>
    %31 = arith.mulf %30, %29 : vector<34x64xf32>
    %cst_15 = arith.constant 2.000000e+00 : f32
    %32 = math.sqrt %cst_15 : f32
    %33 = vector.broadcast %32 : f32 to vector<34x64xf32>
    %34 = arith.divf %29, %33 : vector<34x64xf32>
    %35 = math.erf %34 : vector<34x64xf32>
    %cst_16 = arith.constant 1.000000e+00 : f32
    %36 = vector.broadcast %cst_16 : f32 to vector<34x64xf32>
    %37 = arith.addf %36, %35 : vector<34x64xf32>
    %38 = arith.mulf %31, %37 : vector<34x64xf32>
    %c0_17 = arith.constant 0 : index
    %c0_18 = arith.constant 0 : index
    %39 = vector.load %arg6[%c0_17, %c0_18] : memref<64x32xf32, #tpu.memory_space<vmem>>, vector<64x32xf32>
    %cst_19 = arith.constant dense<0.000000e+00> : vector<34x32xf32>
    %40 = tpu.matmul %38, %39, %cst_19 {dimension_numbers = #tpu.dot_dimension_numbers<[1], [0], [0], [1], [0, 0, 1, 1], [], []>} : vector<34x64xf32>, vector<64x32xf32>, vector<34x32xf32> -> vector<34x32xf32>
    %c0_20 = arith.constant 0 : index
    %c0_21 = arith.constant 0 : index
    %41 = vector.load %arg7[%c0_20, %c0_21] : memref<1x32xf32, #tpu.memory_space<vmem>>, vector<1x32xf32>
    %42 = vector.broadcast %41 : vector<1x32xf32> to vector<34x32xf32>
    %43 = arith.addf %40, %42 : vector<34x32xf32>
    %44 = arith.addf %43, %0 : vector<34x32xf32>
    %c0_22 = arith.constant 0 : index
    %c0_23 = arith.constant 0 : index
    %45 = vector.load %arg8[%c0_22, %c0_23] : memref<34x32xf32, #tpu.memory_space<vmem>>, vector<34x32xf32>
    tpu.vector_store %arg8[%c0_22, %c0_23], %44 {strides = array<i32>} : memref<34x32xf32, #tpu.memory_space<vmem>>, vector<34x32xf32>,
    return
  }
  func.func @transform_0(%arg0: i32) -> (i32, i32) {
    %c0_i32 = arith.constant 0 : i32
    %c0_i32_0 = arith.constant 0 : i32
    return %arg0, %c0_i32 : i32, i32
  }
  func.func @transform_1(%arg0: i32) -> (i32, i32) {
    %c0_i32 = arith.constant 0 : i32
    %c0_i32_0 = arith.constant 0 : i32
    %c0_i32_1 = arith.constant 0 : i32
    return %c0_i32, %c0_i32_0 : i32, i32
  }
  func.func @transform_2(%arg0: i32) -> (i32, i32) {
    %c0_i32 = arith.constant 0 : i32
    %c0_i32_0 = arith.constant 0 : i32
    %c0_i32_1 = arith.constant 0 : i32
    return %c0_i32, %c0_i32_0 : i32, i32
  }
  func.func @transform_3(%arg0: i32) -> (i32, i32) {
    %c0_i32 = arith.constant 0 : i32
    %c0_i32_0 = arith.constant 0 : i32
    %c0_i32_1 = arith.constant 0 : i32
    return %c0_i32, %c0_i32_0 : i32, i32
  }
  func.func @transform_4(%arg0: i32) -> (i32, i32) {
    %c0_i32 = arith.constant 0 : i32
    %c0_i32_0 = arith.constant 0 : i32
    %c0_i32_1 = arith.constant 0 : i32
    return %c0_i32, %c0_i32_0 : i32, i32
  }
  func.func @transform_5(%arg0: i32) -> (i32, i32) {
    %c0_i32 = arith.constant 0 : i32
    %c0_i32_0 = arith.constant 0 : i32
    %c0_i32_1 = arith.constant 0 : i32
    return %c0_i32, %c0_i32_0 : i32, i32
  }
  func.func @transform_6(%arg0: i32) -> (i32, i32) {
    %c0_i32 = arith.constant 0 : i32
    %c0_i32_0 = arith.constant 0 : i32
    %c0_i32_1 = arith.constant 0 : i32
    return %c0_i32, %c0_i32_0 : i32, i32
  }
  func.func @transform_7(%arg0: i32) -> (i32, i32) {
    %c0_i32 = arith.constant 0 : i32
    %c0_i32_0 = arith.constant 0 : i32
    return %arg0, %c0_i32 : i32, i32
  }
}

module attributes {stable_mosaic.version = 11 : i64} {
  func.func @_ln_matmul_kernel(%arg0: i32, %arg1: i32, %arg2: memref<2x32xf32, #tpu.memory_space<vmem>>, %arg3: memref<1x32xf32, #tpu.memory_space<vmem>>, %arg4: memref<1x32xf32, #tpu.memory_space<vmem>>, %arg5: memref<32x10xf32, #tpu.memory_space<vmem>>, %arg6: memref<1x10xf32, #tpu.memory_space<vmem>>, %arg7: memref<2x10xf32, #tpu.memory_space<vmem>>) attributes {dimension_semantics = [#tpu.dimension_semantics<parallel>, #tpu.dimension_semantics<parallel>], iteration_bounds = array<i64: 1, 1>, scalar_prefetch = 0 : i64, scratch_operands = 0 : i64, tpu.core_type = #tpu.core_type<tc>, window_params = [{transform_indices = @transform_0, window_bounds = array<i64: 2, 32>}, {pipeline_mode = #tpu.pipeline_mode<synchronous>, transform_indices = @transform_1, window_bounds = array<i64: 1, 32>}, {pipeline_mode = #tpu.pipeline_mode<synchronous>, transform_indices = @transform_2, window_bounds = array<i64: 1, 32>}, {transform_indices = @transform_3, window_bounds = array<i64: 32, 10>}, {transform_indices = @transform_4, window_bounds = array<i64: 1, 10>}, {transform_indices = @transform_5, window_bounds = array<i64: 2, 10>}]} {
    %c0 = arith.constant 0 : index
    %c0_0 = arith.constant 0 : index
    %0 = vector.load %arg2[%c0, %c0_0] : memref<2x32xf32, #tpu.memory_space<vmem>>, vector<2x32xf32>
    %cst = arith.constant dense<0.000000e+00> : vector<2xf32>
    %1 = vector.multi_reduction <add>, %0, %cst [1] : vector<2x32xf32> to vector<2xf32>
    %2 = vector.shape_cast %1 : vector<2xf32> to vector<2x1xf32>
    %cst_1 = arith.constant 3.200000e+01 : f32
    %3 = vector.broadcast %cst_1 : f32 to vector<2x1xf32>
    %4 = arith.divf %2, %3 : vector<2x1xf32>
    %5 = vector.broadcast %4 : vector<2x1xf32> to vector<2x32xf32>
    %6 = arith.subf %0, %5 : vector<2x32xf32>
    %7 = arith.mulf %6, %6 : vector<2x32xf32>
    %cst_2 = arith.constant dense<0.000000e+00> : vector<2xf32>
    %8 = vector.multi_reduction <add>, %7, %cst_2 [1] : vector<2x32xf32> to vector<2xf32>
    %9 = vector.shape_cast %8 : vector<2xf32> to vector<2x1xf32>
    %cst_3 = arith.constant 3.200000e+01 : f32
    %10 = vector.broadcast %cst_3 : f32 to vector<2x1xf32>
    %11 = arith.divf %9, %10 : vector<2x1xf32>
    %12 = vector.broadcast %4 : vector<2x1xf32> to vector<2x32xf32>
    %13 = arith.subf %0, %12 : vector<2x32xf32>
    %cst_4 = arith.constant 9.99999997E-7 : f32
    %14 = vector.broadcast %cst_4 : f32 to vector<2x1xf32>
    %15 = arith.addf %11, %14 : vector<2x1xf32>
    %16 = math.rsqrt %15 : vector<2x1xf32>
    %17 = vector.broadcast %16 : vector<2x1xf32> to vector<2x32xf32>
    %18 = arith.mulf %13, %17 : vector<2x32xf32>
    %c0_5 = arith.constant 0 : index
    %c0_6 = arith.constant 0 : index
    %19 = vector.load %arg3[%c0_5, %c0_6] : memref<1x32xf32, #tpu.memory_space<vmem>>, vector<1x32xf32>
    %20 = vector.broadcast %19 : vector<1x32xf32> to vector<2x32xf32>
    %21 = arith.mulf %18, %20 : vector<2x32xf32>
    %c0_7 = arith.constant 0 : index
    %c0_8 = arith.constant 0 : index
    %22 = vector.load %arg4[%c0_7, %c0_8] : memref<1x32xf32, #tpu.memory_space<vmem>>, vector<1x32xf32>
    %23 = vector.broadcast %22 : vector<1x32xf32> to vector<2x32xf32>
    %24 = arith.addf %21, %23 : vector<2x32xf32>
    %c0_9 = arith.constant 0 : index
    %c0_10 = arith.constant 0 : index
    %25 = vector.load %arg5[%c0_9, %c0_10] : memref<32x10xf32, #tpu.memory_space<vmem>>, vector<32x10xf32>
    %cst_11 = arith.constant dense<0.000000e+00> : vector<2x10xf32>
    %26 = tpu.matmul %24, %25, %cst_11 {dimension_numbers = #tpu.dot_dimension_numbers<[1], [0], [0], [1], [0, 0, 1, 1], [], []>} : vector<2x32xf32>, vector<32x10xf32>, vector<2x10xf32> -> vector<2x10xf32>
    %c0_12 = arith.constant 0 : index
    %c0_13 = arith.constant 0 : index
    %27 = vector.load %arg6[%c0_12, %c0_13] : memref<1x10xf32, #tpu.memory_space<vmem>>, vector<1x10xf32>
    %28 = vector.broadcast %27 : vector<1x10xf32> to vector<2x10xf32>
    %29 = arith.addf %26, %28 : vector<2x10xf32>
    %c0_14 = arith.constant 0 : index
    %c0_15 = arith.constant 0 : index
    %30 = vector.load %arg7[%c0_14, %c0_15] : memref<2x10xf32, #tpu.memory_space<vmem>>, vector<2x10xf32>
    tpu.vector_store %arg7[%c0_14, %c0_15], %29 {strides = array<i32>} : memref<2x10xf32, #tpu.memory_space<vmem>>, vector<2x10xf32>,
    return
  }
  func.func @transform_0(%arg0: i32, %arg1: i32) -> (i32, i32) {
    %c0_i32 = arith.constant 0 : i32
    %c0_i32_0 = arith.constant 0 : i32
    return %arg0, %c0_i32 : i32, i32
  }
  func.func @transform_1(%arg0: i32, %arg1: i32) -> (i32, i32) {
    %c0_i32 = arith.constant 0 : i32
    %c0_i32_0 = arith.constant 0 : i32
    %c0_i32_1 = arith.constant 0 : i32
    return %c0_i32, %c0_i32_0 : i32, i32
  }
  func.func @transform_2(%arg0: i32, %arg1: i32) -> (i32, i32) {
    %c0_i32 = arith.constant 0 : i32
    %c0_i32_0 = arith.constant 0 : i32
    %c0_i32_1 = arith.constant 0 : i32
    return %c0_i32, %c0_i32_0 : i32, i32
  }
  func.func @transform_3(%arg0: i32, %arg1: i32) -> (i32, i32) {
    %c0_i32 = arith.constant 0 : i32
    %c0_i32_0 = arith.constant 0 : i32
    return %c0_i32, %arg1 : i32, i32
  }
  func.func @transform_4(%arg0: i32, %arg1: i32) -> (i32, i32) {
    %c0_i32 = arith.constant 0 : i32
    %c0_i32_0 = arith.constant 0 : i32
    return %c0_i32, %arg1 : i32, i32
  }
  func.func @transform_5(%arg0: i32, %arg1: i32) -> (i32, i32) {
    %c0_i32 = arith.constant 0 : i32
    return %arg0, %arg1 : i32, i32
  }
}

</mosaic_0001>

<llo_original>
// kernel: custom-call
$region0: #{custom-call}
  %s0 = inlined_call_operand.vmem [shape: f32[2,2,4,17,17], index: 0, kind: output, shape index: {}]

// kernel: closed_call.17
$region0: #{closed_call.17}
  #allocation0 [shape = 'u32[]', space=smem, size = 0x4, offset = 0x4, fixed_abs, tag = 'smem constant byte address 0x4 - core index']
  #allocation1 [shape = 'u32[144,128]{1,0:T(1,128)}', space=vmem, size = 0x12000, scoped, tag = 'internal scratch']
  %s0 = inlined_call_operand.vmem [shape: f32[34,32], index: 0, kind: input, shape index: {}]
  %s1 = inlined_call_operand.vmem [shape: f32[1,32], index: 1, kind: input, shape index: {}]
  %s2 = inlined_call_operand.vmem [shape: f32[1,32], index: 2, kind: input, shape index: {}]
  %s3 = inlined_call_operand.vmem [shape: f32[32,96], index: 3, kind: input, shape index: {}]
  %s4 = inlined_call_operand.vmem [shape: f32[1,96], index: 4, kind: input, shape index: {}]
  %s5 = inlined_call_operand.vmem [shape: f32[34,96], index: 5, kind: output, shape index: {}]
  %s6 = sld [smem:[#allocation0]]
  $region30: #{closed_call.17} parent=0
    _
  %s8 = ssub.s32 1, %s6
  %s9 = scalar_select 0, %s8, %s6
  // Predicated region
  $region2: #{closed_call.17} parent=0 // pred_check
    _
  $region3: #{closed_call.17} parent=0 // pred_check_branch
    %11 = sbr.rel (0) target = $region5
  $region4: #{closed_call.17} parent=0 // pred_region
    _
  $region5: #{closed_call.17} parent=0 // pred_fallthru
    _
  // Predicated region
  $region6: #{closed_call.17} parent=0 // pred_check
    _
  $region7: #{closed_call.17} parent=0 // pred_check_branch
    %13 = sbr.rel (0) target = $region9
  $region8: #{closed_call.17} parent=0 // pred_region
    _
  $region9: #{closed_call.17} parent=0 // pred_fallthru
    _
  // Predicated region
  $region10: #{closed_call.17} parent=0 // pred_check
    _
  $region11: #{closed_call.17} parent=0 // pred_check_branch
    %15 = sbr.rel (0) target = $region13
  $region12: #{closed_call.17} parent=0 // pred_region
    _
  $region13: #{closed_call.17} parent=0 // pred_fallthru
    _
  // Predicated region
  $region14: #{closed_call.17} parent=0 // pred_check
    _
  $region15: #{closed_call.17} parent=0 // pred_check_branch
    %17 = sbr.rel (0) target = $region17
  $region16: #{closed_call.17} parent=0 // pred_region
    _
  $region17: #{closed_call.17} parent=0 // pred_fallthru
    _
  // Predicated region
  $region18: #{closed_call.17} parent=0 // pred_check
    _
  $region19: #{closed_call.17} parent=0 // pred_check_branch
    %19 = sbr.rel (0) target = $region21
  $region20: #{closed_call.17} parent=0 // pred_region
    _
  $region21: #{closed_call.17} parent=0 // pred_fallthru
    _
  %v20 = vld [vmem:[%s0] sm:$0xff]
  %v21 = vld [vmem:[%s0 + $0x8] sm:$0xff]
  %v22 = vld [vmem:[%s0 + $0x10] sm:$0xff]
  %v23 = vld [vmem:[%s0 + $0x18] sm:$0xff]
  %v24 = vld [vmem:[%s0 + $0x20] sm:$0x3]
  %vm25 = vcmask 261120
  %v26 = vsel %vm25, %v20, 0.0
  %27 = vadd.xlane.f32.xlu0 %v26
  %v28 = vpop.xlane.xlu0 %27
  %v29 = vsel %vm25, %v21, 0.0
  %30 = vadd.xlane.f32.xlu0 %v29
  %v31 = vpop.xlane.xlu0 %30
  %v32 = vsel %vm25, %v22, 0.0
  %33 = vadd.xlane.f32.xlu0 %v32
  %v34 = vpop.xlane.xlu0 %33
  %v35 = vsel %vm25, %v23, 0.0
  %36 = vadd.xlane.f32.xlu0 %v35
  %v37 = vpop.xlane.xlu0 %36
  %vm38 = vcmask 254976
  %v39 = vsel %vm38, %v24, 0.0
  %40 = vadd.xlane.f32.xlu0 %v39
  %v41 = vpop.xlane.xlu0 %40
  %v42 = vrcp.pop 32.0
  %v43 = vmul.f32 %v28, %v42
  %v44 = vmul.f32 %v31, %v42
  %v45 = vmul.f32 %v34, %v42
  %v46 = vmul.f32 %v37, %v42
  %v47 = vmul.f32 %v41, %v42
  %v48 = vsub.f32 %v20, %v43
  %v49 = vsub.f32 %v21, %v44
  %v50 = vsub.f32 %v22, %v45
  %v51 = vsub.f32 %v23, %v46
  %v52 = vsub.f32 %v24, %v47
  %v53 = vmul.f32 %v48, %v48
  %v54 = vmul.f32 %v49, %v49
  %v55 = vmul.f32 %v50, %v50
  %v56 = vmul.f32 %v51, %v51
  %v57 = vmul.f32 %v52, %v52
  %v58 = vsel %vm25, %v53, 0.0
  %59 = vadd.xlane.f32.xlu0 %v58
  %v60 = vpop.xlane.xlu0 %59
  %v61 = vsel %vm25, %v54, 0.0
  %62 = vadd.xlane.f32.xlu0 %v61
  %v63 = vpop.xlane.xlu0 %62
  %v64 = vsel %vm25, %v55, 0.0
  %65 = vadd.xlane.f32.xlu0 %v64
  %v66 = vpop.xlane.xlu0 %65
  %v67 = vsel %vm25, %v56, 0.0
  %68 = vadd.xlane.f32.xlu0 %v67
  %v69 = vpop.xlane.xlu0 %68
  %v70 = vsel %vm38, %v57, 0.0
  %71 = vadd.xlane.f32.xlu0 %v70
  %v72 = vpop.xlane.xlu0 %71
  %v73 = vmul.f32 %v60, %v42
  %v74 = vmul.f32 %v63, %v42
  %v75 = vmul.f32 %v66, %v42
  %v76 = vmul.f32 %v69, %v42
  %v77 = vmul.f32 %v72, %v42
  %v78 = vadd.f32 %v73, 1e-06
  %v79 = vadd.f32 %v74, 1e-06
  %v80 = vadd.f32 %v75, 1e-06
  %v81 = vadd.f32 %v76, 1e-06
  %v82 = vadd.f32 %v77, 1e-06
  %v83 = vrsqrt.pop %v78
  %v84 = vrsqrt.pop %v79
  %v85 = vrsqrt.pop %v80
  %v86 = vrsqrt.pop %v81
  %v87 = vrsqrt.pop %v82
  %v88 = vmul.f32 %v48, %v83
  %v89 = vmul.f32 %v49, %v84
  %v90 = vmul.f32 %v50, %v85
  %v91 = vmul.f32 %v51, %v86
  %v92 = vmul.f32 %v52, %v87
  %v93 = vld [vmem:[%s1] sm:$0x1]
  %v95 = vlaneseq
  %v96 = vshrl.u32 %v95, 7
  %v97 = vsub.s32 0, %v96
  %v98 = vrot.slane %v93, %v97
  %v100 = vmul.f32 %v88, %v98
  %v101 = vmul.f32 %v89, %v98
  %v102 = vmul.f32 %v90, %v98
  %v103 = vmul.f32 %v91, %v98
  %v104 = vmul.f32 %v92, %v98
  %v105 = vld [vmem:[%s2] sm:$0x1]
  %v107 = vlaneseq
  %v108 = vshrl.u32 %v107, 7
  %v109 = vsub.s32 0, %v108
  %v110 = vrot.slane %v105, %v109
  %v112 = vadd.f32 %v100, %v110
  %v113 = vadd.f32 %v101, %v110
  %v114 = vadd.f32 %v102, %v110
  %v115 = vadd.f32 %v103, %v110
  %v116 = vadd.f32 %v104, %v110
  %v117 = vld [vmem:[%s3] sm:$0xff]
  %v118 = vld [vmem:[%s3 + $0x8] sm:$0xff]
  %v119 = vld [vmem:[%s3 + $0x10] sm:$0xff]
  %v120 = vld [vmem:[%s3 + $0x18] sm:$0xff]
  %v121 = vld [vmem:[%s4] sm:$0x1]
  %v123 = vlaneseq
  %v124 = vshrl.u32 %v123, 7
  %v125 = vsub.s32 0, %v124
  %v126 = vrot.slane %v121, %v125
  %v129 = vsel %vm25, %v112, 0
  %v132 = vsel %vm25, %v113, 0
  %v135 = vsel %vm25, %v114, 0
  %v138 = vsel %vm25, %v115, 0
  %v141 = vsel %vm25, %v116, 0
  %143 = vmatprep.subr.mxu0 0.0
  %144 = vmatpush1.msra.mxu0 %v117
  %145 = vmatprep.subr.mxu0 0.0
  %146 = vmatpush1.msra.mxu0 %v118
  %147 = vmatprep.subr.mxu0 0.0
  %148 = vmatpush1.msra.mxu0 %v119
  %149 = vmatprep.subr.mxu0 0.0
  %150 = vmatpush1.msra.mxu0 %v120
  %151 = vmatprep.subr.mxu0 0.0
  %152 = vmatpush1.msra.mxu0 0.0
  %153 = vmatprep.subr.mxu0 0.0
  %154 = vmatpush1.msra.mxu0 0.0
  %155 = vmatprep.subr.mxu0 0.0
  %156 = vmatpush1.msra.mxu0 0.0
  %157 = vmatprep.subr.mxu0 0.0
  %158 = vmatpush1.msra.mxu0 0.0
  %159 = vmatprep.subr.mxu0 0.0
  %160 = vmatpush1.msra.mxu0 0.0
  %161 = vmatprep.subr.mxu0 0.0
  %162 = vmatpush1.msra.mxu0 0.0
  %163 = vmatprep.subr.mxu0 0.0
  %164 = vmatpush1.msra.mxu0 0.0
  %165 = vmatprep.subr.mxu0 0.0
  %166 = vmatpush1.msra.mxu0 0.0
  %167 = vmatprep.subr.mxu0 0.0
  %168 = vmatpush1.msra.mxu0 0.0
  %169 = vmatprep.subr.mxu0 0.0
  %170 = vmatpush1.msra.mxu0 0.0
  %171 = vmatprep.subr.mxu0 0.0
  %172 = vmatpush1.msra.mxu0 0.0
  %173 = vmatprep.subr.mxu0 0.0
  %174 = vmatpush1.msra.mxu0 0.0
  %175 = vmatprep.subr.mxu0 0.0
  %176 = vmatpush1.msra.mxu0 0.0
  %177 = vmatprep.subr.mxu0 0.0
  %178 = vmatpush1.msra.mxu0 0.0
  %179 = vmatprep.subr.mxu0 0.0
  %180 = vmatpush1.msra.mxu0 0.0
  %181 = vmatprep.subr.mxu0 0.0
  %182 = vmatpush1.msra.mxu0 0.0
  %183 = vmatprep.subr.mxu0 0.0
  %184 = vmatpush1.msra.mxu0 0.0
  %185 = vmatprep.subr.mxu0 0.0
  %186 = vmatpush1.msra.mxu0 0.0
  %187 = vmatprep.subr.mxu0 0.0
  %188 = vmatpush1.msra.mxu0 0.0
  %189 = vmatprep.subr.mxu0 0.0
  %190 = vmatpush1.msra.mxu0 0.0
  %191 = vmatprep.subr.mxu0 0.0
  %192 = vmatpush1.msra.mxu0 0.0
  %193 = vmatprep.subr.mxu0 0.0
  %194 = vmatpush1.msra.mxu0 0.0
  %195 = vmatprep.subr.mxu0 0.0
  %196 = vmatpush1.msra.mxu0 0.0
  %197 = vmatprep.subr.mxu0 0.0
  %198 = vmatpush1.msra.mxu0 0.0
  %199 = vmatprep.subr.mxu0 0.0
  %200 = vmatpush1.msra.mxu0 0.0
  %201 = vmatprep.subr.mxu0 0.0
  %202 = vmatpush1.msra.mxu0 0.0
  %203 = vmatprep.subr.mxu0 0.0
  %204 = vmatpush1.msra.mxu0 0.0
  %205 = vmatprep.subr.mxu0 0.0
  %206 = vmatpush1.msra.mxu0 0.0
  %207 = vmatprep.mubr.f32.mxu0 0.0
  %208 = vmatmul.mubr.f32.gmra.mrb[0].mxu0 %v129
  %v209 = vpop.f32.mrb[0].mxu0
  %v210 = vadd.f32 %v126, %v209
  %v211 = vpop.f32.mrb[0].mxu0
  %212 = vmatprep.mubr.f32.mxu0 0.0
  %213 = vmatmul.mubr.f32.gmra.mrb[0].mxu0 %v132
  %v214 = vpop.f32.mrb[0].mxu0
  %v215 = vadd.f32 %v126, %v214
  %v216 = vpop.f32.mrb[0].mxu0
  %217 = vmatprep.mubr.f32.mxu0 0.0
  %218 = vmatmul.mubr.f32.gmra.mrb[0].mxu0 %v135
  %v219 = vpop.f32.mrb[0].mxu0
  %v220 = vadd.f32 %v126, %v219
  %v221 = vpop.f32.mrb[0].mxu0
  %222 = vmatprep.mubr.f32.mxu0 0.0
  %223 = vmatmul.mubr.f32.gmra.mrb[0].mxu0 %v138
  %v224 = vpop.f32.mrb[0].mxu0
  %v225 = vadd.f32 %v126, %v224
  %v226 = vpop.f32.mrb[0].mxu0
  %227 = vmatprep.mubr.f32.mxu0 0.0
  %228 = vmatmul.mubr.f32.gmra.mrb[0].mxu0 %v141
  %v229 = vpop.f32.mrb[0].mxu0
  %v230 = vadd.f32 %v126, %v229
  %v231 = vpop.f32.mrb[0].mxu0
  %232 = vdwg.mxu0
  %vm233 = vcmask 785408
  %234 = vst.msk [vmem:[%s5] sm:$0xff] %vm233, %v210
  %235 = vst.msk [vmem:[%s5 + $0x8] sm:$0xff] %vm233, %v215
  %236 = vst.msk [vmem:[%s5 + $0x10] sm:$0xff] %vm233, %v220
  %237 = vst.msk [vmem:[%s5 + $0x18] sm:$0xff] %vm233, %v225
  %vm238 = vcmask 779264
  %239 = vst.msk [vmem:[%s5 + $0x20] sm:$0x3] %vm238, %v230
  // Predicated region
  $region22: #{closed_call.17} parent=0 // pred_check
    _
  $region23: #{closed_call.17} parent=0 // pred_check_branch
    %241 = sbr.rel (0) target = $region25
  $region24: #{closed_call.17} parent=0 // pred_region
    _
  $region25: #{closed_call.17} parent=0 // pred_fallthru
    _
  // Predicated region
  $region26: #{closed_call.17} parent=0 // pred_check
    _
  $region27: #{closed_call.17} parent=0 // pred_check_branch
    %243 = sbr.rel (0) target = $region29
  $region28: #{closed_call.17} parent=0 // pred_region
    _
  $region29: #{closed_call.17} parent=0 // pred_fallthru
    _

// kernel: _lambda_.2
$region0: #{_lambda_.2}
  #allocation0 [shape = 'u32[]', space=smem, size = 0x4, offset = 0x4, fixed_abs, tag = 'smem constant byte address 0x4 - core index']
  #allocation1 [shape = 'u32[144,128]{1,0:T(1,128)}', space=vmem, size = 0x12000, scoped, tag = 'internal scratch']
  #allocation2 [shape = 'f32[32,32]{1,0:T(8,128)}', space=vmem, size = 0x4000, scoped, tag = 'scratch operand']
  %s0 = inlined_call_operand.vmem [shape: f32[32,48], index: 0, kind: input, shape index: {}]
  %s1 = inlined_call_operand.vmem [shape: f32[48,32], index: 1, kind: input, shape index: {}]
  %s2 = inlined_call_operand.vmem [shape: f32[1,32], index: 2, kind: input, shape index: {}]
  %s3 = inlined_call_operand.vmem [shape: f32[32,32], index: 3, kind: output, shape index: {}]
  %s4 = sld [smem:[#allocation0]]
  $region30: #{_lambda_.2} parent=0
    _
  %s6 = ssub.s32 1, %s4
  %s7 = scalar_select 0, %s6, %s4
  // Predicated region
  $region2: #{_lambda_.2} parent=0 // pred_check
    _
  $region3: #{_lambda_.2} parent=0 // pred_check_branch
    %9 = sbr.rel (0) target = $region5
  $region4: #{_lambda_.2} parent=0 // pred_region
    _
  $region5: #{_lambda_.2} parent=0 // pred_fallthru
    _
  // Predicated region
  $region6: #{_lambda_.2} parent=0 // pred_check
    _
  $region7: #{_lambda_.2} parent=0 // pred_check_branch
    %11 = sbr.rel (0) target = $region9
  $region8: #{_lambda_.2} parent=0 // pred_region
    _
  $region9: #{_lambda_.2} parent=0 // pred_fallthru
    _
  // Predicated region
  $region10: #{_lambda_.2} parent=0 // pred_check
    _
  $region11: #{_lambda_.2} parent=0 // pred_check_branch
    %13 = sbr.rel (0) target = $region13
  $region12: #{_lambda_.2} parent=0 // pred_region
    _
  $region13: #{_lambda_.2} parent=0 // pred_fallthru
    _
  %p14 = scmp.eq.s32.totalorder 0, 0
  // Predicated region
  $region14: #{_lambda_.2} parent=0 // pred_check
    %p15 = pneg %p14
  $region15: #{_lambda_.2} parent=0 // pred_check_branch
    %17 = sbr.rel (%p15) target = $region17
  $region16: #{_lambda_.2} parent=0 // pred_region
    %vm18 = vcmask 261120
    %19 = vst.msk [vmem:[#allocation2] sm:$0xff] %vm18, 0.0
    %20 = vst.msk [vmem:[#allocation2 + $0x8] sm:$0xff] %vm18, 0.0
    %21 = vst.msk [vmem:[#allocation2 + $0x10] sm:$0xff] %vm18, 0.0
    %22 = vst.msk [vmem:[#allocation2 + $0x18] sm:$0xff] %vm18, 0.0
  $region17: #{_lambda_.2} parent=0 // pred_fallthru
    _
  %v23 = vld [vmem:[#allocation2] sm:$0xff]
  %v24 = vld [vmem:[#allocation2 + $0x8] sm:$0xff]
  %v25 = vld [vmem:[#allocation2 + $0x10] sm:$0xff]
  %v26 = vld [vmem:[#allocation2 + $0x18] sm:$0xff]
  %v27 = vld [vmem:[%s0] sm:$0xff]
  %v28 = vld [vmem:[%s0 + $0x8] sm:$0xff]
  %v29 = vld [vmem:[%s0 + $0x10] sm:$0xff]
  %v30 = vld [vmem:[%s0 + $0x18] sm:$0xff]
  %v31 = vld [vmem:[%s1] sm:$0xff]
  %v32 = vld [vmem:[%s1 + $0x8] sm:$0xff]
  %v33 = vld [vmem:[%s1 + $0x10] sm:$0xff]
  %v34 = vld [vmem:[%s1 + $0x18] sm:$0xff]
  %v35 = vld [vmem:[%s1 + $0x20] sm:$0xff]
  %v36 = vld [vmem:[%s1 + $0x28] sm:$0xff]
  %vm37 = vcmask 392192
  %v39 = vsel %vm37, %v27, 0
  %v42 = vsel %vm37, %v28, 0
  %v45 = vsel %vm37, %v29, 0
  %v48 = vsel %vm37, %v30, 0
  %50 = vmatprep.subr.mxu0 0.0
  %51 = vmatpush1.msra.mxu0 %v31
  %52 = vmatprep.subr.mxu0 0.0
  %53 = vmatpush1.msra.mxu0 %v32
  %54 = vmatprep.subr.mxu0 0.0
  %55 = vmatpush1.msra.mxu0 %v33
  %56 = vmatprep.subr.mxu0 0.0
  %57 = vmatpush1.msra.mxu0 %v34
  %58 = vmatprep.subr.mxu0 0.0
  %59 = vmatpush1.msra.mxu0 %v35
  %60 = vmatprep.subr.mxu0 0.0
  %61 = vmatpush1.msra.mxu0 %v36
  %62 = vmatprep.subr.mxu0 0.0
  %63 = vmatpush1.msra.mxu0 0.0
  %64 = vmatprep.subr.mxu0 0.0
  %65 = vmatpush1.msra.mxu0 0.0
  %66 = vmatprep.subr.mxu0 0.0
  %67 = vmatpush1.msra.mxu0 0.0
  %68 = vmatprep.subr.mxu0 0.0
  %69 = vmatpush1.msra.mxu0 0.0
  %70 = vmatprep.subr.mxu0 0.0
  %71 = vmatpush1.msra.mxu0 0.0
  %72 = vmatprep.subr.mxu0 0.0
  %73 = vmatpush1.msra.mxu0 0.0
  %74 = vmatprep.subr.mxu0 0.0
  %75 = vmatpush1.msra.mxu0 0.0
  %76 = vmatprep.subr.mxu0 0.0
  %77 = vmatpush1.msra.mxu0 0.0
  %78 = vmatprep.subr.mxu0 0.0
  %79 = vmatpush1.msra.mxu0 0.0
  %80 = vmatprep.subr.mxu0 0.0
  %81 = vmatpush1.msra.mxu0 0.0
  %82 = vmatprep.subr.mxu0 0.0
  %83 = vmatpush1.msra.mxu0 0.0
  %84 = vmatprep.subr.mxu0 0.0
  %85 = vmatpush1.msra.mxu0 0.0
  %86 = vmatprep.subr.mxu0 0.0
  %87 = vmatpush1.msra.mxu0 0.0
  %88 = vmatprep.subr.mxu0 0.0
  %89 = vmatpush1.msra.mxu0 0.0
  %90 = vmatprep.subr.mxu0 0.0
  %91 = vmatpush1.msra.mxu0 0.0
  %92 = vmatprep.subr.mxu0 0.0
  %93 = vmatpush1.msra.mxu0 0.0
  %94 = vmatprep.subr.mxu0 0.0
  %95 = vmatpush1.msra.mxu0 0.0
  %96 = vmatprep.subr.mxu0 0.0
  %97 = vmatpush1.msra.mxu0 0.0
  %98 = vmatprep.subr.mxu0 0.0
  %99 = vmatpush1.msra.mxu0 0.0
  %100 = vmatprep.subr.mxu0 0.0
  %101 = vmatpush1.msra.mxu0 0.0
  %102 = vmatprep.subr.mxu0 0.0
  %103 = vmatpush1.msra.mxu0 0.0
  %104 = vmatprep.subr.mxu0 0.0
  %105 = vmatpush1.msra.mxu0 0.0
  %106 = vmatprep.subr.mxu0 0.0
  %107 = vmatpush1.msra.mxu0 0.0
  %108 = vmatprep.subr.mxu0 0.0
  %109 = vmatpush1.msra.mxu0 0.0
  %110 = vmatprep.subr.mxu0 0.0
  %111 = vmatpush1.msra.mxu0 0.0
  %112 = vmatprep.subr.mxu0 0.0
  %113 = vmatpush1.msra.mxu0 0.0
  %114 = vmatprep.mubr.f32.mxu0 0.0
  %115 = vmatmul.mubr.f32.gmra.mrb[0].mxu0 %v39
  %v116 = vpop.f32.mrb[0].mxu0
  %v117 = vadd.f32 0.0, %v116
  %v118 = vpop.f32.mrb[0].mxu0
  %119 = vmatprep.mubr.f32.mxu0 0.0
  %120 = vmatmul.mubr.f32.gmra.mrb[0].mxu0 %v42
  %v121 = vpop.f32.mrb[0].mxu0
  %v122 = vadd.f32 0.0, %v121
  %v123 = vpop.f32.mrb[0].mxu0
  %124 = vmatprep.mubr.f32.mxu0 0.0
  %125 = vmatmul.mubr.f32.gmra.mrb[0].mxu0 %v45
  %v126 = vpop.f32.mrb[0].mxu0
  %v127 = vadd.f32 0.0, %v126
  %v128 = vpop.f32.mrb[0].mxu0
  %129 = vmatprep.mubr.f32.mxu0 0.0
  %130 = vmatmul.mubr.f32.gmra.mrb[0].mxu0 %v48
  %v131 = vpop.f32.mrb[0].mxu0
  %v132 = vadd.f32 0.0, %v131
  %v133 = vpop.f32.mrb[0].mxu0
  %134 = vdwg.mxu0
  %v135 = vadd.f32 %v23, %v117
  %v136 = vadd.f32 %v24, %v122
  %v137 = vadd.f32 %v25, %v127
  %v138 = vadd.f32 %v26, %v132
  %vm139 = vcmask 261120
  %140 = vst.msk [vmem:[#allocation2] sm:$0xff] %vm139, %v135
  %141 = vst.msk [vmem:[#allocation2 + $0x8] sm:$0xff] %vm139, %v136
  %142 = vst.msk [vmem:[#allocation2 + $0x10] sm:$0xff] %vm139, %v137
  %143 = vst.msk [vmem:[#allocation2 + $0x18] sm:$0xff] %vm139, %v138
  // Predicated region
  $region18: #{_lambda_.2} parent=0 // pred_check
    %p144 = pneg %p14
  $region19: #{_lambda_.2} parent=0 // pred_check_branch
    %146 = sbr.rel (%p144) target = $region21
  $region20: #{_lambda_.2} parent=0 // pred_region
    %v147 = vld [vmem:[#allocation2] sm:$0xff]
    %v148 = vld [vmem:[#allocation2 + $0x8] sm:$0xff]
    %v149 = vld [vmem:[#allocation2 + $0x10] sm:$0xff]
    %v150 = vld [vmem:[#allocation2 + $0x18] sm:$0xff]
    %v151 = vld [vmem:[%s2] sm:$0x1]
    %v153 = vlaneseq
    %v154 = vshrl.u32 %v153, 7
    %v155 = vsub.s32 0, %v154
    %v156 = vrot.slane %v151, %v155
    %v158 = vadd.f32 %v147, %v156
    %v159 = vadd.f32 %v148, %v156
    %v160 = vadd.f32 %v149, %v156
    %v161 = vadd.f32 %v150, %v156
    %162 = vst.msk [vmem:[%s3] sm:$0xff] %vm139, %v158
    %163 = vst.msk [vmem:[%s3 + $0x8] sm:$0xff] %vm139, %v159
    %164 = vst.msk [vmem:[%s3 + $0x10] sm:$0xff] %vm139, %v160
    %165 = vst.msk [vmem:[%s3 + $0x18] sm:$0xff] %vm139, %v161
  $region21: #{_lambda_.2} parent=0 // pred_fallthru
    _
  // Predicated region
  $region22: #{_lambda_.2} parent=0 // pred_check
    _
  $region23: #{_lambda_.2} parent=0 // pred_check_branch
    %167 = sbr.rel (0) target = $region25
  $region24: #{_lambda_.2} parent=0 // pred_region
    _
  $region25: #{_lambda_.2} parent=0 // pred_fallthru
    _
  // Predicated region
  $region26: #{_lambda_.2} parent=0 // pred_check
    _
  $region27: #{_lambda_.2} parent=0 // pred_check_branch
    %169 = sbr.rel (0) target = $region29
  $region28: #{_lambda_.2} parent=0 // pred_region
    _
  $region29: #{_lambda_.2} parent=0 // pred_fallthru
    _

// kernel: closed_call.18
$region0: #{closed_call.18}
  #allocation0 [shape = 'u32[]', space=smem, size = 0x4, offset = 0x4, fixed_abs, tag = 'smem constant byte address 0x4 - core index']
  #allocation1 [shape = 'u32[144,128]{1,0:T(1,128)}', space=vmem, size = 0x12000, scoped, tag = 'internal scratch']
  %s0 = inlined_call_operand.vmem [shape: f32[2,4,17,8], index: 0, kind: input, shape index: {}]
  %s1 = inlined_call_operand.vmem [shape: f32[2,4,17,8], index: 1, kind: input, shape index: {}]
  %s2 = inlined_call_operand.vmem [shape: f32[2,4,17,8], index: 2, kind: input, shape index: {}]
  %s3 = inlined_call_operand.vmem [shape: f32[2,4,17,8], index: 3, kind: output, shape index: {0}]
  %s4 = inlined_call_operand.vmem [shape: f32[2,4,17,17], index: 4, kind: output, shape index: {1}]
  %5 = xla_tuple %s3, %s4
  %s6 = sld [smem:[#allocation0]]
  $region53: #{closed_call.18} parent=0
    _
  %s8 = ssub.s32 1, %s6
  %s9 = scalar_select 0, %s8, %s6
  loop: start=0, step=1, limit=4
  $region2: #{closed_call.18} parent=0 // loop_pre_header
    _
  $region3: #{closed_call.18} parent=0 // loop_header
    %s11 = sphi 0, %s15
    %p12 = scmp.ge.s32.totalorder %s11, 4
    %s18 = sphi 0, %s30
    %s19 = sphi 0, %s26
    %s20 = sphi 0, %s18
    %s21 = sphi 0, %s19
    %s22 = sphi 0, %s20
    %s23 = sphi 0, %s21
    %s35 = sphi 0, %s37
    %s38 = sphi 0, %s35
    %s39 = sphi 0, %s38
    %s55 = sphi 0, %s39
    %s63 = sphi 0, %s65
    %s66 = sphi 0, %s63
    %s67 = sphi 0, %s66
    %s83 = sphi 0, %s67
    %s91 = sphi 0, %s93
    %s94 = sphi 0, %s91
    %s95 = sphi 0, %s94
    %s111 = sphi 0, %s95
    %s119 = sphi 0, %s121
    %s122 = sphi 0, %s119
    %s123 = sphi 0, %s122
    %s139 = sphi 0, %s123
    %s147 = sphi 0, %s149
    %s150 = sphi 0, %s147
    %s151 = sphi 0, %s150
    %s167 = sphi 0, %s151
  $region4: #{closed_call.18} parent=0 // loop_header_branch
    %14 = sbr.rel (%p12) target = $region8
  $region5: #{closed_call.18} parent=0 // loop_body
    %s16 = ssub.s32 %s11, 1
    %s17 = ssub.s32 %s11, 2
    %s24 = sadd.s32 1, %s19
    %p25 = scmp.ge.s32.totalorder %s24, 1
    %s26 = scalar_select %p25, 0, %s24
    %s27 = sadd.s32 1, %s18
    %s28 = scalar_select %p25, %s27, %s18
    %p29 = scmp.ge.s32.totalorder %s28, 2
    %s30 = scalar_select %p29, 0, %s28
    %s31 = ssub.s32 %s18, %s30
    %s32 = ssub.s32 %s19, %s26
    %s33 = sor.u32 %s31, %s32
    %p34 = scmp.eq.s32.totalorder %s33, 0
    %s36 = sadd.s32 %s35, 1
    %s37 = scalar_select %p34, %s35, %s36
    %p40 = pneg %p34
    %p41 = scmp.eq.s32.totalorder %s11, 1
    %p42 = por %p40, %p41
    %p43 = scmp.ne.s32.totalorder %s35, %s38
    %p44 = scmp.eq.s32.totalorder %s11, 0
    %p45 = por %p43, %p44
    %p46 = scmp.ne.s32.totalorder %s35, %s38
    %p47 = scmp.eq.s32.totalorder %s16, 1
    %p48 = por %p46, %p47
    %p49 = scmp.ne.s32.totalorder %s38, %s39
    %p50 = scmp.eq.s32.totalorder %s16, 0
    %p51 = por %p49, %p50
    %p52 = scmp.ne.s32.totalorder %s38, %s39
    %p53 = scmp.eq.s32.totalorder %s17, 1
    %p54 = por %p52, %p53
    %p56 = scmp.ne.s32.totalorder %s39, %s55
    %p57 = scmp.eq.s32.totalorder %s17, 0
    %p58 = por %p56, %p57
    %s59 = ssub.s32 %s18, %s30
    %s60 = ssub.s32 %s19, %s26
    %s61 = sor.u32 %s59, %s60
    %p62 = scmp.eq.s32.totalorder %s61, 0
    %s64 = sadd.s32 %s63, 1
    %s65 = scalar_select %p62, %s63, %s64
    %p68 = pneg %p62
    %p69 = scmp.eq.s32.totalorder %s11, 1
    %p70 = por %p68, %p69
    %p71 = scmp.ne.s32.totalorder %s63, %s66
    %p72 = scmp.eq.s32.totalorder %s11, 0
    %p73 = por %p71, %p72
    %p74 = scmp.ne.s32.totalorder %s63, %s66
    %p75 = scmp.eq.s32.totalorder %s16, 1
    %p76 = por %p74, %p75
    %p77 = scmp.ne.s32.totalorder %s66, %s67
    %p78 = scmp.eq.s32.totalorder %s16, 0
    %p79 = por %p77, %p78
    %p80 = scmp.ne.s32.totalorder %s66, %s67
    %p81 = scmp.eq.s32.totalorder %s17, 1
    %p82 = por %p80, %p81
    %p84 = scmp.ne.s32.totalorder %s67, %s83
    %p85 = scmp.eq.s32.totalorder %s17, 0
    %p86 = por %p84, %p85
    %s87 = ssub.s32 %s18, %s30
    %s88 = ssub.s32 %s19, %s26
    %s89 = sor.u32 %s87, %s88
    %p90 = scmp.eq.s32.totalorder %s89, 0
    %s92 = sadd.s32 %s91, 1
    %s93 = scalar_select %p90, %s91, %s92
    %p96 = pneg %p90
    %p97 = scmp.eq.s32.totalorder %s11, 1
    %p98 = por %p96, %p97
    %p99 = scmp.ne.s32.totalorder %s91, %s94
    %p100 = scmp.eq.s32.totalorder %s11, 0
    %p101 = por %p99, %p100
    %p102 = scmp.ne.s32.totalorder %s91, %s94
    %p103 = scmp.eq.s32.totalorder %s16, 1
    %p104 = por %p102, %p103
    %p105 = scmp.ne.s32.totalorder %s94, %s95
    %p106 = scmp.eq.s32.totalorder %s16, 0
    %p107 = por %p105, %p106
    %p108 = scmp.ne.s32.totalorder %s94, %s95
    %p109 = scmp.eq.s32.totalorder %s17, 1
    %p110 = por %p108, %p109
    %p112 = scmp.ne.s32.totalorder %s95, %s111
    %p113 = scmp.eq.s32.totalorder %s17, 0
    %p114 = por %p112, %p113
    %s115 = ssub.s32 %s18, %s30
    %s116 = ssub.s32 %s19, %s26
    %s117 = sor.u32 %s115, %s116
    %p118 = scmp.eq.s32.totalorder %s117, 0
    %s120 = sadd.s32 %s119, 1
    %s121 = scalar_select %p118, %s119, %s120
    %p124 = pneg %p118
    %p125 = scmp.eq.s32.totalorder %s11, 1
    %p126 = por %p124, %p125
    %p127 = scmp.ne.s32.totalorder %s119, %s122
    %p128 = scmp.eq.s32.totalorder %s11, 0
    %p129 = por %p127, %p128
    %p130 = scmp.ne.s32.totalorder %s119, %s122
    %p131 = scmp.eq.s32.totalorder %s16, 1
    %p132 = por %p130, %p131
    %p133 = scmp.ne.s32.totalorder %s122, %s123
    %p134 = scmp.eq.s32.totalorder %s16, 0
    %p135 = por %p133, %p134
    %p136 = scmp.ne.s32.totalorder %s122, %s123
    %p137 = scmp.eq.s32.totalorder %s17, 1
    %p138 = por %p136, %p137
    %p140 = scmp.ne.s32.totalorder %s123, %s139
    %p141 = scmp.eq.s32.totalorder %s17, 0
    %p142 = por %p140, %p141
    %s143 = ssub.s32 %s18, %s30
    %s144 = ssub.s32 %s19, %s26
    %s145 = sor.u32 %s143, %s144
    %p146 = scmp.eq.s32.totalorder %s145, 0
    %s148 = sadd.s32 %s147, 1
    %s149 = scalar_select %p146, %s147, %s148
    %p152 = pneg %p146
    %p153 = scmp.eq.s32.totalorder %s11, 1
    %p154 = por %p152, %p153
    %p155 = scmp.ne.s32.totalorder %s147, %s150
    %p156 = scmp.eq.s32.totalorder %s11, 0
    %p157 = por %p155, %p156
    %p158 = scmp.ne.s32.totalorder %s147, %s150
    %p159 = scmp.eq.s32.totalorder %s16, 1
    %p160 = por %p158, %p159
    %p161 = scmp.ne.s32.totalorder %s150, %s151
    %p162 = scmp.eq.s32.totalorder %s16, 0
    %p163 = por %p161, %p162
    %p164 = scmp.ne.s32.totalorder %s150, %s151
    %p165 = scmp.eq.s32.totalorder %s17, 1
    %p166 = por %p164, %p165
    %p168 = scmp.ne.s32.totalorder %s151, %s167
    %p169 = scmp.eq.s32.totalorder %s17, 0
    %p170 = por %p168, %p169
    %p171 = scmp.le.s32.totalorder 1, %s11
    %p172 = scmp.lt.s32.totalorder %s11, 3
    %p173 = pnand %p171, %p172
    %p174 = pneg %p173
    // Predicated region
    $region9: #{closed_call.18} parent=5 // pred_check
      _
    $region10: #{closed_call.18} parent=5 // pred_check_branch
      %176 = sbr.rel (%p173) target = $region12
    $region11: #{closed_call.18} parent=5 // pred_region
      %s177 = ssub.s32 %s11, 1
    $region12: #{closed_call.18} parent=5 // pred_fallthru
      _
    %p178 = scmp.lt.s32.totalorder %s11, 2
    // Predicated region
    $region13: #{closed_call.18} parent=5 // pred_check
      %p179 = pneg %p178
    $region14: #{closed_call.18} parent=5 // pred_check_branch
      %181 = sbr.rel (%p179) target = $region16
    $region15: #{closed_call.18} parent=5 // pred_region
      // Predicated region
      $region17: #{closed_call.18} parent=15 // pred_check
        %p182 = pneg %p45
      $region18: #{closed_call.18} parent=15 // pred_check_branch
        %184 = sbr.rel (%p182) target = $region20
      $region19: #{closed_call.18} parent=15 // pred_region
        %s185 = smul.u32 4, %s19
        %p186 = scmp.lt.s32.totalorder %s18, 1
        %s187 = scalar_select %p186, %s18, 1
        %p188 = scmp.lt.s32.totalorder %s185, 3
        %s189 = scalar_select %p188, %s185, 3
        %s190 = smul.addr %s189, 3
        %s191 = smul.addr %s187, 12
        %s192 = sadd.s32 %s190, %s191
        %s193 = smul.addr %s192, 8
        %s194 = scalar_lea.vmem %s0, %s193
        %s195 = smul.u32 4, %s19
      $region20: #{closed_call.18} parent=15 // pred_fallthru
        _
      // Predicated region
      $region21: #{closed_call.18} parent=15 // pred_check
        %p196 = pneg %p73
      $region22: #{closed_call.18} parent=15 // pred_check_branch
        %198 = sbr.rel (%p196) target = $region24
      $region23: #{closed_call.18} parent=15 // pred_region
        %s199 = smul.u32 4, %s19
        %p200 = scmp.lt.s32.totalorder %s18, 1
        %s201 = scalar_select %p200, %s18, 1
        %p202 = scmp.lt.s32.totalorder %s199, 3
        %s203 = scalar_select %p202, %s199, 3
        %s204 = smul.addr %s203, 3
        %s205 = smul.addr %s201, 12
        %s206 = sadd.s32 %s204, %s205
        %s207 = smul.addr %s206, 8
        %s208 = scalar_lea.vmem %s1, %s207
        %s209 = smul.u32 4, %s19
      $region24: #{closed_call.18} parent=15 // pred_fallthru
        _
      // Predicated region
      $region25: #{closed_call.18} parent=15 // pred_check
        %p210 = pneg %p101
      $region26: #{closed_call.18} parent=15 // pred_check_branch
        %212 = sbr.rel (%p210) target = $region28
      $region27: #{closed_call.18} parent=15 // pred_region
        %s213 = smul.u32 4, %s19
        %p214 = scmp.lt.s32.totalorder %s18, 1
        %s215 = scalar_select %p214, %s18, 1
        %p216 = scmp.lt.s32.totalorder %s213, 3
        %s217 = scalar_select %p216, %s213, 3
        %s218 = smul.addr %s217, 3
        %s219 = smul.addr %s215, 12
        %s220 = sadd.s32 %s218, %s219
        %s221 = smul.addr %s220, 8
        %s222 = scalar_lea.vmem %s2, %s221
        %s223 = smul.u32 4, %s19
      $region28: #{closed_call.18} parent=15 // pred_fallthru
        _
    $region16: #{closed_call.18} parent=5 // pred_fallthru
      _
    %p224 = scmp.le.s32.totalorder 1, %s11
    %p225 = scmp.lt.s32.totalorder %s11, 3
    %p226 = pnand %p224, %p225
    %p227 = pneg %p226
    // Predicated region
    $region29: #{closed_call.18} parent=5 // pred_check
      _
    $region30: #{closed_call.18} parent=5 // pred_check_branch
      %229 = sbr.rel (%p226) target = $region32
    $region31: #{closed_call.18} parent=5 // pred_region
      %s230 = ssub.s32 %s11, 1
      %s231 = smul.u32 4, %s21
      %p232 = scmp.lt.s32.totalorder %s20, 1
      %s233 = scalar_select %p232, %s20, 1
      %p234 = scmp.lt.s32.totalorder %s231, 3
      %s235 = scalar_select %p234, %s231, 3
      %s236 = smul.addr %s235, 3
      %s237 = smul.addr %s233, 12
      %s238 = sadd.s32 %s236, %s237
      %s239 = smul.addr %s238, 8
      %s240 = scalar_lea.vmem %s0, %s239
      %p241 = pneg %p51
      %p242 = pneg %p48
      %s243 = smul.u32 4, %s21
      %p244 = scmp.lt.s32.totalorder %s20, 1
      %s245 = scalar_select %p244, %s20, 1
      %p246 = scmp.lt.s32.totalorder %s243, 3
      %s247 = scalar_select %p246, %s243, 3
      %s248 = smul.addr %s247, 3
      %s249 = smul.addr %s245, 12
      %s250 = sadd.s32 %s248, %s249
      %s251 = smul.addr %s250, 8
      %s252 = scalar_lea.vmem %s1, %s251
      %p253 = pneg %p79
      %p254 = pneg %p76
      %s255 = smul.u32 4, %s21
      %p256 = scmp.lt.s32.totalorder %s20, 1
      %s257 = scalar_select %p256, %s20, 1
      %p258 = scmp.lt.s32.totalorder %s255, 3
      %s259 = scalar_select %p258, %s255, 3
      %s260 = smul.addr %s259, 3
      %s261 = smul.addr %s257, 12
      %s262 = sadd.s32 %s260, %s261
      %s263 = smul.addr %s262, 8
      %s264 = scalar_lea.vmem %s2, %s263
      %p265 = pneg %p107
      %p266 = pneg %p104
      %p267 = pneg %p135
      %p268 = pneg %p132
      %s269 = smul.u32 4, %s21
      %p270 = scmp.lt.s32.totalorder %s20, 1
      %s271 = scalar_select %p270, %s20, 1
      %p272 = scmp.lt.s32.totalorder %s269, 3
      %s273 = scalar_select %p272, %s269, 3
      %s274 = smul.addr %s273, 3
      %s275 = smul.addr %s271, 12
      %s276 = sadd.s32 %s274, %s275
      %s277 = smul.addr %s276, 8
      %s278 = scalar_lea.vmem %s3, %s277
      %p279 = pneg %p163
      %p280 = pneg %p160
      %s281 = smul.u32 4, %s21
      %p282 = scmp.lt.s32.totalorder %s20, 1
      %s283 = scalar_select %p282, %s20, 1
      %p284 = scmp.lt.s32.totalorder %s281, 3
      %s285 = scalar_select %p284, %s281, 3
      %s286 = smul.addr %s285, 3
      %s287 = smul.addr %s283, 12
      %s288 = sadd.s32 %s286, %s287
      %s289 = smul.addr %s288, 8
      %s290 = scalar_lea.vmem %s4, %s289
      %s291 = smul.u32 4, %s21
      %p292 = scmp.lt.s32.totalorder %s20, 1
      %s293 = scalar_select %p292, %s20, 1
      %p294 = scmp.lt.s32.totalorder %s291, 3
      %s295 = scalar_select %p294, %s291, 3
      %s296 = smul.addr %s295, 3
      %s297 = smul.addr %s293, 12
      %s298 = sadd.s32 %s296, %s297
      %s299 = smul.addr %s298, 8
      %s300 = scalar_lea.vmem %s0, %s299
      %s301 = smul.u32 4, %s21
      %s302 = smul.u32 4, %s21
      %p303 = scmp.lt.s32.totalorder %s20, 1
      %s304 = scalar_select %p303, %s20, 1
      %p305 = scmp.lt.s32.totalorder %s302, 3
      %s306 = scalar_select %p305, %s302, 3
      %s307 = smul.addr %s306, 3
      %s308 = smul.addr %s304, 12
      %s309 = sadd.s32 %s307, %s308
      %s310 = smul.addr %s309, 8
      %s311 = scalar_lea.vmem %s1, %s310
      %s312 = smul.u32 4, %s21
      %s313 = smul.u32 4, %s21
      %p314 = scmp.lt.s32.totalorder %s20, 1
      %s315 = scalar_select %p314, %s20, 1
      %p316 = scmp.lt.s32.totalorder %s313, 3
      %s317 = scalar_select %p316, %s313, 3
      %s318 = smul.addr %s317, 3
      %s319 = smul.addr %s315, 12
      %s320 = sadd.s32 %s318, %s319
      %s321 = smul.addr %s320, 8
      %s322 = scalar_lea.vmem %s2, %s321
      %s323 = smul.u32 4, %s21
      %s324 = smul.u32 4, %s21
      %p325 = scmp.lt.s32.totalorder %s20, 1
      %s326 = scalar_select %p325, %s20, 1
      %p327 = scmp.lt.s32.totalorder %s324, 3
      %s328 = scalar_select %p327, %s324, 3
      %s329 = smul.addr %s328, 3
      %s330 = smul.addr %s326, 12
      %s331 = sadd.s32 %s329, %s330
      %s332 = smul.addr %s331, 8
      %s333 = scalar_lea.vmem %s3, %s332
      %s334 = smul.u32 4, %s21
      %s335 = smul.u32 4, %s21
      %p336 = scmp.lt.s32.totalorder %s20, 1
      %s337 = scalar_select %p336, %s20, 1
      %p338 = scmp.lt.s32.totalorder %s335, 3
      %s339 = scalar_select %p338, %s335, 3
      %s340 = smul.addr %s339, 3
      %s341 = smul.addr %s337, 12
      %s342 = sadd.s32 %s340, %s341
      %s343 = smul.addr %s342, 8
      %s344 = scalar_lea.vmem %s4, %s343
      %s345 = smul.u32 4, %s21
      %v346 = vld [vmem:[%s300] sm:$0xff]
      %v347 = vld [vmem:[%s300 + $0x8] sm:$0xff]
      %v348 = vld [vmem:[%s300 + $0x10] sm:$0x1]
      %v349 = vld [vmem:[%s300 + $0x18] sm:$0xff]
      %v350 = vld [vmem:[%s300 + $0x20] sm:$0xff]
      %v351 = vld [vmem:[%s300 + $0x28] sm:$0x1]
      %v352 = vld [vmem:[%s300 + $0x30] sm:$0xff]
      %v353 = vld [vmem:[%s300 + $0x38] sm:$0xff]
      %v354 = vld [vmem:[%s300 + $0x40] sm:$0x1]
      %v355 = vld [vmem:[%s300 + $0x48] sm:$0xff]
      %v356 = vld [vmem:[%s300 + $0x50] sm:$0xff]
      %v357 = vld [vmem:[%s300 + $0x58] sm:$0x1]
      %v358 = vmul.f32 %v346, 0.35355338
      %v359 = vmul.f32 %v347, 0.35355338
      %v360 = vmul.f32 %v348, 0.35355338
      %v361 = vmul.f32 %v349, 0.35355338
      %v362 = vmul.f32 %v350, 0.35355338
      %v363 = vmul.f32 %v351, 0.35355338
      %v364 = vmul.f32 %v352, 0.35355338
      %v365 = vmul.f32 %v353, 0.35355338
      %v366 = vmul.f32 %v354, 0.35355338
      %v367 = vmul.f32 %v355, 0.35355338
      %v368 = vmul.f32 %v356, 0.35355338
      %v369 = vmul.f32 %v357, 0.35355338
      %v370 = vld [vmem:[%s311] sm:$0xff]
      %v371 = vld [vmem:[%s311 + $0x8] sm:$0xff]
      %v372 = vld [vmem:[%s311 + $0x10] sm:$0x1]
      %v373 = vld [vmem:[%s311 + $0x18] sm:$0xff]
      %v374 = vld [vmem:[%s311 + $0x20] sm:$0xff]
      %v375 = vld [vmem:[%s311 + $0x28] sm:$0x1]
      %v376 = vld [vmem:[%s311 + $0x30] sm:$0xff]
      %v377 = vld [vmem:[%s311 + $0x38] sm:$0xff]
      %v378 = vld [vmem:[%s311 + $0x40] sm:$0x1]
      %v379 = vld [vmem:[%s311 + $0x48] sm:$0xff]
      %v380 = vld [vmem:[%s311 + $0x50] sm:$0xff]
      %v381 = vld [vmem:[%s311 + $0x58] sm:$0x1]
      %vm382 = vcmask 64512
      %v384 = vsel %vm382, %v358, 0
      %v387 = vsel %vm382, %v359, 0
      %v390 = vsel %vm382, %v360, 0
      %v393 = vsel %vm382, %v370, 0
      %v396 = vsel %vm382, %v371, 0
      %v399 = vsel %vm382, %v372, 0
      %401 = vmatprep.subr.mxu0 0.0
      %402 = vmatpush1.xpose.msra.mxu0 %v393
      %403 = vmatprep.subr.mxu0 0.0
      %404 = vmatpush1.xpose.msra.mxu0 %v396
      %405 = vmatprep.subr.mxu0 0.0
      %406 = vmatpush1.xpose.msra.mxu0 %v399
      %407 = vmatprep.subr.mxu0 0.0
      %408 = vmatpush1.xpose.msra.mxu0 0.0
      %409 = vmatprep.subr.mxu0 0.0
      %410 = vmatpush1.xpose.msra.mxu0 0.0
      %411 = vmatprep.subr.mxu0 0.0
      %412 = vmatpush1.xpose.msra.mxu0 0.0
      %413 = vmatprep.subr.mxu0 0.0
      %414 = vmatpush1.xpose.msra.mxu0 0.0
      %415 = vmatprep.subr.mxu0 0.0
      %416 = vmatpush1.xpose.msra.mxu0 0.0
      %417 = vmatprep.subr.mxu0 0.0
      %418 = vmatpush1.xpose.msra.mxu0 0.0
      %419 = vmatprep.subr.mxu0 0.0
      %420 = vmatpush1.xpose.msra.mxu0 0.0
      %421 = vmatprep.subr.mxu0 0.0
      %422 = vmatpush1.xpose.msra.mxu0 0.0
      %423 = vmatprep.subr.mxu0 0.0
      %424 = vmatpush1.xpose.msra.mxu0 0.0
      %425 = vmatprep.subr.mxu0 0.0
      %426 = vmatpush1.xpose.msra.mxu0 0.0
      %427 = vmatprep.subr.mxu0 0.0
      %428 = vmatpush1.xpose.msra.mxu0 0.0
      %429 = vmatprep.subr.mxu0 0.0
      %430 = vmatpush1.xpose.msra.mxu0 0.0
      %431 = vmatprep.subr.mxu0 0.0
      %432 = vmatpush1.xpose.msra.mxu0 0.0
      %433 = vmatprep.subr.mxu0 0.0
      %434 = vmatpush1.xpose.msra.mxu0 0.0
      %435 = vmatprep.subr.mxu0 0.0
      %436 = vmatpush1.xpose.msra.mxu0 0.0
      %437 = vmatprep.subr.mxu0 0.0
      %438 = vmatpush1.xpose.msra.mxu0 0.0
      %439 = vmatprep.subr.mxu0 0.0
      %440 = vmatpush1.xpose.msra.mxu0 0.0
      %441 = vmatprep.subr.mxu0 0.0
      %442 = vmatpush1.xpose.msra.mxu0 0.0
      %443 = vmatprep.subr.mxu0 0.0
      %444 = vmatpush1.xpose.msra.mxu0 0.0
      %445 = vmatprep.subr.mxu0 0.0
      %446 = vmatpush1.xpose.msra.mxu0 0.0
      %447 = vmatprep.subr.mxu0 0.0
      %448 = vmatpush1.xpose.msra.mxu0 0.0
      %449 = vmatprep.subr.mxu0 0.0
      %450 = vmatpush1.xpose.msra.mxu0 0.0
      %451 = vmatprep.subr.mxu0 0.0
      %452 = vmatpush1.xpose.msra.mxu0 0.0
      %453 = vmatprep.subr.mxu0 0.0
      %454 = vmatpush1.xpose.msra.mxu0 0.0
      %455 = vmatprep.subr.mxu0 0.0
      %456 = vmatpush1.xpose.msra.mxu0 0.0
      %457 = vmatprep.subr.mxu0 0.0
      %458 = vmatpush1.xpose.msra.mxu0 0.0
      %459 = vmatprep.subr.mxu0 0.0
      %460 = vmatpush1.xpose.msra.mxu0 0.0
      %461 = vmatprep.subr.mxu0 0.0
      %462 = vmatpush1.xpose.msra.mxu0 0.0
      %463 = vmatprep.subr.mxu0 0.0
      %464 = vmatpush1.xpose.msra.mxu0 0.0
      %465 = vmatprep.mubr.f32.mxu0 0.0
      %466 = vmatmul.mubr.f32.gmra.mrb[0].mxu0 %v384
      %v467 = vpop.f32.mrb[0].mxu0
      %v468 = vadd.f32 0.0, %v467
      %v469 = vpop.f32.mrb[0].mxu0
      %470 = vmatprep.mubr.f32.mxu0 0.0
      %471 = vmatmul.mubr.f32.gmra.mrb[0].mxu0 %v387
      %v472 = vpop.f32.mrb[0].mxu0
      %v473 = vadd.f32 0.0, %v472
      %v474 = vpop.f32.mrb[0].mxu0
      %475 = vmatprep.mubr.f32.mxu0 0.0
      %476 = vmatmul.mubr.f32.gmra.mrb[0].mxu0 %v390
      %v477 = vpop.f32.mrb[0].mxu0
      %v478 = vadd.f32 0.0, %v477
      %v479 = vpop.f32.mrb[0].mxu0
      %480 = vdwg.mxu0
      %v482 = vsel %vm382, %v361, 0
      %v485 = vsel %vm382, %v362, 0
      %v488 = vsel %vm382, %v363, 0
      %v491 = vsel %vm382, %v373, 0
      %v494 = vsel %vm382, %v374, 0
      %v497 = vsel %vm382, %v375, 0
      %499 = vmatprep.subr.mxu0 0.0
      %500 = vmatpush1.xpose.msra.mxu0 %v491
      %501 = vmatprep.subr.mxu0 0.0
      %502 = vmatpush1.xpose.msra.mxu0 %v494
      %503 = vmatprep.subr.mxu0 0.0
      %504 = vmatpush1.xpose.msra.mxu0 %v497
      %505 = vmatprep.subr.mxu0 0.0
      %506 = vmatpush1.xpose.msra.mxu0 0.0
      %507 = vmatprep.subr.mxu0 0.0
      %508 = vmatpush1.xpose.msra.mxu0 0.0
      %509 = vmatprep.subr.mxu0 0.0
      %510 = vmatpush1.xpose.msra.mxu0 0.0
      %511 = vmatprep.subr.mxu0 0.0
      %512 = vmatpush1.xpose.msra.mxu0 0.0
      %513 = vmatprep.subr.mxu0 0.0
      %514 = vmatpush1.xpose.msra.mxu0 0.0
      %515 = vmatprep.subr.mxu0 0.0
      %516 = vmatpush1.xpose.msra.mxu0 0.0
      %517 = vmatprep.subr.mxu0 0.0
      %518 = vmatpush1.xpose.msra.mxu0 0.0
      %519 = vmatprep.subr.mxu0 0.0
      %520 = vmatpush1.xpose.msra.mxu0 0.0
      %521 = vmatprep.subr.mxu0 0.0
      %522 = vmatpush1.xpose.msra.mxu0 0.0
      %523 = vmatprep.subr.mxu0 0.0
      %524 = vmatpush1.xpose.msra.mxu0 0.0
      %525 = vmatprep.subr.mxu0 0.0
      %526 = vmatpush1.xpose.msra.mxu0 0.0
      %527 = vmatprep.subr.mxu0 0.0
      %528 = vmatpush1.xpose.msra.mxu0 0.0
      %529 = vmatprep.subr.mxu0 0.0
      %530 = vmatpush1.xpose.msra.mxu0 0.0
      %531 = vmatprep.subr.mxu0 0.0
      %532 = vmatpush1.xpose.msra.mxu0 0.0
      %533 = vmatprep.subr.mxu0 0.0
      %534 = vmatpush1.xpose.msra.mxu0 0.0
      %535 = vmatprep.subr.mxu0 0.0
      %536 = vmatpush1.xpose.msra.mxu0 0.0
      %537 = vmatprep.subr.mxu0 0.0
      %538 = vmatpush1.xpose.msra.mxu0 0.0
      %539 = vmatprep.subr.mxu0 0.0
      %540 = vmatpush1.xpose.msra.mxu0 0.0
      %541 = vmatprep.subr.mxu0 0.0
      %542 = vmatpush1.xpose.msra.mxu0 0.0
      %543 = vmatprep.subr.mxu0 0.0
      %544 = vmatpush1.xpose.msra.mxu0 0.0
      %545 = vmatprep.subr.mxu0 0.0
      %546 = vmatpush1.xpose.msra.mxu0 0.0
      %547 = vmatprep.subr.mxu0 0.0
      %548 = vmatpush1.xpose.msra.mxu0 0.0
      %549 = vmatprep.subr.mxu0 0.0
      %550 = vmatpush1.xpose.msra.mxu0 0.0
      %551 = vmatprep.subr.mxu0 0.0
      %552 = vmatpush1.xpose.msra.mxu0 0.0
      %553 = vmatprep.subr.mxu0 0.0
      %554 = vmatpush1.xpose.msra.mxu0 0.0
      %555 = vmatprep.subr.mxu0 0.0
      %556 = vmatpush1.xpose.msra.mxu0 0.0
      %557 = vmatprep.subr.mxu0 0.0
      %558 = vmatpush1.xpose.msra.mxu0 0.0
      %559 = vmatprep.subr.mxu0 0.0
      %560 = vmatpush1.xpose.msra.mxu0 0.0
      %561 = vmatprep.subr.mxu0 0.0
      %562 = vmatpush1.xpose.msra.mxu0 0.0
      %563 = vmatprep.mubr.f32.mxu0 0.0
      %564 = vmatmul.mubr.f32.gmra.mrb[0].mxu0 %v482
      %v565 = vpop.f32.mrb[0].mxu0
      %v566 = vadd.f32 0.0, %v565
      %v567 = vpop.f32.mrb[0].mxu0
      %568 = vmatprep.mubr.f32.mxu0 0.0
      %569 = vmatmul.mubr.f32.gmra.mrb[0].mxu0 %v485
      %v570 = vpop.f32.mrb[0].mxu0
      %v571 = vadd.f32 0.0, %v570
      %v572 = vpop.f32.mrb[0].mxu0
      %573 = vmatprep.mubr.f32.mxu0 0.0
      %574 = vmatmul.mubr.f32.gmra.mrb[0].mxu0 %v488
      %v575 = vpop.f32.mrb[0].mxu0
      %v576 = vadd.f32 0.0, %v575
      %v577 = vpop.f32.mrb[0].mxu0
      %578 = vdwg.mxu0
      %v580 = vsel %vm382, %v364, 0
      %v583 = vsel %vm382, %v365, 0
      %v586 = vsel %vm382, %v366, 0
      %v589 = vsel %vm382, %v376, 0
      %v592 = vsel %vm382, %v377, 0
      %v595 = vsel %vm382, %v378, 0
      %597 = vmatprep.subr.mxu0 0.0
      %598 = vmatpush1.xpose.msra.mxu0 %v589
      %599 = vmatprep.subr.mxu0 0.0
      %600 = vmatpush1.xpose.msra.mxu0 %v592
      %601 = vmatprep.subr.mxu0 0.0
      %602 = vmatpush1.xpose.msra.mxu0 %v595
      %603 = vmatprep.subr.mxu0 0.0
      %604 = vmatpush1.xpose.msra.mxu0 0.0
      %605 = vmatprep.subr.mxu0 0.0
      %606 = vmatpush1.xpose.msra.mxu0 0.0
      %607 = vmatprep.subr.mxu0 0.0
      %608 = vmatpush1.xpose.msra.mxu0 0.0
      %609 = vmatprep.subr.mxu0 0.0
      %610 = vmatpush1.xpose.msra.mxu0 0.0
      %611 = vmatprep.subr.mxu0 0.0
      %612 = vmatpush1.xpose.msra.mxu0 0.0
      %613 = vmatprep.subr.mxu0 0.0
      %614 = vmatpush1.xpose.msra.mxu0 0.0
      %615 = vmatprep.subr.mxu0 0.0
      %616 = vmatpush1.xpose.msra.mxu0 0.0
      %617 = vmatprep.subr.mxu0 0.0
      %618 = vmatpush1.xpose.msra.mxu0 0.0
      %619 = vmatprep.subr.mxu0 0.0
      %620 = vmatpush1.xpose.msra.mxu0 0.0
      %621 = vmatprep.subr.mxu0 0.0
      %622 = vmatpush1.xpose.msra.mxu0 0.0
      %623 = vmatprep.subr.mxu0 0.0
      %624 = vmatpush1.xpose.msra.mxu0 0.0
      %625 = vmatprep.subr.mxu0 0.0
      %626 = vmatpush1.xpose.msra.mxu0 0.0
      %627 = vmatprep.subr.mxu0 0.0
      %628 = vmatpush1.xpose.msra.mxu0 0.0
      %629 = vmatprep.subr.mxu0 0.0
      %630 = vmatpush1.xpose.msra.mxu0 0.0
      %631 = vmatprep.subr.mxu0 0.0
      %632 = vmatpush1.xpose.msra.mxu0 0.0
      %633 = vmatprep.subr.mxu0 0.0
      %634 = vmatpush1.xpose.msra.mxu0 0.0
      %635 = vmatprep.subr.mxu0 0.0
      %636 = vmatpush1.xpose.msra.mxu0 0.0
      %637 = vmatprep.subr.mxu0 0.0
      %638 = vmatpush1.xpose.msra.mxu0 0.0
      %639 = vmatprep.subr.mxu0 0.0
      %640 = vmatpush1.xpose.msra.mxu0 0.0
      %641 = vmatprep.subr.mxu0 0.0
      %642 = vmatpush1.xpose.msra.mxu0 0.0
      %643 = vmatprep.subr.mxu0 0.0
      %644 = vmatpush1.xpose.msra.mxu0 0.0
      %645 = vmatprep.subr.mxu0 0.0
      %646 = vmatpush1.xpose.msra.mxu0 0.0
      %647 = vmatprep.subr.mxu0 0.0
      %648 = vmatpush1.xpose.msra.mxu0 0.0
      %649 = vmatprep.subr.mxu0 0.0
      %650 = vmatpush1.xpose.msra.mxu0 0.0
      %651 = vmatprep.subr.mxu0 0.0
      %652 = vmatpush1.xpose.msra.mxu0 0.0
      %653 = vmatprep.subr.mxu0 0.0
      %654 = vmatpush1.xpose.msra.mxu0 0.0
      %655 = vmatprep.subr.mxu0 0.0
      %656 = vmatpush1.xpose.msra.mxu0 0.0
      %657 = vmatprep.subr.mxu0 0.0
      %658 = vmatpush1.xpose.msra.mxu0 0.0
      %659 = vmatprep.subr.mxu0 0.0
      %660 = vmatpush1.xpose.msra.mxu0 0.0
      %661 = vmatprep.mubr.f32.mxu0 0.0
      %662 = vmatmul.mubr.f32.gmra.mrb[0].mxu0 %v580
      %v663 = vpop.f32.mrb[0].mxu0
      %v664 = vadd.f32 0.0, %v663
      %v665 = vpop.f32.mrb[0].mxu0
      %666 = vmatprep.mubr.f32.mxu0 0.0
      %667 = vmatmul.mubr.f32.gmra.mrb[0].mxu0 %v583
      %v668 = vpop.f32.mrb[0].mxu0
      %v669 = vadd.f32 0.0, %v668
      %v670 = vpop.f32.mrb[0].mxu0
      %671 = vmatprep.mubr.f32.mxu0 0.0
      %672 = vmatmul.mubr.f32.gmra.mrb[0].mxu0 %v586
      %v673 = vpop.f32.mrb[0].mxu0
      %v674 = vadd.f32 0.0, %v673
      %v675 = vpop.f32.mrb[0].mxu0
      %676 = vdwg.mxu0
      %v678 = vsel %vm382, %v367, 0
      %v681 = vsel %vm382, %v368, 0
      %v684 = vsel %vm382, %v369, 0
      %v687 = vsel %vm382, %v379, 0
      %v690 = vsel %vm382, %v380, 0
      %v693 = vsel %vm382, %v381, 0
      %695 = vmatprep.subr.mxu0 0.0
      %696 = vmatpush1.xpose.msra.mxu0 %v687
      %697 = vmatprep.subr.mxu0 0.0
      %698 = vmatpush1.xpose.msra.mxu0 %v690
      %699 = vmatprep.subr.mxu0 0.0
      %700 = vmatpush1.xpose.msra.mxu0 %v693
      %701 = vmatprep.subr.mxu0 0.0
      %702 = vmatpush1.xpose.msra.mxu0 0.0
      %703 = vmatprep.subr.mxu0 0.0
      %704 = vmatpush1.xpose.msra.mxu0 0.0
      %705 = vmatprep.subr.mxu0 0.0
      %706 = vmatpush1.xpose.msra.mxu0 0.0
      %707 = vmatprep.subr.mxu0 0.0
      %708 = vmatpush1.xpose.msra.mxu0 0.0
      %709 = vmatprep.subr.mxu0 0.0
      %710 = vmatpush1.xpose.msra.mxu0 0.0
      %711 = vmatprep.subr.mxu0 0.0
      %712 = vmatpush1.xpose.msra.mxu0 0.0
      %713 = vmatprep.subr.mxu0 0.0
      %714 = vmatpush1.xpose.msra.mxu0 0.0
      %715 = vmatprep.subr.mxu0 0.0
      %716 = vmatpush1.xpose.msra.mxu0 0.0
      %717 = vmatprep.subr.mxu0 0.0
      %718 = vmatpush1.xpose.msra.mxu0 0.0
      %719 = vmatprep.subr.mxu0 0.0
      %720 = vmatpush1.xpose.msra.mxu0 0.0
      %721 = vmatprep.subr.mxu0 0.0
      %722 = vmatpush1.xpose.msra.mxu0 0.0
      %723 = vmatprep.subr.mxu0 0.0
      %724 = vmatpush1.xpose.msra.mxu0 0.0
      %725 = vmatprep.subr.mxu0 0.0
      %726 = vmatpush1.xpose.msra.mxu0 0.0
      %727 = vmatprep.subr.mxu0 0.0
      %728 = vmatpush1.xpose.msra.mxu0 0.0
      %729 = vmatprep.subr.mxu0 0.0
      %730 = vmatpush1.xpose.msra.mxu0 0.0
      %731 = vmatprep.subr.mxu0 0.0
      %732 = vmatpush1.xpose.msra.mxu0 0.0
      %733 = vmatprep.subr.mxu0 0.0
      %734 = vmatpush1.xpose.msra.mxu0 0.0
      %735 = vmatprep.subr.mxu0 0.0
      %736 = vmatpush1.xpose.msra.mxu0 0.0
      %737 = vmatprep.subr.mxu0 0.0
      %738 = vmatpush1.xpose.msra.mxu0 0.0
      %739 = vmatprep.subr.mxu0 0.0
      %740 = vmatpush1.xpose.msra.mxu0 0.0
      %741 = vmatprep.subr.mxu0 0.0
      %742 = vmatpush1.xpose.msra.mxu0 0.0
      %743 = vmatprep.subr.mxu0 0.0
      %744 = vmatpush1.xpose.msra.mxu0 0.0
      %745 = vmatprep.subr.mxu0 0.0
      %746 = vmatpush1.xpose.msra.mxu0 0.0
      %747 = vmatprep.subr.mxu0 0.0
      %748 = vmatpush1.xpose.msra.mxu0 0.0
      %749 = vmatprep.subr.mxu0 0.0
      %750 = vmatpush1.xpose.msra.mxu0 0.0
      %751 = vmatprep.subr.mxu0 0.0
      %752 = vmatpush1.xpose.msra.mxu0 0.0
      %753 = vmatprep.subr.mxu0 0.0
      %754 = vmatpush1.xpose.msra.mxu0 0.0
      %755 = vmatprep.subr.mxu0 0.0
      %756 = vmatpush1.xpose.msra.mxu0 0.0
      %757 = vmatprep.subr.mxu0 0.0
      %758 = vmatpush1.xpose.msra.mxu0 0.0
      %759 = vmatprep.mubr.f32.mxu0 0.0
      %760 = vmatmul.mubr.f32.gmra.mrb[0].mxu0 %v678
      %v761 = vpop.f32.mrb[0].mxu0
      %v762 = vadd.f32 0.0, %v761
      %v763 = vpop.f32.mrb[0].mxu0
      %764 = vmatprep.mubr.f32.mxu0 0.0
      %765 = vmatmul.mubr.f32.gmra.mrb[0].mxu0 %v681
      %v766 = vpop.f32.mrb[0].mxu0
      %v767 = vadd.f32 0.0, %v766
      %v768 = vpop.f32.mrb[0].mxu0
      %769 = vmatprep.mubr.f32.mxu0 0.0
      %770 = vmatmul.mubr.f32.gmra.mrb[0].mxu0 %v684
      %v771 = vpop.f32.mrb[0].mxu0
      %v772 = vadd.f32 0.0, %v771
      %v773 = vpop.f32.mrb[0].mxu0
      %774 = vdwg.mxu0
      %vm775 = vcmask 138240
      %v776 = vsel %vm775, %v468, -inf
      %777 = vmax.xlane.f32.xlu0 %v776
      %v778 = vpop.xlane.xlu0 %777
      %v779 = vsel %vm775, %v473, -inf
      %780 = vmax.xlane.f32.xlu0 %v779
      %v781 = vpop.xlane.xlu0 %780
      %vm782 = vcmask 131072
      %v783 = vsel %vm782, %v478, -inf
      %784 = vmax.xlane.f32.xlu0 %v783
      %v785 = vpop.xlane.xlu0 %784
      %v786 = vsel %vm775, %v566, -inf
      %787 = vmax.xlane.f32.xlu0 %v786
      %v788 = vpop.xlane.xlu0 %787
      %v789 = vsel %vm775, %v571, -inf
      %790 = vmax.xlane.f32.xlu0 %v789
      %v791 = vpop.xlane.xlu0 %790
      %v792 = vsel %vm782, %v576, -inf
      %793 = vmax.xlane.f32.xlu0 %v792
      %v794 = vpop.xlane.xlu0 %793
      %v795 = vsel %vm775, %v664, -inf
      %796 = vmax.xlane.f32.xlu0 %v795
      %v797 = vpop.xlane.xlu0 %796
      %v798 = vsel %vm775, %v669, -inf
      %799 = vmax.xlane.f32.xlu0 %v798
      %v800 = vpop.xlane.xlu0 %799
      %v801 = vsel %vm782, %v674, -inf
      %802 = vmax.xlane.f32.xlu0 %v801
      %v803 = vpop.xlane.xlu0 %802
      %v804 = vsel %vm775, %v762, -inf
      %805 = vmax.xlane.f32.xlu0 %v804
      %v806 = vpop.xlane.xlu0 %805
      %v807 = vsel %vm775, %v767, -inf
      %808 = vmax.xlane.f32.xlu0 %v807
      %v809 = vpop.xlane.xlu0 %808
      %v810 = vsel %vm782, %v772, -inf
      %811 = vmax.xlane.f32.xlu0 %v810
      %v812 = vpop.xlane.xlu0 %811
      %v813 = vsub.f32 %v468, %v778
      %v814 = vsub.f32 %v473, %v781
      %v815 = vsub.f32 %v478, %v785
      %v816 = vsub.f32 %v566, %v788
      %v817 = vsub.f32 %v571, %v791
      %v818 = vsub.f32 %v576, %v794
      %v819 = vsub.f32 %v664, %v797
      %v820 = vsub.f32 %v669, %v800
      %v821 = vsub.f32 %v674, %v803
      %v822 = vsub.f32 %v762, %v806
      %v823 = vsub.f32 %v767, %v809
      %v824 = vsub.f32 %v772, %v812
      %v825 = vmul.f32 %v813, 1.442695
      %v826 = vpow.pop %v825
      %v827 = vmul.f32 %v814, 1.442695
      %v828 = vpow.pop %v827
      %v829 = vmul.f32 %v815, 1.442695
      %v830 = vpow.pop %v829
      %v831 = vmul.f32 %v816, 1.442695
      %v832 = vpow.pop %v831
      %v833 = vmul.f32 %v817, 1.442695
      %v834 = vpow.pop %v833
      %v835 = vmul.f32 %v818, 1.442695
      %v836 = vpow.pop %v835
      %v837 = vmul.f32 %v819, 1.442695
      %v838 = vpow.pop %v837
      %v839 = vmul.f32 %v820, 1.442695
      %v840 = vpow.pop %v839
      %v841 = vmul.f32 %v821, 1.442695
      %v842 = vpow.pop %v841
      %v843 = vmul.f32 %v822, 1.442695
      %v844 = vpow.pop %v843
      %v845 = vmul.f32 %v823, 1.442695
      %v846 = vpow.pop %v845
      %v847 = vmul.f32 %v824, 1.442695
      %v848 = vpow.pop %v847
      %v849 = vsel %vm775, %v826, 0.0
      %850 = vadd.xlane.f32.xlu0 %v849
      %v851 = vpop.xlane.xlu0 %850
      %v852 = vsel %vm775, %v828, 0.0
      %853 = vadd.xlane.f32.xlu0 %v852
      %v854 = vpop.xlane.xlu0 %853
      %v855 = vsel %vm782, %v830, 0.0
      %856 = vadd.xlane.f32.xlu0 %v855
      %v857 = vpop.xlane.xlu0 %856
      %v858 = vsel %vm775, %v832, 0.0
      %859 = vadd.xlane.f32.xlu0 %v858
      %v860 = vpop.xlane.xlu0 %859
      %v861 = vsel %vm775, %v834, 0.0
      %862 = vadd.xlane.f32.xlu0 %v861
      %v863 = vpop.xlane.xlu0 %862
      %v864 = vsel %vm782, %v836, 0.0
      %865 = vadd.xlane.f32.xlu0 %v864
      %v866 = vpop.xlane.xlu0 %865
      %v867 = vsel %vm775, %v838, 0.0
      %868 = vadd.xlane.f32.xlu0 %v867
      %v869 = vpop.xlane.xlu0 %868
      %v870 = vsel %vm775, %v840, 0.0
      %871 = vadd.xlane.f32.xlu0 %v870
      %v872 = vpop.xlane.xlu0 %871
      %v873 = vsel %vm782, %v842, 0.0
      %874 = vadd.xlane.f32.xlu0 %v873
      %v875 = vpop.xlane.xlu0 %874
      %v876 = vsel %vm775, %v844, 0.0
      %877 = vadd.xlane.f32.xlu0 %v876
      %v878 = vpop.xlane.xlu0 %877
      %v879 = vsel %vm775, %v846, 0.0
      %880 = vadd.xlane.f32.xlu0 %v879
      %v881 = vpop.xlane.xlu0 %880
      %v882 = vsel %vm782, %v848, 0.0
      %883 = vadd.xlane.f32.xlu0 %v882
      %v884 = vpop.xlane.xlu0 %883
      %v885 = vrcp.pop %v851
      %v886 = vmul.f32 %v826, %v885
      %v887 = vrcp.pop %v854
      %v888 = vmul.f32 %v828, %v887
      %v889 = vrcp.pop %v857
      %v890 = vmul.f32 %v830, %v889
      %v891 = vrcp.pop %v860
      %v892 = vmul.f32 %v832, %v891
      %v893 = vrcp.pop %v863
      %v894 = vmul.f32 %v834, %v893
      %v895 = vrcp.pop %v866
      %v896 = vmul.f32 %v836, %v895
      %v897 = vrcp.pop %v869
      %v898 = vmul.f32 %v838, %v897
      %v899 = vrcp.pop %v872
      %v900 = vmul.f32 %v840, %v899
      %v901 = vrcp.pop %v875
      %v902 = vmul.f32 %v842, %v901
      %v903 = vrcp.pop %v878
      %v904 = vmul.f32 %v844, %v903
      %v905 = vrcp.pop %v881
      %v906 = vmul.f32 %v846, %v905
      %v907 = vrcp.pop %v884
      %v908 = vmul.f32 %v848, %v907
      %v909 = vld [vmem:[%s322] sm:$0xff]
      %v910 = vld [vmem:[%s322 + $0x8] sm:$0xff]
      %v911 = vld [vmem:[%s322 + $0x10] sm:$0x1]
      %v912 = vld [vmem:[%s322 + $0x18] sm:$0xff]
      %v913 = vld [vmem:[%s322 + $0x20] sm:$0xff]
      %v914 = vld [vmem:[%s322 + $0x28] sm:$0x1]
      %v915 = vld [vmem:[%s322 + $0x30] sm:$0xff]
      %v916 = vld [vmem:[%s322 + $0x38] sm:$0xff]
      %v917 = vld [vmem:[%s322 + $0x40] sm:$0x1]
      %v918 = vld [vmem:[%s322 + $0x48] sm:$0xff]
      %v919 = vld [vmem:[%s322 + $0x50] sm:$0xff]
      %v920 = vld [vmem:[%s322 + $0x58] sm:$0x1]
      %v922 = vsel %vm775, %v886, 0
      %v925 = vsel %vm775, %v888, 0
      %v928 = vsel %vm775, %v890, 0
      %vm930 = vcmask 1040384
      %v932 = vsel %vm930, %v911, 0
      %934 = vmatprep.subr.mxu0 0.0
      %935 = vmatpush1.msra.mxu0 %v909
      %936 = vmatprep.subr.mxu0 0.0
      %937 = vmatpush1.msra.mxu0 %v910
      %938 = vmatprep.subr.mxu0 0.0
      %939 = vmatpush1.msra.mxu0 %v932
      %940 = vmatprep.subr.mxu0 0.0
      %941 = vmatpush1.msra.mxu0 0.0
      %942 = vmatprep.subr.mxu0 0.0
      %943 = vmatpush1.msra.mxu0 0.0
      %944 = vmatprep.subr.mxu0 0.0
      %945 = vmatpush1.msra.mxu0 0.0
      %946 = vmatprep.subr.mxu0 0.0
      %947 = vmatpush1.msra.mxu0 0.0
      %948 = vmatprep.subr.mxu0 0.0
      %949 = vmatpush1.msra.mxu0 0.0
      %950 = vmatprep.subr.mxu0 0.0
      %951 = vmatpush1.msra.mxu0 0.0
      %952 = vmatprep.subr.mxu0 0.0
      %953 = vmatpush1.msra.mxu0 0.0
      %954 = vmatprep.subr.mxu0 0.0
      %955 = vmatpush1.msra.mxu0 0.0
      %956 = vmatprep.subr.mxu0 0.0
      %957 = vmatpush1.msra.mxu0 0.0
      %958 = vmatprep.subr.mxu0 0.0
      %959 = vmatpush1.msra.mxu0 0.0
      %960 = vmatprep.subr.mxu0 0.0
      %961 = vmatpush1.msra.mxu0 0.0
      %962 = vmatprep.subr.mxu0 0.0
      %963 = vmatpush1.msra.mxu0 0.0
      %964 = vmatprep.subr.mxu0 0.0
      %965 = vmatpush1.msra.mxu0 0.0
      %966 = vmatprep.subr.mxu0 0.0
      %967 = vmatpush1.msra.mxu0 0.0
      %968 = vmatprep.subr.mxu0 0.0
      %969 = vmatpush1.msra.mxu0 0.0
      %970 = vmatprep.subr.mxu0 0.0
      %971 = vmatpush1.msra.mxu0 0.0
      %972 = vmatprep.subr.mxu0 0.0
      %973 = vmatpush1.msra.mxu0 0.0
      %974 = vmatprep.subr.mxu0 0.0
      %975 = vmatpush1.msra.mxu0 0.0
      %976 = vmatprep.subr.mxu0 0.0
      %977 = vmatpush1.msra.mxu0 0.0
      %978 = vmatprep.subr.mxu0 0.0
      %979 = vmatpush1.msra.mxu0 0.0
      %980 = vmatprep.subr.mxu0 0.0
      %981 = vmatpush1.msra.mxu0 0.0
      %982 = vmatprep.subr.mxu0 0.0
      %983 = vmatpush1.msra.mxu0 0.0
      %984 = vmatprep.subr.mxu0 0.0
      %985 = vmatpush1.msra.mxu0 0.0
      %986 = vmatprep.subr.mxu0 0.0
      %987 = vmatpush1.msra.mxu0 0.0
      %988 = vmatprep.subr.mxu0 0.0
      %989 = vmatpush1.msra.mxu0 0.0
      %990 = vmatprep.subr.mxu0 0.0
      %991 = vmatpush1.msra.mxu0 0.0
      %992 = vmatprep.subr.mxu0 0.0
      %993 = vmatpush1.msra.mxu0 0.0
      %994 = vmatprep.subr.mxu0 0.0
      %995 = vmatpush1.msra.mxu0 0.0
      %996 = vmatprep.subr.mxu0 0.0
      %997 = vmatpush1.msra.mxu0 0.0
      %998 = vmatprep.mubr.f32.mxu0 0.0
      %999 = vmatmul.mubr.f32.gmra.mrb[0].mxu0 %v922
      %v1000 = vpop.f32.mrb[0].mxu0
      %v1001 = vadd.f32 0.0, %v1000
      %v1002 = vpop.f32.mrb[0].mxu0
      %1003 = vmatprep.mubr.f32.mxu0 0.0
      %1004 = vmatmul.mubr.f32.gmra.mrb[0].mxu0 %v925
      %v1005 = vpop.f32.mrb[0].mxu0
      %v1006 = vadd.f32 0.0, %v1005
      %v1007 = vpop.f32.mrb[0].mxu0
      %1008 = vmatprep.mubr.f32.mxu0 0.0
      %1009 = vmatmul.mubr.f32.gmra.mrb[0].mxu0 %v928
      %v1010 = vpop.f32.mrb[0].mxu0
      %v1011 = vadd.f32 0.0, %v1010
      %v1012 = vpop.f32.mrb[0].mxu0
      %1013 = vdwg.mxu0
      %v1015 = vsel %vm775, %v892, 0
      %v1018 = vsel %vm775, %v894, 0
      %v1021 = vsel %vm775, %v896, 0
      %v1024 = vsel %vm930, %v914, 0
      %1026 = vmatprep.subr.mxu0 0.0
      %1027 = vmatpush1.msra.mxu0 %v912
      %1028 = vmatprep.subr.mxu0 0.0
      %1029 = vmatpush1.msra.mxu0 %v913
      %1030 = vmatprep.subr.mxu0 0.0
      %1031 = vmatpush1.msra.mxu0 %v1024
      %1032 = vmatprep.subr.mxu0 0.0
      %1033 = vmatpush1.msra.mxu0 0.0
      %1034 = vmatprep.subr.mxu0 0.0
      %1035 = vmatpush1.msra.mxu0 0.0
      %1036 = vmatprep.subr.mxu0 0.0
      %1037 = vmatpush1.msra.mxu0 0.0
      %1038 = vmatprep.subr.mxu0 0.0
      %1039 = vmatpush1.msra.mxu0 0.0
      %1040 = vmatprep.subr.mxu0 0.0
      %1041 = vmatpush1.msra.mxu0 0.0
      %1042 = vmatprep.subr.mxu0 0.0
      %1043 = vmatpush1.msra.mxu0 0.0
      %1044 = vmatprep.subr.mxu0 0.0
      %1045 = vmatpush1.msra.mxu0 0.0
      %1046 = vmatprep.subr.mxu0 0.0
      %1047 = vmatpush1.msra.mxu0 0.0
      %1048 = vmatprep.subr.mxu0 0.0
      %1049 = vmatpush1.msra.mxu0 0.0
      %1050 = vmatprep.subr.mxu0 0.0
      %1051 = vmatpush1.msra.mxu0 0.0
      %1052 = vmatprep.subr.mxu0 0.0
      %1053 = vmatpush1.msra.mxu0 0.0
      %1054 = vmatprep.subr.mxu0 0.0
      %1055 = vmatpush1.msra.mxu0 0.0
      %1056 = vmatprep.subr.mxu0 0.0
      %1057 = vmatpush1.msra.mxu0 0.0
      %1058 = vmatprep.subr.mxu0 0.0
      %1059 = vmatpush1.msra.mxu0 0.0
      %1060 = vmatprep.subr.mxu0 0.0
      %1061 = vmatpush1.msra.mxu0 0.0
      %1062 = vmatprep.subr.mxu0 0.0
      %1063 = vmatpush1.msra.mxu0 0.0
      %1064 = vmatprep.subr.mxu0 0.0
      %1065 = vmatpush1.msra.mxu0 0.0
      %1066 = vmatprep.subr.mxu0 0.0
      %1067 = vmatpush1.msra.mxu0 0.0
      %1068 = vmatprep.subr.mxu0 0.0
      %1069 = vmatpush1.msra.mxu0 0.0
      %1070 = vmatprep.subr.mxu0 0.0
      %1071 = vmatpush1.msra.mxu0 0.0
      %1072 = vmatprep.subr.mxu0 0.0
      %1073 = vmatpush1.msra.mxu0 0.0
      %1074 = vmatprep.subr.mxu0 0.0
      %1075 = vmatpush1.msra.mxu0 0.0
      %1076 = vmatprep.subr.mxu0 0.0
      %1077 = vmatpush1.msra.mxu0 0.0
      %1078 = vmatprep.subr.mxu0 0.0
      %1079 = vmatpush1.msra.mxu0 0.0
      %1080 = vmatprep.subr.mxu0 0.0
      %1081 = vmatpush1.msra.mxu0 0.0
      %1082 = vmatprep.subr.mxu0 0.0
      %1083 = vmatpush1.msra.mxu0 0.0
      %1084 = vmatprep.subr.mxu0 0.0
      %1085 = vmatpush1.msra.mxu0 0.0
      %1086 = vmatprep.subr.mxu0 0.0
      %1087 = vmatpush1.msra.mxu0 0.0
      %1088 = vmatprep.subr.mxu0 0.0
      %1089 = vmatpush1.msra.mxu0 0.0
      %1090 = vmatprep.mubr.f32.mxu0 0.0
      %1091 = vmatmul.mubr.f32.gmra.mrb[0].mxu0 %v1015
      %v1092 = vpop.f32.mrb[0].mxu0
      %v1093 = vadd.f32 0.0, %v1092
      %v1094 = vpop.f32.mrb[0].mxu0
      %1095 = vmatprep.mubr.f32.mxu0 0.0
      %1096 = vmatmul.mubr.f32.gmra.mrb[0].mxu0 %v1018
      %v1097 = vpop.f32.mrb[0].mxu0
      %v1098 = vadd.f32 0.0, %v1097
      %v1099 = vpop.f32.mrb[0].mxu0
      %1100 = vmatprep.mubr.f32.mxu0 0.0
      %1101 = vmatmul.mubr.f32.gmra.mrb[0].mxu0 %v1021
      %v1102 = vpop.f32.mrb[0].mxu0
      %v1103 = vadd.f32 0.0, %v1102
      %v1104 = vpop.f32.mrb[0].mxu0
      %1105 = vdwg.mxu0
      %v1107 = vsel %vm775, %v898, 0
      %v1110 = vsel %vm775, %v900, 0
      %v1113 = vsel %vm775, %v902, 0
      %v1116 = vsel %vm930, %v917, 0
      %1118 = vmatprep.subr.mxu0 0.0
      %1119 = vmatpush1.msra.mxu0 %v915
      %1120 = vmatprep.subr.mxu0 0.0
      %1121 = vmatpush1.msra.mxu0 %v916
      %1122 = vmatprep.subr.mxu0 0.0
      %1123 = vmatpush1.msra.mxu0 %v1116
      %1124 = vmatprep.subr.mxu0 0.0
      %1125 = vmatpush1.msra.mxu0 0.0
      %1126 = vmatprep.subr.mxu0 0.0
      %1127 = vmatpush1.msra.mxu0 0.0
      %1128 = vmatprep.subr.mxu0 0.0
      %1129 = vmatpush1.msra.mxu0 0.0
      %1130 = vmatprep.subr.mxu0 0.0
      %1131 = vmatpush1.msra.mxu0 0.0
      %1132 = vmatprep.subr.mxu0 0.0
      %1133 = vmatpush1.msra.mxu0 0.0
      %1134 = vmatprep.subr.mxu0 0.0
      %1135 = vmatpush1.msra.mxu0 0.0
      %1136 = vmatprep.subr.mxu0 0.0
      %1137 = vmatpush1.msra.mxu0 0.0
      %1138 = vmatprep.subr.mxu0 0.0
      %1139 = vmatpush1.msra.mxu0 0.0
      %1140 = vmatprep.subr.mxu0 0.0
      %1141 = vmatpush1.msra.mxu0 0.0
      %1142 = vmatprep.subr.mxu0 0.0
      %1143 = vmatpush1.msra.mxu0 0.0
      %1144 = vmatprep.subr.mxu0 0.0
      %1145 = vmatpush1.msra.mxu0 0.0
      %1146 = vmatprep.subr.mxu0 0.0
      %1147 = vmatpush1.msra.mxu0 0.0
      %1148 = vmatprep.subr.mxu0 0.0
      %1149 = vmatpush1.msra.mxu0 0.0
      %1150 = vmatprep.subr.mxu0 0.0
      %1151 = vmatpush1.msra.mxu0 0.0
      %1152 = vmatprep.subr.mxu0 0.0
      %1153 = vmatpush1.msra.mxu0 0.0
      %1154 = vmatprep.subr.mxu0 0.0
      %1155 = vmatpush1.msra.mxu0 0.0
      %1156 = vmatprep.subr.mxu0 0.0
      %1157 = vmatpush1.msra.mxu0 0.0
      %1158 = vmatprep.subr.mxu0 0.0
      %1159 = vmatpush1.msra.mxu0 0.0
      %1160 = vmatprep.subr.mxu0 0.0
      %1161 = vmatpush1.msra.mxu0 0.0
      %1162 = vmatprep.subr.mxu0 0.0
      %1163 = vmatpush1.msra.mxu0 0.0
      %1164 = vmatprep.subr.mxu0 0.0
      %1165 = vmatpush1.msra.mxu0 0.0
      %1166 = vmatprep.subr.mxu0 0.0
      %1167 = vmatpush1.msra.mxu0 0.0
      %1168 = vmatprep.subr.mxu0 0.0
      %1169 = vmatpush1.msra.mxu0 0.0
      %1170 = vmatprep.subr.mxu0 0.0
      %1171 = vmatpush1.msra.mxu0 0.0
      %1172 = vmatprep.subr.mxu0 0.0
      %1173 = vmatpush1.msra.mxu0 0.0
      %1174 = vmatprep.subr.mxu0 0.0
      %1175 = vmatpush1.msra.mxu0 0.0
      %1176 = vmatprep.subr.mxu0 0.0
      %1177 = vmatpush1.msra.mxu0 0.0
      %1178 = vmatprep.subr.mxu0 0.0
      %1179 = vmatpush1.msra.mxu0 0.0
      %1180 = vmatprep.subr.mxu0 0.0
      %1181 = vmatpush1.msra.mxu0 0.0
      %1182 = vmatprep.mubr.f32.mxu0 0.0
      %1183 = vmatmul.mubr.f32.gmra.mrb[0].mxu0 %v1107
      %v1184 = vpop.f32.mrb[0].mxu0
      %v1185 = vadd.f32 0.0, %v1184
      %v1186 = vpop.f32.mrb[0].mxu0
      %1187 = vmatprep.mubr.f32.mxu0 0.0
      %1188 = vmatmul.mubr.f32.gmra.mrb[0].mxu0 %v1110
      %v1189 = vpop.f32.mrb[0].mxu0
      %v1190 = vadd.f32 0.0, %v1189
      %v1191 = vpop.f32.mrb[0].mxu0
      %1192 = vmatprep.mubr.f32.mxu0 0.0
      %1193 = vmatmul.mubr.f32.gmra.mrb[0].mxu0 %v1113
      %v1194 = vpop.f32.mrb[0].mxu0
      %v1195 = vadd.f32 0.0, %v1194
      %v1196 = vpop.f32.mrb[0].mxu0
      %1197 = vdwg.mxu0
      %v1199 = vsel %vm775, %v904, 0
      %v1202 = vsel %vm775, %v906, 0
      %v1205 = vsel %vm775, %v908, 0
      %v1208 = vsel %vm930, %v920, 0
      %1210 = vmatprep.subr.mxu0 0.0
      %1211 = vmatpush1.msra.mxu0 %v918
      %1212 = vmatprep.subr.mxu0 0.0
      %1213 = vmatpush1.msra.mxu0 %v919
      %1214 = vmatprep.subr.mxu0 0.0
      %1215 = vmatpush1.msra.mxu0 %v1208
      %1216 = vmatprep.subr.mxu0 0.0
      %1217 = vmatpush1.msra.mxu0 0.0
      %1218 = vmatprep.subr.mxu0 0.0
      %1219 = vmatpush1.msra.mxu0 0.0
      %1220 = vmatprep.subr.mxu0 0.0
      %1221 = vmatpush1.msra.mxu0 0.0
      %1222 = vmatprep.subr.mxu0 0.0
      %1223 = vmatpush1.msra.mxu0 0.0
      %1224 = vmatprep.subr.mxu0 0.0
      %1225 = vmatpush1.msra.mxu0 0.0
      %1226 = vmatprep.subr.mxu0 0.0
      %1227 = vmatpush1.msra.mxu0 0.0
      %1228 = vmatprep.subr.mxu0 0.0
      %1229 = vmatpush1.msra.mxu0 0.0
      %1230 = vmatprep.subr.mxu0 0.0
      %1231 = vmatpush1.msra.mxu0 0.0
      %1232 = vmatprep.subr.mxu0 0.0
      %1233 = vmatpush1.msra.mxu0 0.0
      %1234 = vmatprep.subr.mxu0 0.0
      %1235 = vmatpush1.msra.mxu0 0.0
      %1236 = vmatprep.subr.mxu0 0.0
      %1237 = vmatpush1.msra.mxu0 0.0
      %1238 = vmatprep.subr.mxu0 0.0
      %1239 = vmatpush1.msra.mxu0 0.0
      %1240 = vmatprep.subr.mxu0 0.0
      %1241 = vmatpush1.msra.mxu0 0.0
      %1242 = vmatprep.subr.mxu0 0.0
      %1243 = vmatpush1.msra.mxu0 0.0
      %1244 = vmatprep.subr.mxu0 0.0
      %1245 = vmatpush1.msra.mxu0 0.0
      %1246 = vmatprep.subr.mxu0 0.0
      %1247 = vmatpush1.msra.mxu0 0.0
      %1248 = vmatprep.subr.mxu0 0.0
      %1249 = vmatpush1.msra.mxu0 0.0
      %1250 = vmatprep.subr.mxu0 0.0
      %1251 = vmatpush1.msra.mxu0 0.0
      %1252 = vmatprep.subr.mxu0 0.0
      %1253 = vmatpush1.msra.mxu0 0.0
      %1254 = vmatprep.subr.mxu0 0.0
      %1255 = vmatpush1.msra.mxu0 0.0
      %1256 = vmatprep.subr.mxu0 0.0
      %1257 = vmatpush1.msra.mxu0 0.0
      %1258 = vmatprep.subr.mxu0 0.0
      %1259 = vmatpush1.msra.mxu0 0.0
      %1260 = vmatprep.subr.mxu0 0.0
      %1261 = vmatpush1.msra.mxu0 0.0
      %1262 = vmatprep.subr.mxu0 0.0
      %1263 = vmatpush1.msra.mxu0 0.0
      %1264 = vmatprep.subr.mxu0 0.0
      %1265 = vmatpush1.msra.mxu0 0.0
      %1266 = vmatprep.subr.mxu0 0.0
      %1267 = vmatpush1.msra.mxu0 0.0
      %1268 = vmatprep.subr.mxu0 0.0
      %1269 = vmatpush1.msra.mxu0 0.0
      %1270 = vmatprep.subr.mxu0 0.0
      %1271 = vmatpush1.msra.mxu0 0.0
      %1272 = vmatprep.subr.mxu0 0.0
      %1273 = vmatpush1.msra.mxu0 0.0
      %1274 = vmatprep.mubr.f32.mxu0 0.0
      %1275 = vmatmul.mubr.f32.gmra.mrb[0].mxu0 %v1199
      %v1276 = vpop.f32.mrb[0].mxu0
      %v1277 = vadd.f32 0.0, %v1276
      %v1278 = vpop.f32.mrb[0].mxu0
      %1279 = vmatprep.mubr.f32.mxu0 0.0
      %1280 = vmatmul.mubr.f32.gmra.mrb[0].mxu0 %v1202
      %v1281 = vpop.f32.mrb[0].mxu0
      %v1282 = vadd.f32 0.0, %v1281
      %v1283 = vpop.f32.mrb[0].mxu0
      %1284 = vmatprep.mubr.f32.mxu0 0.0
      %1285 = vmatmul.mubr.f32.gmra.mrb[0].mxu0 %v1205
      %v1286 = vpop.f32.mrb[0].mxu0
      %v1287 = vadd.f32 0.0, %v1286
      %v1288 = vpop.f32.mrb[0].mxu0
      %1289 = vdwg.mxu0
      %1290 = vst.msk [vmem:[%s333] sm:$0xff] %vm382, %v1001
      %1291 = vst.msk [vmem:[%s333 + $0x8] sm:$0xff] %vm382, %v1006
      %vm1292 = vcmask 57344
      %1293 = vst.msk [vmem:[%s333 + $0x10] sm:$0x1] %vm1292, %v1011
      %1294 = vst.msk [vmem:[%s333 + $0x18] sm:$0xff] %vm382, %v1093
      %1295 = vst.msk [vmem:[%s333 + $0x20] sm:$0xff] %vm382, %v1098
      %1296 = vst.msk [vmem:[%s333 + $0x28] sm:$0x1] %vm1292, %v1103
      %1297 = vst.msk [vmem:[%s333 + $0x30] sm:$0xff] %vm382, %v1185
      %1298 = vst.msk [vmem:[%s333 + $0x38] sm:$0xff] %vm382, %v1190
      %1299 = vst.msk [vmem:[%s333 + $0x40] sm:$0x1] %vm1292, %v1195
      %1300 = vst.msk [vmem:[%s333 + $0x48] sm:$0xff] %vm382, %v1277
      %1301 = vst.msk [vmem:[%s333 + $0x50] sm:$0xff] %vm382, %v1282
      %1302 = vst.msk [vmem:[%s333 + $0x58] sm:$0x1] %vm1292, %v1287
      %1303 = vst.msk [vmem:[%s344] sm:$0xff] %vm775, %v886
      %1304 = vst.msk [vmem:[%s344 + $0x8] sm:$0xff] %vm775, %v888
      %1305 = vst.msk [vmem:[%s344 + $0x10] sm:$0x1] %vm782, %v890
      %1306 = vst.msk [vmem:[%s344 + $0x18] sm:$0xff] %vm775, %v892
      %1307 = vst.msk [vmem:[%s344 + $0x20] sm:$0xff] %vm775, %v894
      %1308 = vst.msk [vmem:[%s344 + $0x28] sm:$0x1] %vm782, %v896
      %1309 = vst.msk [vmem:[%s344 + $0x30] sm:$0xff] %vm775, %v898
      %1310 = vst.msk [vmem:[%s344 + $0x38] sm:$0xff] %vm775, %v900
      %1311 = vst.msk [vmem:[%s344 + $0x40] sm:$0x1] %vm782, %v902
      %1312 = vst.msk [vmem:[%s344 + $0x48] sm:$0xff] %vm775, %v904
      %1313 = vst.msk [vmem:[%s344 + $0x50] sm:$0xff] %vm775, %v906
      %1314 = vst.msk [vmem:[%s344 + $0x58] sm:$0x1] %vm782, %v908
      %s1315 = smul.u32 4, %s21
      %p1316 = scmp.lt.s32.totalorder %s20, 1
      %s1317 = scalar_select %p1316, %s20, 1
      %p1318 = scmp.lt.s32.totalorder %s1315, 3
      %s1319 = scalar_select %p1318, %s1315, 3
      %s1320 = smul.addr %s1319, 3
      %s1321 = smul.addr %s1317, 12
      %s1322 = sadd.s32 %s1320, %s1321
      %s1323 = smul.addr %s1322, 8
      %s1324 = scalar_lea.vmem %s3, %s1323
      %s1325 = smul.u32 4, %s21
      %p1326 = scmp.lt.s32.totalorder %s20, 1
      %s1327 = scalar_select %p1326, %s20, 1
      %p1328 = scmp.lt.s32.totalorder %s1325, 3
      %s1329 = scalar_select %p1328, %s1325, 3
      %s1330 = smul.addr %s1329, 3
      %s1331 = smul.addr %s1327, 12
      %s1332 = sadd.s32 %s1330, %s1331
      %s1333 = smul.addr %s1332, 8
      %s1334 = scalar_lea.vmem %s4, %s1333
      // Predicated region
      $region33: #{closed_call.18} parent=31 // pred_check
        %p1335 = pneg %p132
      $region34: #{closed_call.18} parent=31 // pred_check_branch
        %1337 = sbr.rel (%p1335) target = $region36
      $region35: #{closed_call.18} parent=31 // pred_region
        %s1338 = smul.u32 4, %s21
      $region36: #{closed_call.18} parent=31 // pred_fallthru
        _
      // Predicated region
      $region37: #{closed_call.18} parent=31 // pred_check
        %p1339 = pneg %p160
      $region38: #{closed_call.18} parent=31 // pred_check_branch
        %1341 = sbr.rel (%p1339) target = $region40
      $region39: #{closed_call.18} parent=31 // pred_region
        %s1342 = smul.u32 4, %s21
      $region40: #{closed_call.18} parent=31 // pred_fallthru
        _
    $region32: #{closed_call.18} parent=5 // pred_fallthru
      _
    %p1343 = scmp.le.s32.totalorder 2, %s11
    // Predicated region
    $region41: #{closed_call.18} parent=5 // pred_check
      %p1344 = pneg %p1343
    $region42: #{closed_call.18} parent=5 // pred_check_branch
      %1346 = sbr.rel (%p1344) target = $region44
    $region43: #{closed_call.18} parent=5 // pred_region
      %s1347 = ssub.s32 %s11, 2
      // Predicated region
      $region45: #{closed_call.18} parent=43 // pred_check
        %p1348 = pneg %p138
      $region46: #{closed_call.18} parent=43 // pred_check_branch
        %1350 = sbr.rel (%p1348) target = $region48
      $region47: #{closed_call.18} parent=43 // pred_region
        %s1351 = smul.u32 4, %s23
        %p1352 = scmp.lt.s32.totalorder %s22, 1
        %s1353 = scalar_select %p1352, %s22, 1
        %p1354 = scmp.lt.s32.totalorder %s1351, 3
        %s1355 = scalar_select %p1354, %s1351, 3
        %s1356 = smul.addr %s1355, 3
        %s1357 = smul.addr %s1353, 12
        %s1358 = sadd.s32 %s1356, %s1357
        %s1359 = smul.addr %s1358, 8
        %s1360 = scalar_lea.vmem %s3, %s1359
      $region48: #{closed_call.18} parent=43 // pred_fallthru
        _
      // Predicated region
      $region49: #{closed_call.18} parent=43 // pred_check
        %p1361 = pneg %p166
      $region50: #{closed_call.18} parent=43 // pred_check_branch
        %1363 = sbr.rel (%p1361) target = $region52
      $region51: #{closed_call.18} parent=43 // pred_region
        %s1364 = smul.u32 4, %s23
        %p1365 = scmp.lt.s32.totalorder %s22, 1
        %s1366 = scalar_select %p1365, %s22, 1
        %p1367 = scmp.lt.s32.totalorder %s1364, 3
        %s1368 = scalar_select %p1367, %s1364, 3
        %s1369 = smul.addr %s1368, 3
        %s1370 = smul.addr %s1366, 12
        %s1371 = sadd.s32 %s1369, %s1370
        %s1372 = smul.addr %s1371, 8
        %s1373 = scalar_lea.vmem %s4, %s1372
      $region52: #{closed_call.18} parent=43 // pred_fallthru
        _
    $region44: #{closed_call.18} parent=5 // pred_fallthru
      _
  $region6: #{closed_call.18} parent=0 // loop_footer
    %s15 = sadd.s32 1, %s11
  $region7: #{closed_call.18} parent=0 // loop_footer_branch
    %10 = sbr.rel target = $region3
  $region8: #{closed_call.18} parent=0 // loop_exit
    _

// kernel: closed_call.19
$region0: #{closed_call.19}
  #allocation0 [shape = 'u32[]', space=smem, size = 0x4, offset = 0x4, fixed_abs, tag = 'smem constant byte address 0x4 - core index']
  #allocation1 [shape = 'u32[144,128]{1,0:T(1,128)}', space=vmem, size = 0x12000, scoped, tag = 'internal scratch']
  #allocation2 [shape = 'f32[34,32]{1,0:T(8,128)}', space=vmem, size = 0x5000, scoped, tag = 'scratch operand']
  %s0 = inlined_call_operand.vmem [shape: f32[34,32], index: 0, kind: input, shape index: {}]
  %s1 = inlined_call_operand.vmem [shape: f32[32,32], index: 1, kind: input, shape index: {}]
  %s2 = inlined_call_operand.vmem [shape: f32[1,32], index: 2, kind: input, shape index: {}]
  %s3 = inlined_call_operand.vmem [shape: f32[34,32], index: 3, kind: input, shape index: {}]
  %s4 = inlined_call_operand.vmem [shape: f32[34,32], index: 4, kind: output, shape index: {}]
  %s5 = sld [smem:[#allocation0]]
  $region34: #{closed_call.19} parent=0
    _
  %s7 = ssub.s32 1, %s5
  %s8 = scalar_select 0, %s7, %s5
  // Predicated region
  $region2: #{closed_call.19} parent=0 // pred_check
    _
  $region3: #{closed_call.19} parent=0 // pred_check_branch
    %10 = sbr.rel (0) target = $region5
  $region4: #{closed_call.19} parent=0 // pred_region
    _
  $region5: #{closed_call.19} parent=0 // pred_fallthru
    _
  // Predicated region
  $region6: #{closed_call.19} parent=0 // pred_check
    _
  $region7: #{closed_call.19} parent=0 // pred_check_branch
    %12 = sbr.rel (0) target = $region9
  $region8: #{closed_call.19} parent=0 // pred_region
    _
  $region9: #{closed_call.19} parent=0 // pred_fallthru
    _
  // Predicated region
  $region10: #{closed_call.19} parent=0 // pred_check
    _
  $region11: #{closed_call.19} parent=0 // pred_check_branch
    %14 = sbr.rel (0) target = $region13
  $region12: #{closed_call.19} parent=0 // pred_region
    _
  $region13: #{closed_call.19} parent=0 // pred_fallthru
    _
  // Predicated region
  $region14: #{closed_call.19} parent=0 // pred_check
    _
  $region15: #{closed_call.19} parent=0 // pred_check_branch
    %16 = sbr.rel (0) target = $region17
  $region16: #{closed_call.19} parent=0 // pred_region
    _
  $region17: #{closed_call.19} parent=0 // pred_fallthru
    _
  %p17 = scmp.eq.s32.totalorder 0, 0
  // Predicated region
  $region18: #{closed_call.19} parent=0 // pred_check
    %p18 = pneg %p17
  $region19: #{closed_call.19} parent=0 // pred_check_branch
    %20 = sbr.rel (%p18) target = $region21
  $region20: #{closed_call.19} parent=0 // pred_region
    %vm21 = vcmask 261120
    %22 = vst.msk [vmem:[#allocation2] sm:$0xff] %vm21, 0.0
    %23 = vst.msk [vmem:[#allocation2 + $0x8] sm:$0xff] %vm21, 0.0
    %24 = vst.msk [vmem:[#allocation2 + $0x10] sm:$0xff] %vm21, 0.0
    %25 = vst.msk [vmem:[#allocation2 + $0x18] sm:$0xff] %vm21, 0.0
    %vm26 = vcmask 254976
    %27 = vst.msk [vmem:[#allocation2 + $0x20] sm:$0x3] %vm26, 0.0
  $region21: #{closed_call.19} parent=0 // pred_fallthru
    _
  %v28 = vld [vmem:[#allocation2] sm:$0xff]
  %v29 = vld [vmem:[#allocation2 + $0x8] sm:$0xff]
  %v30 = vld [vmem:[#allocation2 + $0x10] sm:$0xff]
  %v31 = vld [vmem:[#allocation2 + $0x18] sm:$0xff]
  %v32 = vld [vmem:[#allocation2 + $0x20] sm:$0x3]
  %v33 = vld [vmem:[%s0] sm:$0xff]
  %v34 = vld [vmem:[%s0 + $0x8] sm:$0xff]
  %v35 = vld [vmem:[%s0 + $0x10] sm:$0xff]
  %v36 = vld [vmem:[%s0 + $0x18] sm:$0xff]
  %v37 = vld [vmem:[%s0 + $0x20] sm:$0x3]
  %v38 = vld [vmem:[%s1] sm:$0xff]
  %v39 = vld [vmem:[%s1 + $0x8] sm:$0xff]
  %v40 = vld [vmem:[%s1 + $0x10] sm:$0xff]
  %v41 = vld [vmem:[%s1 + $0x18] sm:$0xff]
  %vm42 = vcmask 261120
  %v44 = vsel %vm42, %v33, 0
  %v47 = vsel %vm42, %v34, 0
  %v50 = vsel %vm42, %v35, 0
  %v53 = vsel %vm42, %v36, 0
  %v56 = vsel %vm42, %v37, 0
  %58 = vmatprep.subr.mxu0 0.0
  %59 = vmatpush1.msra.mxu0 %v38
  %60 = vmatprep.subr.mxu0 0.0
  %61 = vmatpush1.msra.mxu0 %v39
  %62 = vmatprep.subr.mxu0 0.0
  %63 = vmatpush1.msra.mxu0 %v40
  %64 = vmatprep.subr.mxu0 0.0
  %65 = vmatpush1.msra.mxu0 %v41
  %66 = vmatprep.subr.mxu0 0.0
  %67 = vmatpush1.msra.mxu0 0.0
  %68 = vmatprep.subr.mxu0 0.0
  %69 = vmatpush1.msra.mxu0 0.0
  %70 = vmatprep.subr.mxu0 0.0
  %71 = vmatpush1.msra.mxu0 0.0
  %72 = vmatprep.subr.mxu0 0.0
  %73 = vmatpush1.msra.mxu0 0.0
  %74 = vmatprep.subr.mxu0 0.0
  %75 = vmatpush1.msra.mxu0 0.0
  %76 = vmatprep.subr.mxu0 0.0
  %77 = vmatpush1.msra.mxu0 0.0
  %78 = vmatprep.subr.mxu0 0.0
  %79 = vmatpush1.msra.mxu0 0.0
  %80 = vmatprep.subr.mxu0 0.0
  %81 = vmatpush1.msra.mxu0 0.0
  %82 = vmatprep.subr.mxu0 0.0
  %83 = vmatpush1.msra.mxu0 0.0
  %84 = vmatprep.subr.mxu0 0.0
  %85 = vmatpush1.msra.mxu0 0.0
  %86 = vmatprep.subr.mxu0 0.0
  %87 = vmatpush1.msra.mxu0 0.0
  %88 = vmatprep.subr.mxu0 0.0
  %89 = vmatpush1.msra.mxu0 0.0
  %90 = vmatprep.subr.mxu0 0.0
  %91 = vmatpush1.msra.mxu0 0.0
  %92 = vmatprep.subr.mxu0 0.0
  %93 = vmatpush1.msra.mxu0 0.0
  %94 = vmatprep.subr.mxu0 0.0
  %95 = vmatpush1.msra.mxu0 0.0
  %96 = vmatprep.subr.mxu0 0.0
  %97 = vmatpush1.msra.mxu0 0.0
  %98 = vmatprep.subr.mxu0 0.0
  %99 = vmatpush1.msra.mxu0 0.0
  %100 = vmatprep.subr.mxu0 0.0
  %101 = vmatpush1.msra.mxu0 0.0
  %102 = vmatprep.subr.mxu0 0.0
  %103 = vmatpush1.msra.mxu0 0.0
  %104 = vmatprep.subr.mxu0 0.0
  %105 = vmatpush1.msra.mxu0 0.0
  %106 = vmatprep.subr.mxu0 0.0
  %107 = vmatpush1.msra.mxu0 0.0
  %108 = vmatprep.subr.mxu0 0.0
  %109 = vmatpush1.msra.mxu0 0.0
  %110 = vmatprep.subr.mxu0 0.0
  %111 = vmatpush1.msra.mxu0 0.0
  %112 = vmatprep.subr.mxu0 0.0
  %113 = vmatpush1.msra.mxu0 0.0
  %114 = vmatprep.subr.mxu0 0.0
  %115 = vmatpush1.msra.mxu0 0.0
  %116 = vmatprep.subr.mxu0 0.0
  %117 = vmatpush1.msra.mxu0 0.0
  %118 = vmatprep.subr.mxu0 0.0
  %119 = vmatpush1.msra.mxu0 0.0
  %120 = vmatprep.subr.mxu0 0.0
  %121 = vmatpush1.msra.mxu0 0.0
  %122 = vmatprep.mubr.f32.mxu0 0.0
  %123 = vmatmul.mubr.f32.gmra.mrb[0].mxu0 %v44
  %v124 = vpop.f32.mrb[0].mxu0
  %v125 = vadd.f32 0.0, %v124
  %v126 = vpop.f32.mrb[0].mxu0
  %127 = vmatprep.mubr.f32.mxu0 0.0
  %128 = vmatmul.mubr.f32.gmra.mrb[0].mxu0 %v47
  %v129 = vpop.f32.mrb[0].mxu0
  %v130 = vadd.f32 0.0, %v129
  %v131 = vpop.f32.mrb[0].mxu0
  %132 = vmatprep.mubr.f32.mxu0 0.0
  %133 = vmatmul.mubr.f32.gmra.mrb[0].mxu0 %v50
  %v134 = vpop.f32.mrb[0].mxu0
  %v135 = vadd.f32 0.0, %v134
  %v136 = vpop.f32.mrb[0].mxu0
  %137 = vmatprep.mubr.f32.mxu0 0.0
  %138 = vmatmul.mubr.f32.gmra.mrb[0].mxu0 %v53
  %v139 = vpop.f32.mrb[0].mxu0
  %v140 = vadd.f32 0.0, %v139
  %v141 = vpop.f32.mrb[0].mxu0
  %142 = vmatprep.mubr.f32.mxu0 0.0
  %143 = vmatmul.mubr.f32.gmra.mrb[0].mxu0 %v56
  %v144 = vpop.f32.mrb[0].mxu0
  %v145 = vadd.f32 0.0, %v144
  %v146 = vpop.f32.mrb[0].mxu0
  %147 = vdwg.mxu0
  %v148 = vadd.f32 %v28, %v125
  %v149 = vadd.f32 %v29, %v130
  %v150 = vadd.f32 %v30, %v135
  %v151 = vadd.f32 %v31, %v140
  %v152 = vadd.f32 %v32, %v145
  %153 = vst.msk [vmem:[#allocation2] sm:$0xff] %vm42, %v148
  %154 = vst.msk [vmem:[#allocation2 + $0x8] sm:$0xff] %vm42, %v149
  %155 = vst.msk [vmem:[#allocation2 + $0x10] sm:$0xff] %vm42, %v150
  %156 = vst.msk [vmem:[#allocation2 + $0x18] sm:$0xff] %vm42, %v151
  %vm157 = vcmask 254976
  %158 = vst.msk [vmem:[#allocation2 + $0x20] sm:$0x3] %vm157, %v152
  // Predicated region
  $region22: #{closed_call.19} parent=0 // pred_check
    %p159 = pneg %p17
  $region23: #{closed_call.19} parent=0 // pred_check_branch
    %161 = sbr.rel (%p159) target = $region25
  $region24: #{closed_call.19} parent=0 // pred_region
    %v162 = vld [vmem:[#allocation2] sm:$0xff]
    %v163 = vld [vmem:[#allocation2 + $0x8] sm:$0xff]
    %v164 = vld [vmem:[#allocation2 + $0x10] sm:$0xff]
    %v165 = vld [vmem:[#allocation2 + $0x18] sm:$0xff]
    %v166 = vld [vmem:[#allocation2 + $0x20] sm:$0x3]
    %v167 = vld [vmem:[%s2] sm:$0x1]
    %v169 = vlaneseq
    %v170 = vshrl.u32 %v169, 7
    %v171 = vsub.s32 0, %v170
    %v172 = vrot.slane %v167, %v171
    %v174 = vadd.f32 %v162, %v172
    %v175 = vadd.f32 %v163, %v172
    %v176 = vadd.f32 %v164, %v172
    %v177 = vadd.f32 %v165, %v172
    %v178 = vadd.f32 %v166, %v172
    %v179 = vld [vmem:[%s3] sm:$0xff]
    %v180 = vld [vmem:[%s3 + $0x8] sm:$0xff]
    %v181 = vld [vmem:[%s3 + $0x10] sm:$0xff]
    %v182 = vld [vmem:[%s3 + $0x18] sm:$0xff]
    %v183 = vld [vmem:[%s3 + $0x20] sm:$0x3]
    %v184 = vadd.f32 %v174, %v179
    %v185 = vadd.f32 %v175, %v180
    %v186 = vadd.f32 %v176, %v181
    %v187 = vadd.f32 %v177, %v182
    %v188 = vadd.f32 %v178, %v183
    %189 = vst.msk [vmem:[%s4] sm:$0xff] %vm42, %v184
    %190 = vst.msk [vmem:[%s4 + $0x8] sm:$0xff] %vm42, %v185
    %191 = vst.msk [vmem:[%s4 + $0x10] sm:$0xff] %vm42, %v186
    %192 = vst.msk [vmem:[%s4 + $0x18] sm:$0xff] %vm42, %v187
    %193 = vst.msk [vmem:[%s4 + $0x20] sm:$0x3] %vm157, %v188
  $region25: #{closed_call.19} parent=0 // pred_fallthru
    _
  // Predicated region
  $region26: #{closed_call.19} parent=0 // pred_check
    _
  $region27: #{closed_call.19} parent=0 // pred_check_branch
    %195 = sbr.rel (0) target = $region29
  $region28: #{closed_call.19} parent=0 // pred_region
    _
  $region29: #{closed_call.19} parent=0 // pred_fallthru
    _
  // Predicated region
  $region30: #{closed_call.19} parent=0 // pred_check
    _
  $region31: #{closed_call.19} parent=0 // pred_check_branch
    %197 = sbr.rel (0) target = $region33
  $region32: #{closed_call.19} parent=0 // pred_region
    _
  $region33: #{closed_call.19} parent=0 // pred_fallthru
    _

// kernel: closed_call.20
$region0: #{closed_call.20}
  #allocation0 [shape = 'u32[]', space=smem, size = 0x4, offset = 0x4, fixed_abs, tag = 'smem constant byte address 0x4 - core index']
  #allocation1 [shape = 'u32[144,128]{1,0:T(1,128)}', space=vmem, size = 0x12000, scoped, tag = 'internal scratch']
  %s0 = inlined_call_operand.vmem [shape: f32[34,32], index: 0, kind: input, shape index: {}]
  %s1 = inlined_call_operand.vmem [shape: f32[1,32], index: 1, kind: input, shape index: {}]
  %s2 = inlined_call_operand.vmem [shape: f32[1,32], index: 2, kind: input, shape index: {}]
  %s3 = inlined_call_operand.vmem [shape: f32[32,64], index: 3, kind: input, shape index: {}]
  %s4 = inlined_call_operand.vmem [shape: f32[1,64], index: 4, kind: input, shape index: {}]
  %s5 = inlined_call_operand.vmem [shape: f32[64,32], index: 5, kind: input, shape index: {}]
  %s6 = inlined_call_operand.vmem [shape: f32[1,32], index: 6, kind: input, shape index: {}]
  %s7 = inlined_call_operand.vmem [shape: f32[34,32], index: 7, kind: output, shape index: {}]
  %s8 = sld [smem:[#allocation0]]
  $region38: #{closed_call.20} parent=0
    _
  %s10 = ssub.s32 1, %s8
  %s11 = scalar_select 0, %s10, %s8
  // Predicated region
  $region2: #{closed_call.20} parent=0 // pred_check
    _
  $region3: #{closed_call.20} parent=0 // pred_check_branch
    %13 = sbr.rel (0) target = $region5
  $region4: #{closed_call.20} parent=0 // pred_region
    _
  $region5: #{closed_call.20} parent=0 // pred_fallthru
    _
  // Predicated region
  $region6: #{closed_call.20} parent=0 // pred_check
    _
  $region7: #{closed_call.20} parent=0 // pred_check_branch
    %15 = sbr.rel (0) target = $region9
  $region8: #{closed_call.20} parent=0 // pred_region
    _
  $region9: #{closed_call.20} parent=0 // pred_fallthru
    _
  // Predicated region
  $region10: #{closed_call.20} parent=0 // pred_check
    _
  $region11: #{closed_call.20} parent=0 // pred_check_branch
    %17 = sbr.rel (0) target = $region13
  $region12: #{closed_call.20} parent=0 // pred_region
    _
  $region13: #{closed_call.20} parent=0 // pred_fallthru
    _
  // Predicated region
  $region14: #{closed_call.20} parent=0 // pred_check
    _
  $region15: #{closed_call.20} parent=0 // pred_check_branch
    %19 = sbr.rel (0) target = $region17
  $region16: #{closed_call.20} parent=0 // pred_region
    _
  $region17: #{closed_call.20} parent=0 // pred_fallthru
    _
  // Predicated region
  $region18: #{closed_call.20} parent=0 // pred_check
    _
  $region19: #{closed_call.20} parent=0 // pred_check_branch
    %21 = sbr.rel (0) target = $region21
  $region20: #{closed_call.20} parent=0 // pred_region
    _
  $region21: #{closed_call.20} parent=0 // pred_fallthru
    _
  // Predicated region
  $region22: #{closed_call.20} parent=0 // pred_check
    _
  $region23: #{closed_call.20} parent=0 // pred_check_branch
    %23 = sbr.rel (0) target = $region25
  $region24: #{closed_call.20} parent=0 // pred_region
    _
  $region25: #{closed_call.20} parent=0 // pred_fallthru
    _
  // Predicated region
  $region26: #{closed_call.20} parent=0 // pred_check
    _
  $region27: #{closed_call.20} parent=0 // pred_check_branch
    %25 = sbr.rel (0) target = $region29
  $region28: #{closed_call.20} parent=0 // pred_region
    _
  $region29: #{closed_call.20} parent=0 // pred_fallthru
    _
  %v26 = vld [vmem:[%s0] sm:$0xff]
  %v27 = vld [vmem:[%s0 + $0x8] sm:$0xff]
  %v28 = vld [vmem:[%s0 + $0x10] sm:$0xff]
  %v29 = vld [vmem:[%s0 + $0x18] sm:$0xff]
  %v30 = vld [vmem:[%s0 + $0x20] sm:$0x3]
  %vm31 = vcmask 261120
  %v32 = vsel %vm31, %v26, 0.0
  %33 = vadd.xlane.f32.xlu0 %v32
  %v34 = vpop.xlane.xlu0 %33
  %v35 = vsel %vm31, %v27, 0.0
  %36 = vadd.xlane.f32.xlu0 %v35
  %v37 = vpop.xlane.xlu0 %36
  %v38 = vsel %vm31, %v28, 0.0
  %39 = vadd.xlane.f32.xlu0 %v38
  %v40 = vpop.xlane.xlu0 %39
  %v41 = vsel %vm31, %v29, 0.0
  %42 = vadd.xlane.f32.xlu0 %v41
  %v43 = vpop.xlane.xlu0 %42
  %vm44 = vcmask 254976
  %v45 = vsel %vm44, %v30, 0.0
  %46 = vadd.xlane.f32.xlu0 %v45
  %v47 = vpop.xlane.xlu0 %46
  %v48 = vrcp.pop 32.0
  %v49 = vmul.f32 %v34, %v48
  %v50 = vmul.f32 %v37, %v48
  %v51 = vmul.f32 %v40, %v48
  %v52 = vmul.f32 %v43, %v48
  %v53 = vmul.f32 %v47, %v48
  %v54 = vsub.f32 %v26, %v49
  %v55 = vsub.f32 %v27, %v50
  %v56 = vsub.f32 %v28, %v51
  %v57 = vsub.f32 %v29, %v52
  %v58 = vsub.f32 %v30, %v53
  %v59 = vmul.f32 %v54, %v54
  %v60 = vmul.f32 %v55, %v55
  %v61 = vmul.f32 %v56, %v56
  %v62 = vmul.f32 %v57, %v57
  %v63 = vmul.f32 %v58, %v58
  %v64 = vsel %vm31, %v59, 0.0
  %65 = vadd.xlane.f32.xlu0 %v64
  %v66 = vpop.xlane.xlu0 %65
  %v67 = vsel %vm31, %v60, 0.0
  %68 = vadd.xlane.f32.xlu0 %v67
  %v69 = vpop.xlane.xlu0 %68
  %v70 = vsel %vm31, %v61, 0.0
  %71 = vadd.xlane.f32.xlu0 %v70
  %v72 = vpop.xlane.xlu0 %71
  %v73 = vsel %vm31, %v62, 0.0
  %74 = vadd.xlane.f32.xlu0 %v73
  %v75 = vpop.xlane.xlu0 %74
  %v76 = vsel %vm44, %v63, 0.0
  %77 = vadd.xlane.f32.xlu0 %v76
  %v78 = vpop.xlane.xlu0 %77
  %v79 = vmul.f32 %v66, %v48
  %v80 = vmul.f32 %v69, %v48
  %v81 = vmul.f32 %v72, %v48
  %v82 = vmul.f32 %v75, %v48
  %v83 = vmul.f32 %v78, %v48
  %v84 = vadd.f32 %v79, 1e-06
  %v85 = vadd.f32 %v80, 1e-06
  %v86 = vadd.f32 %v81, 1e-06
  %v87 = vadd.f32 %v82, 1e-06
  %v88 = vadd.f32 %v83, 1e-06
  %v89 = vrsqrt.pop %v84
  %v90 = vrsqrt.pop %v85
  %v91 = vrsqrt.pop %v86
  %v92 = vrsqrt.pop %v87
  %v93 = vrsqrt.pop %v88
  %v94 = vmul.f32 %v54, %v89
  %v95 = vmul.f32 %v55, %v90
  %v96 = vmul.f32 %v56, %v91
  %v97 = vmul.f32 %v57, %v92
  %v98 = vmul.f32 %v58, %v93
  %v99 = vld [vmem:[%s1] sm:$0x1]
  %v101 = vlaneseq
  %v102 = vshrl.u32 %v101, 7
  %v103 = vsub.s32 0, %v102
  %v104 = vrot.slane %v99, %v103
  %v106 = vmul.f32 %v94, %v104
  %v107 = vmul.f32 %v95, %v104
  %v108 = vmul.f32 %v96, %v104
  %v109 = vmul.f32 %v97, %v104
  %v110 = vmul.f32 %v98, %v104
  %v111 = vld [vmem:[%s2] sm:$0x1]
  %v113 = vlaneseq
  %v114 = vshrl.u32 %v113, 7
  %v115 = vsub.s32 0, %v114
  %v116 = vrot.slane %v111, %v115
  %v118 = vadd.f32 %v106, %v116
  %v119 = vadd.f32 %v107, %v116
  %v120 = vadd.f32 %v108, %v116
  %v121 = vadd.f32 %v109, %v116
  %v122 = vadd.f32 %v110, %v116
  %v123 = vld [vmem:[%s3] sm:$0xff]
  %v124 = vld [vmem:[%s3 + $0x8] sm:$0xff]
  %v125 = vld [vmem:[%s3 + $0x10] sm:$0xff]
  %v126 = vld [vmem:[%s3 + $0x18] sm:$0xff]
  %v127 = vld [vmem:[%s4] sm:$0x1]
  %v129 = vlaneseq
  %v130 = vshrl.u32 %v129, 7
  %v131 = vsub.s32 0, %v130
  %v132 = vrot.slane %v127, %v131
  %v135 = vsel %vm31, %v118, 0
  %v138 = vsel %vm31, %v119, 0
  %v141 = vsel %vm31, %v120, 0
  %v144 = vsel %vm31, %v121, 0
  %v147 = vsel %vm31, %v122, 0
  %149 = vmatprep.subr.mxu0 0.0
  %150 = vmatpush1.msra.mxu0 %v123
  %151 = vmatprep.subr.mxu0 0.0
  %152 = vmatpush1.msra.mxu0 %v124
  %153 = vmatprep.subr.mxu0 0.0
  %154 = vmatpush1.msra.mxu0 %v125
  %155 = vmatprep.subr.mxu0 0.0
  %156 = vmatpush1.msra.mxu0 %v126
  %157 = vmatprep.subr.mxu0 0.0
  %158 = vmatpush1.msra.mxu0 0.0
  %159 = vmatprep.subr.mxu0 0.0
  %160 = vmatpush1.msra.mxu0 0.0
  %161 = vmatprep.subr.mxu0 0.0
  %162 = vmatpush1.msra.mxu0 0.0
  %163 = vmatprep.subr.mxu0 0.0
  %164 = vmatpush1.msra.mxu0 0.0
  %165 = vmatprep.subr.mxu0 0.0
  %166 = vmatpush1.msra.mxu0 0.0
  %167 = vmatprep.subr.mxu0 0.0
  %168 = vmatpush1.msra.mxu0 0.0
  %169 = vmatprep.subr.mxu0 0.0
  %170 = vmatpush1.msra.mxu0 0.0
  %171 = vmatprep.subr.mxu0 0.0
  %172 = vmatpush1.msra.mxu0 0.0
  %173 = vmatprep.subr.mxu0 0.0
  %174 = vmatpush1.msra.mxu0 0.0
  %175 = vmatprep.subr.mxu0 0.0
  %176 = vmatpush1.msra.mxu0 0.0
  %177 = vmatprep.subr.mxu0 0.0
  %178 = vmatpush1.msra.mxu0 0.0
  %179 = vmatprep.subr.mxu0 0.0
  %180 = vmatpush1.msra.mxu0 0.0
  %181 = vmatprep.subr.mxu0 0.0
  %182 = vmatpush1.msra.mxu0 0.0
  %183 = vmatprep.subr.mxu0 0.0
  %184 = vmatpush1.msra.mxu0 0.0
  %185 = vmatprep.subr.mxu0 0.0
  %186 = vmatpush1.msra.mxu0 0.0
  %187 = vmatprep.subr.mxu0 0.0
  %188 = vmatpush1.msra.mxu0 0.0
  %189 = vmatprep.subr.mxu0 0.0
  %190 = vmatpush1.msra.mxu0 0.0
  %191 = vmatprep.subr.mxu0 0.0
  %192 = vmatpush1.msra.mxu0 0.0
  %193 = vmatprep.subr.mxu0 0.0
  %194 = vmatpush1.msra.mxu0 0.0
  %195 = vmatprep.subr.mxu0 0.0
  %196 = vmatpush1.msra.mxu0 0.0
  %197 = vmatprep.subr.mxu0 0.0
  %198 = vmatpush1.msra.mxu0 0.0
  %199 = vmatprep.subr.mxu0 0.0
  %200 = vmatpush1.msra.mxu0 0.0
  %201 = vmatprep.subr.mxu0 0.0
  %202 = vmatpush1.msra.mxu0 0.0
  %203 = vmatprep.subr.mxu0 0.0
  %204 = vmatpush1.msra.mxu0 0.0
  %205 = vmatprep.subr.mxu0 0.0
  %206 = vmatpush1.msra.mxu0 0.0
  %207 = vmatprep.subr.mxu0 0.0
  %208 = vmatpush1.msra.mxu0 0.0
  %209 = vmatprep.subr.mxu0 0.0
  %210 = vmatpush1.msra.mxu0 0.0
  %211 = vmatprep.subr.mxu0 0.0
  %212 = vmatpush1.msra.mxu0 0.0
  %213 = vmatprep.mubr.f32.mxu0 0.0
  %214 = vmatmul.mubr.f32.gmra.mrb[0].mxu0 %v135
  %v215 = vpop.f32.mrb[0].mxu0
  %v216 = vadd.f32 %v132, %v215
  %v217 = vpop.f32.mrb[0].mxu0
  %218 = vmatprep.mubr.f32.mxu0 0.0
  %219 = vmatmul.mubr.f32.gmra.mrb[0].mxu0 %v138
  %v220 = vpop.f32.mrb[0].mxu0
  %v221 = vadd.f32 %v132, %v220
  %v222 = vpop.f32.mrb[0].mxu0
  %223 = vmatprep.mubr.f32.mxu0 0.0
  %224 = vmatmul.mubr.f32.gmra.mrb[0].mxu0 %v141
  %v225 = vpop.f32.mrb[0].mxu0
  %v226 = vadd.f32 %v132, %v225
  %v227 = vpop.f32.mrb[0].mxu0
  %228 = vmatprep.mubr.f32.mxu0 0.0
  %229 = vmatmul.mubr.f32.gmra.mrb[0].mxu0 %v144
  %v230 = vpop.f32.mrb[0].mxu0
  %v231 = vadd.f32 %v132, %v230
  %v232 = vpop.f32.mrb[0].mxu0
  %233 = vmatprep.mubr.f32.mxu0 0.0
  %234 = vmatmul.mubr.f32.gmra.mrb[0].mxu0 %v147
  %v235 = vpop.f32.mrb[0].mxu0
  %v236 = vadd.f32 %v132, %v235
  %v237 = vpop.f32.mrb[0].mxu0
  %238 = vdwg.mxu0
  %v239 = vmul.f32 %v216, 0.5
  %v240 = vmul.f32 %v221, 0.5
  %v241 = vmul.f32 %v226, 0.5
  %v242 = vmul.f32 %v231, 0.5
  %v243 = vmul.f32 %v236, 0.5
  %v244 = vrcp.pop 1.4142135
  %v245 = vmul.f32 %v216, %v244
  %v246 = vmul.f32 %v221, %v244
  %v247 = vmul.f32 %v226, %v244
  %v248 = vmul.f32 %v231, %v244
  %v249 = vmul.f32 %v236, %v244
  %v250 = verf.f32.pop %v245
  %v251 = verf.f32.pop %v246
  %v252 = verf.f32.pop %v247
  %v253 = verf.f32.pop %v248
  %v254 = verf.f32.pop %v249
  %v255 = vadd.f32 %v250, 1.0
  %v256 = vadd.f32 %v251, 1.0
  %v257 = vadd.f32 %v252, 1.0
  %v258 = vadd.f32 %v253, 1.0
  %v259 = vadd.f32 %v254, 1.0
  %v260 = vmul.f32 %v239, %v255
  %v261 = vmul.f32 %v240, %v256
  %v262 = vmul.f32 %v241, %v257
  %v263 = vmul.f32 %v242, %v258
  %v264 = vmul.f32 %v243, %v259
  %v265 = vld [vmem:[%s5] sm:$0xff]
  %v266 = vld [vmem:[%s5 + $0x8] sm:$0xff]
  %v267 = vld [vmem:[%s5 + $0x10] sm:$0xff]
  %v268 = vld [vmem:[%s5 + $0x18] sm:$0xff]
  %v269 = vld [vmem:[%s5 + $0x20] sm:$0xff]
  %v270 = vld [vmem:[%s5 + $0x28] sm:$0xff]
  %v271 = vld [vmem:[%s5 + $0x30] sm:$0xff]
  %v272 = vld [vmem:[%s5 + $0x38] sm:$0xff]
  %v273 = vld [vmem:[%s6] sm:$0x1]
  %v275 = vlaneseq
  %v276 = vshrl.u32 %v275, 7
  %v277 = vsub.s32 0, %v276
  %v278 = vrot.slane %v273, %v277
  %vm280 = vcmask 523264
  %v282 = vsel %vm280, %v260, 0
  %v285 = vsel %vm280, %v261, 0
  %v288 = vsel %vm280, %v262, 0
  %v291 = vsel %vm280, %v263, 0
  %v294 = vsel %vm280, %v264, 0
  %296 = vmatprep.subr.mxu0 0.0
  %297 = vmatpush1.msra.mxu0 %v265
  %298 = vmatprep.subr.mxu0 0.0
  %299 = vmatpush1.msra.mxu0 %v266
  %300 = vmatprep.subr.mxu0 0.0
  %301 = vmatpush1.msra.mxu0 %v267
  %302 = vmatprep.subr.mxu0 0.0
  %303 = vmatpush1.msra.mxu0 %v268
  %304 = vmatprep.subr.mxu0 0.0
  %305 = vmatpush1.msra.mxu0 %v269
  %306 = vmatprep.subr.mxu0 0.0
  %307 = vmatpush1.msra.mxu0 %v270
  %308 = vmatprep.subr.mxu0 0.0
  %309 = vmatpush1.msra.mxu0 %v271
  %310 = vmatprep.subr.mxu0 0.0
  %311 = vmatpush1.msra.mxu0 %v272
  %312 = vmatprep.subr.mxu0 0.0
  %313 = vmatpush1.msra.mxu0 0.0
  %314 = vmatprep.subr.mxu0 0.0
  %315 = vmatpush1.msra.mxu0 0.0
  %316 = vmatprep.subr.mxu0 0.0
  %317 = vmatpush1.msra.mxu0 0.0
  %318 = vmatprep.subr.mxu0 0.0
  %319 = vmatpush1.msra.mxu0 0.0
  %320 = vmatprep.subr.mxu0 0.0
  %321 = vmatpush1.msra.mxu0 0.0
  %322 = vmatprep.subr.mxu0 0.0
  %323 = vmatpush1.msra.mxu0 0.0
  %324 = vmatprep.subr.mxu0 0.0
  %325 = vmatpush1.msra.mxu0 0.0
  %326 = vmatprep.subr.mxu0 0.0
  %327 = vmatpush1.msra.mxu0 0.0
  %328 = vmatprep.subr.mxu0 0.0
  %329 = vmatpush1.msra.mxu0 0.0
  %330 = vmatprep.subr.mxu0 0.0
  %331 = vmatpush1.msra.mxu0 0.0
  %332 = vmatprep.subr.mxu0 0.0
  %333 = vmatpush1.msra.mxu0 0.0
  %334 = vmatprep.subr.mxu0 0.0
  %335 = vmatpush1.msra.mxu0 0.0
  %336 = vmatprep.subr.mxu0 0.0
  %337 = vmatpush1.msra.mxu0 0.0
  %338 = vmatprep.subr.mxu0 0.0
  %339 = vmatpush1.msra.mxu0 0.0
  %340 = vmatprep.subr.mxu0 0.0
  %341 = vmatpush1.msra.mxu0 0.0
  %342 = vmatprep.subr.mxu0 0.0
  %343 = vmatpush1.msra.mxu0 0.0
  %344 = vmatprep.subr.mxu0 0.0
  %345 = vmatpush1.msra.mxu0 0.0
  %346 = vmatprep.subr.mxu0 0.0
  %347 = vmatpush1.msra.mxu0 0.0
  %348 = vmatprep.subr.mxu0 0.0
  %349 = vmatpush1.msra.mxu0 0.0
  %350 = vmatprep.subr.mxu0 0.0
  %351 = vmatpush1.msra.mxu0 0.0
  %352 = vmatprep.subr.mxu0 0.0
  %353 = vmatpush1.msra.mxu0 0.0
  %354 = vmatprep.subr.mxu0 0.0
  %355 = vmatpush1.msra.mxu0 0.0
  %356 = vmatprep.subr.mxu0 0.0
  %357 = vmatpush1.msra.mxu0 0.0
  %358 = vmatprep.subr.mxu0 0.0
  %359 = vmatpush1.msra.mxu0 0.0
  %360 = vmatprep.mubr.f32.mxu0 0.0
  %361 = vmatmul.mubr.f32.gmra.mrb[0].mxu0 %v282
  %v362 = vpop.f32.mrb[0].mxu0
  %v363 = vadd.f32 %v278, %v362
  %v364 = vpop.f32.mrb[0].mxu0
  %365 = vmatprep.mubr.f32.mxu0 0.0
  %366 = vmatmul.mubr.f32.gmra.mrb[0].mxu0 %v285
  %v367 = vpop.f32.mrb[0].mxu0
  %v368 = vadd.f32 %v278, %v367
  %v369 = vpop.f32.mrb[0].mxu0
  %370 = vmatprep.mubr.f32.mxu0 0.0
  %371 = vmatmul.mubr.f32.gmra.mrb[0].mxu0 %v288
  %v372 = vpop.f32.mrb[0].mxu0
  %v373 = vadd.f32 %v278, %v372
  %v374 = vpop.f32.mrb[0].mxu0
  %375 = vmatprep.mubr.f32.mxu0 0.0
  %376 = vmatmul.mubr.f32.gmra.mrb[0].mxu0 %v291
  %v377 = vpop.f32.mrb[0].mxu0
  %v378 = vadd.f32 %v278, %v377
  %v379 = vpop.f32.mrb[0].mxu0
  %380 = vmatprep.mubr.f32.mxu0 0.0
  %381 = vmatmul.mubr.f32.gmra.mrb[0].mxu0 %v294
  %v382 = vpop.f32.mrb[0].mxu0
  %v383 = vadd.f32 %v278, %v382
  %v384 = vpop.f32.mrb[0].mxu0
  %385 = vdwg.mxu0
  %v386 = vadd.f32 %v363, %v26
  %v387 = vadd.f32 %v368, %v27
  %v388 = vadd.f32 %v373, %v28
  %v389 = vadd.f32 %v378, %v29
  %v390 = vadd.f32 %v383, %v30
  %391 = vst.msk [vmem:[%s7] sm:$0xff] %vm31, %v386
  %392 = vst.msk [vmem:[%s7 + $0x8] sm:$0xff] %vm31, %v387
  %393 = vst.msk [vmem:[%s7 + $0x10] sm:$0xff] %vm31, %v388
  %394 = vst.msk [vmem:[%s7 + $0x18] sm:$0xff] %vm31, %v389
  %395 = vst.msk [vmem:[%s7 + $0x20] sm:$0x3] %vm44, %v390
  // Predicated region
  $region30: #{closed_call.20} parent=0 // pred_check
    _
  $region31: #{closed_call.20} parent=0 // pred_check_branch
    %397 = sbr.rel (0) target = $region33
  $region32: #{closed_call.20} parent=0 // pred_region
    _
  $region33: #{closed_call.20} parent=0 // pred_fallthru
    _
  // Predicated region
  $region34: #{closed_call.20} parent=0 // pred_check
    _
  $region35: #{closed_call.20} parent=0 // pred_check_branch
    %399 = sbr.rel (0) target = $region37
  $region36: #{closed_call.20} parent=0 // pred_region
    _
  $region37: #{closed_call.20} parent=0 // pred_fallthru
    _

// kernel: _lambda_.3
$region0: #{_lambda_.3}
  #allocation0 [shape = 'u32[]', space=smem, size = 0x4, offset = 0x4, fixed_abs, tag = 'smem constant byte address 0x4 - core index']
  #allocation1 [shape = 'u32[144,128]{1,0:T(1,128)}', space=vmem, size = 0x12000, scoped, tag = 'internal scratch']
  %s0 = inlined_call_operand.vmem [shape: f32[2,32], index: 0, kind: input, shape index: {}]
  %s1 = inlined_call_operand.vmem [shape: f32[1,32], index: 1, kind: input, shape index: {}]
  %s2 = inlined_call_operand.vmem [shape: f32[1,32], index: 2, kind: input, shape index: {}]
  %s3 = inlined_call_operand.vmem [shape: f32[32,10], index: 3, kind: input, shape index: {}]
  %s4 = inlined_call_operand.vmem [shape: f32[1,10], index: 4, kind: input, shape index: {}]
  %s5 = inlined_call_operand.hbm [shape: f32[2,10], index: 5, kind: output, shape index: {}]
  %s6 = sld [smem:[#allocation0]]
  $region30: #{_lambda_.3} parent=0
    _
  %s8 = ssub.s32 1, %s6
  %s9 = scalar_select 0, %s8, %s6
  $region1: #{_lambda_.3} parent=0
    #allocation2 [shape = 'u8[1024]{0}', space=vmem, size = 0x400, scoped, tag = 'output window, operand 0, single buffered']
    #allocation3 [shape = 's32[1]{0}', space=sflag, size = 0x4, scoped, tag = 'scoped memory for _lambda_.3']
    %10 = vsyncpa [#allocation3], 0
    // Predicated region
    $region2: #{_lambda_.3} parent=1 // pred_check
      _
    $region3: #{_lambda_.3} parent=1 // pred_check_branch
      %12 = sbr.rel (0) target = $region5
    $region4: #{_lambda_.3} parent=1 // pred_region
      _
    $region5: #{_lambda_.3} parent=1 // pred_fallthru
      _
    // Predicated region
    $region6: #{_lambda_.3} parent=1 // pred_check
      _
    $region7: #{_lambda_.3} parent=1 // pred_check_branch
      %14 = sbr.rel (0) target = $region9
    $region8: #{_lambda_.3} parent=1 // pred_region
      _
    $region9: #{_lambda_.3} parent=1 // pred_fallthru
      _
    // Predicated region
    $region10: #{_lambda_.3} parent=1 // pred_check
      _
    $region11: #{_lambda_.3} parent=1 // pred_check_branch
      %16 = sbr.rel (0) target = $region13
    $region12: #{_lambda_.3} parent=1 // pred_region
      _
    $region13: #{_lambda_.3} parent=1 // pred_fallthru
      _
    // Predicated region
    $region14: #{_lambda_.3} parent=1 // pred_check
      _
    $region15: #{_lambda_.3} parent=1 // pred_check_branch
      %18 = sbr.rel (0) target = $region17
    $region16: #{_lambda_.3} parent=1 // pred_region
      _
    $region17: #{_lambda_.3} parent=1 // pred_fallthru
      _
    // Predicated region
    $region18: #{_lambda_.3} parent=1 // pred_check
      _
    $region19: #{_lambda_.3} parent=1 // pred_check_branch
      %20 = sbr.rel (0) target = $region21
    $region20: #{_lambda_.3} parent=1 // pred_region
      _
    $region21: #{_lambda_.3} parent=1 // pred_fallthru
      _
    %v21 = vld [vmem:[%s0] sm:$0x3]
    %vm22 = vcmask 254976
    %v23 = vsel %vm22, %v21, 0.0
    %24 = vadd.xlane.f32.xlu0 %v23
    %v25 = vpop.xlane.xlu0 %24
    %v26 = vrcp.pop 32.0
    %v27 = vmul.f32 %v25, %v26
    %v28 = vsub.f32 %v21, %v27
    %v29 = vmul.f32 %v28, %v28
    %v30 = vsel %vm22, %v29, 0.0
    %31 = vadd.xlane.f32.xlu0 %v30
    %v32 = vpop.xlane.xlu0 %31
    %v33 = vmul.f32 %v32, %v26
    %v34 = vadd.f32 %v33, 1e-06
    %v35 = vrsqrt.pop %v34
    %v36 = vmul.f32 %v28, %v35
    %v37 = vld [vmem:[%s1] sm:$0x1]
    %v39 = vlaneseq
    %v40 = vshrl.u32 %v39, 7
    %v41 = vsub.s32 0, %v40
    %v42 = vrot.slane %v37, %v41
    %v44 = vmul.f32 %v36, %v42
    %v45 = vld [vmem:[%s2] sm:$0x1]
    %v47 = vlaneseq
    %v48 = vshrl.u32 %v47, 7
    %v49 = vsub.s32 0, %v48
    %v50 = vrot.slane %v45, %v49
    %v52 = vadd.f32 %v44, %v50
    %v53 = vld [vmem:[%s3] sm:$0xff]
    %v54 = vld [vmem:[%s3 + $0x8] sm:$0xff]
    %v55 = vld [vmem:[%s3 + $0x10] sm:$0xff]
    %v56 = vld [vmem:[%s3 + $0x18] sm:$0xff]
    %v57 = vld [vmem:[%s4] sm:$0x1]
    %v59 = vlaneseq
    %v60 = vshrl.u32 %v59, 7
    %v61 = vsub.s32 0, %v60
    %v62 = vrot.slane %v57, %v61
    %vm64 = vcmask 261120
    %v66 = vsel %vm64, %v52, 0
    %68 = vmatprep.subr.mxu0 0.0
    %69 = vmatpush1.msra.mxu0 %v53
    %70 = vmatprep.subr.mxu0 0.0
    %71 = vmatpush1.msra.mxu0 %v54
    %72 = vmatprep.subr.mxu0 0.0
    %73 = vmatpush1.msra.mxu0 %v55
    %74 = vmatprep.subr.mxu0 0.0
    %75 = vmatpush1.msra.mxu0 %v56
    %76 = vmatprep.subr.mxu0 0.0
    %77 = vmatpush1.msra.mxu0 0.0
    %78 = vmatprep.subr.mxu0 0.0
    %79 = vmatpush1.msra.mxu0 0.0
    %80 = vmatprep.subr.mxu0 0.0
    %81 = vmatpush1.msra.mxu0 0.0
    %82 = vmatprep.subr.mxu0 0.0
    %83 = vmatpush1.msra.mxu0 0.0
    %84 = vmatprep.subr.mxu0 0.0
    %85 = vmatpush1.msra.mxu0 0.0
    %86 = vmatprep.subr.mxu0 0.0
    %87 = vmatpush1.msra.mxu0 0.0
    %88 = vmatprep.subr.mxu0 0.0
    %89 = vmatpush1.msra.mxu0 0.0
    %90 = vmatprep.subr.mxu0 0.0
    %91 = vmatpush1.msra.mxu0 0.0
    %92 = vmatprep.subr.mxu0 0.0
    %93 = vmatpush1.msra.mxu0 0.0
    %94 = vmatprep.subr.mxu0 0.0
    %95 = vmatpush1.msra.mxu0 0.0
    %96 = vmatprep.subr.mxu0 0.0
    %97 = vmatpush1.msra.mxu0 0.0
    %98 = vmatprep.subr.mxu0 0.0
    %99 = vmatpush1.msra.mxu0 0.0
    %100 = vmatprep.subr.mxu0 0.0
    %101 = vmatpush1.msra.mxu0 0.0
    %102 = vmatprep.subr.mxu0 0.0
    %103 = vmatpush1.msra.mxu0 0.0
    %104 = vmatprep.subr.mxu0 0.0
    %105 = vmatpush1.msra.mxu0 0.0
    %106 = vmatprep.subr.mxu0 0.0
    %107 = vmatpush1.msra.mxu0 0.0
    %108 = vmatprep.subr.mxu0 0.0
    %109 = vmatpush1.msra.mxu0 0.0
    %110 = vmatprep.subr.mxu0 0.0
    %111 = vmatpush1.msra.mxu0 0.0
    %112 = vmatprep.subr.mxu0 0.0
    %113 = vmatpush1.msra.mxu0 0.0
    %114 = vmatprep.subr.mxu0 0.0
    %115 = vmatpush1.msra.mxu0 0.0
    %116 = vmatprep.subr.mxu0 0.0
    %117 = vmatpush1.msra.mxu0 0.0
    %118 = vmatprep.subr.mxu0 0.0
    %119 = vmatpush1.msra.mxu0 0.0
    %120 = vmatprep.subr.mxu0 0.0
    %121 = vmatpush1.msra.mxu0 0.0
    %122 = vmatprep.subr.mxu0 0.0
    %123 = vmatpush1.msra.mxu0 0.0
    %124 = vmatprep.subr.mxu0 0.0
    %125 = vmatpush1.msra.mxu0 0.0
    %126 = vmatprep.subr.mxu0 0.0
    %127 = vmatpush1.msra.mxu0 0.0
    %128 = vmatprep.subr.mxu0 0.0
    %129 = vmatpush1.msra.mxu0 0.0
    %130 = vmatprep.subr.mxu0 0.0
    %131 = vmatpush1.msra.mxu0 0.0
    %132 = vmatprep.mubr.f32.mxu0 0.0
    %133 = vmatmul.mubr.f32.gmra.mrb[0].mxu0 %v66
    %v134 = vpop.f32.mrb[0].mxu0
    %v135 = vadd.f32 %v62, %v134
    %v136 = vpop.f32.mrb[0].mxu0
    %137 = vdwg.mxu0
    %vm138 = vcmask 74752
    %139 = vst.msk [vmem:[#allocation2] sm:$0x3] %vm138, %v135
    // Predicated region
    $region22: #{_lambda_.3} parent=1 // pred_check
      _
    $region23: #{_lambda_.3} parent=1 // pred_check_branch
      %141 = sbr.rel (0) target = $region25
    $region24: #{_lambda_.3} parent=1 // pred_region
      %s143 = ssub.s32 32, 32
      %144 = vsyncadd [#allocation3], %s143
      %s146 = sshll.u32 [#allocation2], 4
      %s147 = int_to_ptr.vmem [resolvable:$true] %s146
      %149 = dma.vmem_to_hbm [thread:$0]  %s147, 32, %s5, [#allocation3]
    $region25: #{_lambda_.3} parent=1 // pred_fallthru
      _
    // Predicated region
    $region26: #{_lambda_.3} parent=1 // pred_check
      _
    $region27: #{_lambda_.3} parent=1 // pred_check_branch
      %151 = sbr.rel (0) target = $region29
    $region28: #{_lambda_.3} parent=1 // pred_region
      %152 = dma.done [#allocation3], 32
    $region29: #{_lambda_.3} parent=1 // pred_fallthru
      _
    %153 = vsyncpa [#allocation3], 1

</llo_original>
